<compile_context>
chip_gen: v5e
topology: v5e:2x2
jax: 0.10.0
libtpu: 0.0.40
codegen_flags: <defaults>
</compile_context>

<pallas_src>
import functools

import jax
import jax.numpy as jnp
from jax import lax
from jax.experimental import pallas as pl
from jax.experimental.pallas import tpu as pltpu

EPS = 1e-5           # PyTorch default eps for BatchNorm2d and GroupNorm
GROUPS = 16          # nn.GroupNorm(16, out_channels)
MXU_DTYPE = jnp.bfloat16   # matmul operand dtype (accumulation stays f32)


# --------------------------------------------------------------------------
# shared in-kernel math
# --------------------------------------------------------------------------
def _fill_padded(pad_ref, interior_bf16, *, wp, pad_l):
    """Write row-flat activation into the conv scratch and zero the halos.

    INVARIANT (do not break): every tap read below touches only
    [pad_l-(wp+1), pad_l+HWp+wp+1), which is exactly the region initialized
    here (interior + two (wp+1)-wide halos).  VMEM has no bounds checks, so
    changing tap offsets or the scratch width requires revisiting this.
    """
    C, HWp = interior_bf16.shape
    pad_ref[:, pad_l:pad_l + HWp] = interior_bf16
    halo = jnp.zeros((C, wp + 1), pad_ref.dtype)
    pad_ref[:, pad_l - (wp + 1):pad_l] = halo                 # top pad row
    pad_ref[:, pad_l + HWp:pad_l + HWp + wp + 1] = halo       # bottom pad row


def _conv3x3_taps(x_bf16, w9_ref, pad_ref, *, wp, pad_l):
    """3x3 'SAME' conv as 9 accumulating MXU matmuls (K = Cin each)."""
    _, HWp = x_bf16.shape
    _fill_padded(pad_ref, x_bf16, wp=wp, pad_l=pad_l)
    acc = None
    t = 0
    for dy in range(3):
        for dx in range(3):
            s = pad_l - (wp + 1) + dy * wp + dx
            part = jnp.dot(w9_ref[t], pad_ref[:, s:s + HWp],
                           preferred_element_type=jnp.float32)
            acc = part if acc is None else acc + part
            t += 1
    return acc


def _conv3x3_folded(x_bf16, w_ref, pad_ref, x2_ref, *, wp, pad_l):
    """3x3 'SAME' conv as ONE MXU matmul with the taps folded into K = 9*C."""
    C, HWp = x_bf16.shape
    _fill_padded(pad_ref, x_bf16, wp=wp, pad_l=pad_l)
    t = 0
    for dy in range(3):
        for dx in range(3):
            s = pad_l - (wp + 1) + dy * wp + dx
            x2_ref[t * C:(t + 1) * C, :] = pad_ref[:, s:s + HWp]
            t += 1
    return jnp.dot(w_ref[...], x2_ref[...], preferred_element_type=jnp.float32)


def _stage1_math(x_bf16, w9_ref, b1, msk, pad1_ref, *, wp, pad_l):
    """conv1 + bias; returns f32 acc and masked per-channel sum / sum-sq."""
    acc = _conv3x3_taps(x_bf16, w9_ref, pad1_ref, wp=wp, pad_l=pad_l) + b1
    am = acc * msk
    return (acc,
            jnp.sum(am, axis=1, keepdims=True),
            jnp.sum(acc * am, axis=1, keepdims=True))


def _stage2_math(y1_f32, bn_scale, bn_shift, b2, gn_g, gn_b, msk,
                 w2_ref, g_ref, pad2_ref, x2_ref, *, wp, pad_l):
    """BN-affine + ReLU + conv2 + GroupNorm + ReLU for one sample."""
    a = jnp.maximum(y1_f32 * bn_scale + bn_shift, 0.0) * msk
    acc = _conv3x3_folded(a.astype(MXU_DTYPE), w2_ref, pad2_ref, x2_ref,
                          wp=wp, pad_l=pad_l) + b2
    # GroupNorm stats restricted to valid columns via msk.
    # NOTE: single-pass E[x^2]-E[x]^2 in f32; fine here but cancels if
    # |mean| >> std on real data (document / switch to two-pass for training).
    am = acc * msk
    ch_sum = jnp.sum(am, axis=1, keepdims=True)               # (C, 1)
    ch_sq = jnp.sum(acc * am, axis=1, keepdims=True)          # (C, 1)
    mean_c = jnp.dot(g_ref[...], ch_sum, preferred_element_type=jnp.float32)
    ex2_c = jnp.dot(g_ref[...], ch_sq, preferred_element_type=jnp.float32)
    inv_c = lax.rsqrt(ex2_c - mean_c * mean_c + EPS)
    return jnp.maximum((acc - mean_c) * (inv_c * gn_g) + gn_b, 0.0)


# --------------------------------------------------------------------------
# fused kernel: grid = (phase, sample); whole batch's y1 resident in VMEM
# --------------------------------------------------------------------------
def _fused_kernel(x_ref, w1_ref, w2_ref, p_ref, g_ref, mask_ref, out_ref,
                  y1_ref, ssum_ref, ssq_ref, pad1_ref, pad2_ref, x2_ref,
                  *, wp, pad_l, inv_count):
    # p_ref columns: [b1, bn_gamma, bn_beta, b2, gn_gamma, gn_beta]
    phase = pl.program_id(0)
    n = pl.program_id(1)
    msk = mask_ref[...]

    @pl.when(phase == 0)
    def _():
        @pl.when(n == 0)
        def _():
            ssum_ref[...] = jnp.zeros_like(ssum_ref)
            ssq_ref[...] = jnp.zeros_like(ssq_ref)

        acc, s, q = _stage1_math(x_ref[...], w1_ref, p_ref[:, 0:1], msk,
                                 pad1_ref, wp=wp, pad_l=pad_l)
        y1_ref[n] = acc.astype(y1_ref.dtype)      # bf16, stays in VMEM
        ssum_ref[...] += s
        ssq_ref[...] += q

    @pl.when(phase == 1)
    def _():
        mean = ssum_ref[...] * inv_count
        var = ssq_ref[...] * inv_count - mean * mean
        bn_scale = p_ref[:, 1:2] * lax.rsqrt(var + EPS)
        bn_shift = p_ref[:, 2:3] - mean * bn_scale
        y1 = y1_ref[n].astype(jnp.float32)
        out_ref[...] = _stage2_math(
            y1, bn_scale, bn_shift, p_ref[:, 3:4], p_ref[:, 4:5], p_ref[:, 5:6],
            msk, w2_ref, g_ref, pad2_ref, x2_ref, wp=wp, pad_l=pad_l)


# --------------------------------------------------------------------------
# two-call fallback kernels (used when the batch does not fit in VMEM)
# --------------------------------------------------------------------------
def _conv1_kernel(x_ref, w1_ref, b1_ref, mask_ref, y_ref, stat_ref, pad1_ref,
                  *, wp, pad_l):
    msk = mask_ref[...]
    acc, s, q = _stage1_math(x_ref[...], w1_ref, b1_ref[...], msk, pad1_ref,
                             wp=wp, pad_l=pad_l)
    y_ref[...] = acc.astype(y_ref.dtype)                      # bf16 to HBM
    stat_ref[...] = jnp.concatenate([s, q], axis=1)           # (C, 2)


def _stage2_kernel(y1_ref, p_ref, w2_ref, g_ref, mask_ref, out_ref,
                   pad2_ref, x2_ref, *, wp, pad_l):
    # p_ref columns: [bn_scale, bn_shift, b2, gn_gamma, gn_beta]
    msk = mask_ref[...]
    out_ref[...] = _stage2_math(
        y1_ref[...].astype(jnp.float32), p_ref[:, 0:1], p_ref[:, 1:2],
        p_ref[:, 2:3], p_ref[:, 3:4], p_ref[:, 4:5], msk,
        w2_ref, g_ref, pad2_ref, x2_ref, wp=wp, pad_l=pad_l)


# --------------------------------------------------------------------------
# wrapper
# --------------------------------------------------------------------------
def double_conv_forward(x_nchw, params, *, force_two_call=False):
    w1, b1, bn_g, bn_b, w2, b2, gn_g, gn_b = params
    N, Cin, H, W = x_nchw.shape
    Cout = w1.shape[0]
    cg = Cout // GROUPS
    wp = W + 2
    HWr = H * wp                               # true row-flat extent
    HWp = -(-HWr // 128) * 128                 # lane-dense padded extent
    pad_l = -(-(wp + 1) // 128) * 128          # lane-aligned interior offset
    P2 = pad_l + HWp + wp + 1                  # padded-scratch width

    # ---- glue: row-flat zero-padded input (junk cols = conv padding) ------
    xw = jnp.pad(x_nchw.astype(jnp.float32), ((0, 0), (0, 0), (0, 0), (0, 2)))
    x_flat = jnp.pad(xw.reshape(N, Cin, HWr),
                     ((0, 0), (0, 0), (0, HWp - HWr))).astype(MXU_DTYPE)

    # conv1 weights as (tap, Cout, Cin); conv2 weights folded into K=9*Cout,
    # row order t*Cout + ci with t = dy*3 + dx (matches the im2col stack).
    w1m = jnp.transpose(w1, (2, 3, 0, 1)).reshape(9, Cout, Cin).astype(MXU_DTYPE)
    w2m = jnp.transpose(w2, (0, 2, 3, 1)).reshape(Cout, 9 * Cout).astype(MXU_DTYPE)

    idx = jnp.arange(HWp)
    mask = (((idx % wp) < W) & (idx < HWr)).astype(jnp.float32).reshape(1, HWp)
    grp = jnp.arange(Cout) // cg
    gmat = (grp[:, None] == grp[None, :]).astype(jnp.float32) / float(cg * H * W)

    # ---- VMEM budget / path selection -------------------------------------
    bpe = 2   # bf16
    scratch_bytes = (N * Cout * HWp * bpe + Cin * P2 * bpe + Cout * P2 * bpe
                     + 9 * Cout * HWp * bpe + 2 * Cout * 4)
    block_bytes = (2 * (Cin * HWp * bpe + Cout * HWp * 4)
                   + 9 * Cout * Cin * bpe + 9 * Cout * Cout * bpe
                   + Cout * 6 * 4 + Cout * Cout * 4 + HWp * 4)
    vmem_need = scratch_bytes + block_bytes
    vmem_limit = int(min(64 * 2 ** 20, max(32 * 2 ** 20, 2 * vmem_need)))
    use_fused = (not force_two_call) and (vmem_need < 40 * 2 ** 20)

    mm1 = 2 * Cout * 9 * Cin * HWp
    mm2 = 2 * Cout * 9 * Cout * HWp + 4 * Cout * Cout
    bytes_x = N * Cin * HWp * bpe
    bytes_y1 = N * Cout * HWp * bpe
    bytes_out = N * Cout * HWp * 4
    bytes_w = 9 * Cout * Cin * bpe + 9 * Cout * Cout * bpe + Cout * 40 + HWp * 4

    if use_fused:
        ce = pl.CostEstimate(flops=int(N * (mm1 + mm2)),
                             transcendentals=int(2 * N * Cout),
                             bytes_accessed=int(bytes_x + bytes_out + bytes_w))
        pvec = jnp.stack([b1, bn_g, bn_b, b2, gn_g, gn_b],
                         axis=1).astype(jnp.float32)           # (Cout, 6)
        out_flat = pl.pallas_call(
            functools.partial(_fused_kernel, wp=wp, pad_l=pad_l,
                              inv_count=1.0 / float(N * H * W)),
            grid=(2, N),     # phase axis slowest: all conv1 steps, then stage2
            in_specs=[
                pl.BlockSpec((None, Cin, HWp), lambda p, n: (n * (1 - p), 0, 0)),
                pl.BlockSpec((9, Cout, Cin), lambda p, n: (0, 0, 0)),
                pl.BlockSpec((Cout, 9 * Cout), lambda p, n: (0, 0)),
                pl.BlockSpec((Cout, 6), lambda p, n: (0, 0)),
                pl.BlockSpec((Cout, Cout), lambda p, n: (0, 0)),
                pl.BlockSpec((1, HWp), lambda p, n: (0, 0)),
            ],
            # During phase 0 every step maps to block 0 (never flushed before
            # phase 1 rewrites it) so output blocks are only visited
            # consecutively; each block is written exactly once in phase 1.
            out_specs=pl.BlockSpec((None, Cout, HWp), lambda p, n: (p * n, 0, 0)),
            out_shape=jax.ShapeDtypeStruct((N, Cout, HWp), jnp.float32),
            scratch_shapes=[
                pltpu.VMEM((N, Cout, HWp), MXU_DTYPE),      # y1, whole batch
                pltpu.VMEM((Cout, 1), jnp.float32),         # BN sum
                pltpu.VMEM((Cout, 1), jnp.float32),         # BN sum of squares
                pltpu.VMEM((Cin, P2), MXU_DTYPE),           # conv1 padded input
                pltpu.VMEM((Cout, P2), MXU_DTYPE),          # conv2 padded input
                pltpu.VMEM((9 * Cout, HWp), MXU_DTYPE),     # conv2 im2col
            ],
            compiler_params=pltpu.CompilerParams(
                dimension_semantics=("arbitrary", "arbitrary"),
                vmem_limit_bytes=vmem_limit),
            cost_estimate=ce,
        )(x_flat, w1m, w2m, pvec, gmat, mask)
    else:
        cpar = pltpu.CompilerParams(dimension_semantics=("parallel",),
                                    vmem_limit_bytes=vmem_limit)
        ce1 = pl.CostEstimate(flops=int(N * mm1), transcendentals=0,
                              bytes_accessed=int(bytes_x + bytes_y1
                                                 + 9 * Cout * Cin * bpe))
        y1, stats = pl.pallas_call(
            functools.partial(_conv1_kernel, wp=wp, pad_l=pad_l),
            grid=(N,),
            in_specs=[
                pl.BlockSpec((None, Cin, HWp), lambda n: (n, 0, 0)),
                pl.BlockSpec((9, Cout, Cin), lambda n: (0, 0, 0)),
                pl.BlockSpec((Cout, 1), lambda n: (0, 0)),
                pl.BlockSpec((1, HWp), lambda n: (0, 0)),
            ],
            out_specs=[
                pl.BlockSpec((None, Cout, HWp), lambda n: (n, 0, 0)),
                pl.BlockSpec((None, Cout, 2), lambda n: (n, 0, 0)),
            ],
            out_shape=(jax.ShapeDtypeStruct((N, Cout, HWp), MXU_DTYPE),
                       jax.ShapeDtypeStruct((N, Cout, 2), jnp.float32)),
            scratch_shapes=[pltpu.VMEM((Cin, P2), MXU_DTYPE)],
            compiler_params=cpar, cost_estimate=ce1,
        )(x_flat, w1m, b1.reshape(Cout, 1).astype(jnp.float32), mask)

        # BatchNorm batch statistics (training mode, biased variance).
        cnt = float(N * H * W)
        mean = (jnp.sum(stats[:, :, 0], axis=0) / cnt).reshape(Cout, 1)
        var = (jnp.sum(stats[:, :, 1], axis=0) / cnt).reshape(Cout, 1) - mean * mean
        bn_scale = bn_g.reshape(Cout, 1) * lax.rsqrt(var + EPS)
        bn_shift = bn_b.reshape(Cout, 1) - mean * bn_scale
        p2 = jnp.concatenate([bn_scale, bn_shift, b2.reshape(Cout, 1),
                              gn_g.reshape(Cout, 1), gn_b.reshape(Cout, 1)],
                             axis=1).astype(jnp.float32)       # (Cout, 5)

        ce2 = pl.CostEstimate(flops=int(N * mm2), transcendentals=int(N * Cout),
                              bytes_accessed=int(bytes_y1 + bytes_out
                                                 + 9 * Cout * Cout * bpe))
        out_flat = pl.pallas_call(
            functools.partial(_stage2_kernel, wp=wp, pad_l=pad_l),
            grid=(N,),
            in_specs=[
                pl.BlockSpec((None, Cout, HWp), lambda n: (n, 0, 0)),
                pl.BlockSpec((Cout, 5), lambda n: (0, 0)),
                pl.BlockSpec((Cout, 9 * Cout), lambda n: (0, 0)),
                pl.BlockSpec((Cout, Cout), lambda n: (0, 0)),
                pl.BlockSpec((1, HWp), lambda n: (0, 0)),
            ],
            out_specs=pl.BlockSpec((None, Cout, HWp), lambda n: (n, 0, 0)),
            out_shape=jax.ShapeDtypeStruct((N, Cout, HWp), jnp.float32),
            scratch_shapes=[pltpu.VMEM((Cout, P2), MXU_DTYPE),
                            pltpu.VMEM((9 * Cout, HWp), MXU_DTYPE)],
            compiler_params=cpar, cost_estimate=ce2,
        )(y1, p2, w2m, gmat, mask)

    # Drop tail padding and the two junk columns per row; layout is NCHW.
    return out_flat[:, :, :HWr].reshape(N, Cout, H, wp)[:, :, :, :W]


# --------------------------------------------------------------------------
# pure-JAX f32 reference (PyTorch DoubleConv semantics, train-mode BN)
# --------------------------------------------------------------------------
def _ref_forward(x, params):
    w1, b1, bn_g, bn_b, w2, b2, gn_g, gn_b = params
    dn = ("NCHW", "OIHW", "NCHW")
    y = lax.conv_general_dilated(x.astype(jnp.float32), w1, (1, 1), "SAME",
                                 dimension_numbers=dn,
                                 precision=lax.Precision.HIGHEST)
    y = y + b1.reshape(1, -1, 1, 1)
    mean = jnp.mean(y, axis=(0, 2, 3), keepdims=True)
    var = jnp.mean((y - mean) ** 2, axis=(0, 2, 3), keepdims=True)
    y = (y - mean) * lax.rsqrt(var + EPS) * bn_g.reshape(1, -1, 1, 1) \
        + bn_b.reshape(1, -1, 1, 1)
    y = jnp.maximum(y, 0.0)
    y = lax.conv_general_dilated(y, w2, (1, 1), "SAME", dimension_numbers=dn,
                                 precision=lax.Precision.HIGHEST)
    y = y + b2.reshape(1, -1, 1, 1)
    N, C, H, W = y.shape
    t = y.reshape(N, GROUPS, C // GROUPS, H, W)
    m = jnp.mean(t, axis=(2, 3, 4), keepdims=True)
    v = jnp.mean((t - m) ** 2, axis=(2, 3, 4), keepdims=True)
    t = (t - m) * lax.rsqrt(v + EPS)
    y = t.reshape(N, C, H, W) * gn_g.reshape(1, -1, 1, 1) \
        + gn_b.reshape(1, -1, 1, 1)
    return jnp.maximum(y, 0.0)


if __name__ == "__main__":
    N, Cin, H, W = 2, 4, 16, 16
    Cout = 32  # must be divisible by 16 for GroupNorm(16, out_channels)

    key = jax.random.PRNGKey(0)
    ks = jax.random.split(key, 9)
    x = jax.random.normal(ks[0], (N, Cin, H, W), jnp.float32)
    w1 = 0.2 * jax.random.normal(ks[1], (Cout, Cin, 3, 3), jnp.float32)   # OIHW
    b1 = 0.1 * jax.random.normal(ks[2], (Cout,), jnp.float32)
    bn_g = 1.0 + 0.1 * jax.random.normal(ks[3], (Cout,), jnp.float32)
    bn_b = 0.1 * jax.random.normal(ks[4], (Cout,), jnp.float32)
    w2 = 0.1 * jax.random.normal(ks[5], (Cout, Cout, 3, 3), jnp.float32)  # OIHW
    b2 = 0.1 * jax.random.normal(ks[6], (Cout,), jnp.float32)
    gn_g = 1.0 + 0.1 * jax.random.normal(ks[7], (Cout,), jnp.float32)
    gn_b = 0.1 * jax.random.normal(ks[8], (Cout,), jnp.float32)
    params = (w1, b1, bn_g, bn_b, w2, b2, gn_g, gn_b)

    fwd = jax.jit(double_conv_forward, static_argnames=("force_two_call",))
    ref = jax.block_until_ready(_ref_forward(x, params))

    # Fused single-kernel path (default at this size).
    out_fused = jax.block_until_ready(fwd(x, params))
    assert out_fused.shape == (N, Cout, H, W), out_fused.shape
    err_f = float(jnp.max(jnp.abs(out_fused - ref)))
    # bf16 MXU operands (f32 accumulation) => ~1e-2-scale worst-case absolute
    # error after two convs + normalizations vs. the exact-f32 reference.
    assert jnp.allclose(out_fused, ref, atol=3e-2, rtol=3e-2), err_f

    # Two-call fallback path (what larger problems would take).
    out_split = jax.block_until_ready(fwd(x, params, force_two_call=True))
    assert out_split.shape == (N, Cout, H, W), out_split.shape
    err_s = float(jnp.max(jnp.abs(out_split - ref)))
    assert jnp.allclose(out_split, ref, atol=3e-2, rtol=3e-2), err_s

    print("KERNEL_OK")
</pallas_src>

<mosaic_0001>
module attributes {stable_mosaic.version = 11 : i64} {
  func.func @_fused_kernel(%arg0: i32, %arg1: i32, %arg2: memref<1x4x384xbf16, #tpu.memory_space<vmem>>, %arg3: memref<9x32x4xbf16, #tpu.memory_space<vmem>>, %arg4: memref<32x288xbf16, #tpu.memory_space<vmem>>, %arg5: memref<32x6xf32, #tpu.memory_space<vmem>>, %arg6: memref<32x32xf32, #tpu.memory_space<vmem>>, %arg7: memref<1x384xf32, #tpu.memory_space<vmem>>, %arg8: memref<1x32x384xf32, #tpu.memory_space<vmem>>, %arg9: memref<2x32x384xbf16, #tpu.memory_space<vmem>>, %arg10: memref<32x1xf32, #tpu.memory_space<vmem>>, %arg11: memref<32x1xf32, #tpu.memory_space<vmem>>, %arg12: memref<4x531xbf16, #tpu.memory_space<vmem>>, %arg13: memref<32x531xbf16, #tpu.memory_space<vmem>>, %arg14: memref<288x384xbf16, #tpu.memory_space<vmem>>) attributes {dimension_semantics = [#tpu.dimension_semantics<arbitrary>, #tpu.dimension_semantics<arbitrary>], iteration_bounds = array<i64: 2, 2>, scalar_prefetch = 0 : i64, scratch_operands = 6 : i64, tpu.core_type = #tpu.core_type<tc>, window_params = [{transform_indices = @transform_0, window_bounds = array<i64: 1, 4, 384>}, {pipeline_mode = #tpu.pipeline_mode<synchronous>, transform_indices = @transform_1, window_bounds = array<i64: 9, 32, 4>}, {pipeline_mode = #tpu.pipeline_mode<synchronous>, transform_indices = @transform_2, window_bounds = array<i64: 32, 288>}, {pipeline_mode = #tpu.pipeline_mode<synchronous>, transform_indices = @transform_3, window_bounds = array<i64: 32, 6>}, {pipeline_mode = #tpu.pipeline_mode<synchronous>, transform_indices = @transform_4, window_bounds = array<i64: 32, 32>}, {pipeline_mode = #tpu.pipeline_mode<synchronous>, transform_indices = @transform_5, window_bounds = array<i64: 1, 384>}, {transform_indices = @transform_6, window_bounds = array<i64: 1, 32, 384>}]} {
    %c0 = arith.constant 0 : index
    %c0_0 = arith.constant 0 : index
    %0 = vector.load %arg7[%c0, %c0_0] : memref<1x384xf32, #tpu.memory_space<vmem>>, vector<1x384xf32>
    %c0_i32 = arith.constant 0 : i32
    %1 = arith.cmpi eq, %arg0, %c0_i32 : i32
    %2 = arith.extui %1 : i1 to i32
    %c0_i32_1 = arith.constant 0 : i32
    %3 = arith.cmpi ne, %2, %c0_i32_1 : i32
    scf.if %3 {
      %c0_i32_3 = arith.constant 0 : i32
      %7 = arith.cmpi eq, %arg1, %c0_i32_3 : i32
      %8 = arith.extui %7 : i1 to i32
      %c0_i32_4 = arith.constant 0 : i32
      %9 = arith.cmpi ne, %8, %c0_i32_4 : i32
      scf.if %9 {
        %cst_64 = arith.constant 0.000000e+00 : f32
        %81 = vector.broadcast %cst_64 : f32 to vector<32x1xf32>
        %c0_65 = arith.constant 0 : index
        %c0_66 = arith.constant 0 : index
        %82 = vector.load %arg10[%c0_65, %c0_66] : memref<32x1xf32, #tpu.memory_space<vmem>>, vector<32x1xf32>
        tpu.vector_store %arg10[%c0_65, %c0_66], %81 {strides = array<i32>} : memref<32x1xf32, #tpu.memory_space<vmem>>, vector<32x1xf32>,
        %cst_67 = arith.constant 0.000000e+00 : f32
        %83 = vector.broadcast %cst_67 : f32 to vector<32x1xf32>
        %c0_68 = arith.constant 0 : index
        %c0_69 = arith.constant 0 : index
        %84 = vector.load %arg11[%c0_68, %c0_69] : memref<32x1xf32, #tpu.memory_space<vmem>>, vector<32x1xf32>
        tpu.vector_store %arg11[%c0_68, %c0_69], %83 {strides = array<i32>} : memref<32x1xf32, #tpu.memory_space<vmem>>, vector<32x1xf32>,
      } else {
      }
      %c0_5 = arith.constant 0 : index
      %c0_6 = arith.constant 0 : index
      %c0_7 = arith.constant 0 : index
      %10 = vector.load %arg2[%c0_5, %c0_6, %c0_7] : memref<1x4x384xbf16, #tpu.memory_space<vmem>>, vector<1x4x384xbf16>
      %11 = vector.shape_cast %10 : vector<1x4x384xbf16> to vector<4x384xbf16>
      %c0_8 = arith.constant 0 : index
      %c0_9 = arith.constant 0 : index
      %12 = vector.load %arg5[%c0_8, %c0_9] : memref<32x6xf32, #tpu.memory_space<vmem>>, vector<32x1xf32>
      %c0_10 = arith.constant 0 : index
      %c128 = arith.constant 128 : index
      %13 = vector.load %arg12[%c0_10, %c128] : memref<4x531xbf16, #tpu.memory_space<vmem>>, vector<4x384xbf16>
      tpu.vector_store %arg12[%c0_10, %c128], %11 {strides = array<i32>} : memref<4x531xbf16, #tpu.memory_space<vmem>>, vector<4x384xbf16>,
      %cst = arith.constant 0.000000e+00 : bf16
      %14 = vector.broadcast %cst : bf16 to vector<4x19xbf16>
      %c0_11 = arith.constant 0 : index
      %c109 = arith.constant 109 : index
      %15 = vector.load %arg12[%c0_11, %c109] : memref<4x531xbf16, #tpu.memory_space<vmem>>, vector<4x19xbf16>
      tpu.vector_store %arg12[%c0_11, %c109], %14 {strides = array<i32>} : memref<4x531xbf16, #tpu.memory_space<vmem>>, vector<4x19xbf16>,
      %c0_12 = arith.constant 0 : index
      %c512 = arith.constant 512 : index
      %16 = vector.load %arg12[%c0_12, %c512] : memref<4x531xbf16, #tpu.memory_space<vmem>>, vector<4x19xbf16>
      tpu.vector_store %arg12[%c0_12, %c512], %14 {strides = array<i32>} : memref<4x531xbf16, #tpu.memory_space<vmem>>, vector<4x19xbf16>,
      %c0_13 = arith.constant 0 : index
      %c0_14 = arith.constant 0 : index
      %c0_15 = arith.constant 0 : index
      %17 = vector.load %arg3[%c0_13, %c0_14, %c0_15] : memref<9x32x4xbf16, #tpu.memory_space<vmem>>, vector<1x32x4xbf16>
      %18 = vector.shape_cast %17 : vector<1x32x4xbf16> to vector<32x4xbf16>
      %c0_16 = arith.constant 0 : index
      %c109_17 = arith.constant 109 : index
      %19 = vector.load %arg12[%c0_16, %c109_17] : memref<4x531xbf16, #tpu.memory_space<vmem>>, vector<4x384xbf16>
      %cst_18 = arith.constant dense<0.000000e+00> : vector<32x384xf32>
      %20 = tpu.matmul %18, %19, %cst_18 {dimension_numbers = #tpu.dot_dimension_numbers<[1], [0], [0], [1], [0, 0, 1, 1], [], []>} : vector<32x4xbf16>, vector<4x384xbf16>, vector<32x384xf32> -> vector<32x384xf32>
      %c1 = arith.constant 1 : index
      %c0_19 = arith.constant 0 : index
      %c0_20 = arith.constant 0 : index
      %21 = vector.load %arg3[%c1, %c0_19, %c0_20] : memref<9x32x4xbf16, #tpu.memory_space<vmem>>, vector<1x32x4xbf16>
      %22 = vector.shape_cast %21 : vector<1x32x4xbf16> to vector<32x4xbf16>
      %c0_21 = arith.constant 0 : index
      %c110 = arith.constant 110 : index
      %23 = vector.load %arg12[%c0_21, %c110] : memref<4x531xbf16, #tpu.memory_space<vmem>>, vector<4x384xbf16>
      %cst_22 = arith.constant dense<0.000000e+00> : vector<32x384xf32>
      %24 = tpu.matmul %22, %23, %cst_22 {dimension_numbers = #tpu.dot_dimension_numbers<[1], [0], [0], [1], [0, 0, 1, 1], [], []>} : vector<32x4xbf16>, vector<4x384xbf16>, vector<32x384xf32> -> vector<32x384xf32>
      %25 = arith.addf %20, %24 : vector<32x384xf32>
      %c2 = arith.constant 2 : index
      %c0_23 = arith.constant 0 : index
      %c0_24 = arith.constant 0 : index
      %26 = vector.load %arg3[%c2, %c0_23, %c0_24] : memref<9x32x4xbf16, #tpu.memory_space<vmem>>, vector<1x32x4xbf16>
      %27 = vector.shape_cast %26 : vector<1x32x4xbf16> to vector<32x4xbf16>
      %c0_25 = arith.constant 0 : index
      %c111 = arith.constant 111 : index
      %28 = vector.load %arg12[%c0_25, %c111] : memref<4x531xbf16, #tpu.memory_space<vmem>>, vector<4x384xbf16>
      %cst_26 = arith.constant dense<0.000000e+00> : vector<32x384xf32>
      %29 = tpu.matmul %27, %28, %cst_26 {dimension_numbers = #tpu.dot_dimension_numbers<[1], [0], [0], [1], [0, 0, 1, 1], [], []>} : vector<32x4xbf16>, vector<4x384xbf16>, vector<32x384xf32> -> vector<32x384xf32>
      %30 = arith.addf %25, %29 : vector<32x384xf32>
      %c3 = arith.constant 3 : index
      %c0_27 = arith.constant 0 : index
      %c0_28 = arith.constant 0 : index
      %31 = vector.load %arg3[%c3, %c0_27, %c0_28] : memref<9x32x4xbf16, #tpu.memory_space<vmem>>, vector<1x32x4xbf16>
      %32 = vector.shape_cast %31 : vector<1x32x4xbf16> to vector<32x4xbf16>
      %c0_29 = arith.constant 0 : index
      %c127 = arith.constant 127 : index
      %33 = vector.load %arg12[%c0_29, %c127] : memref<4x531xbf16, #tpu.memory_space<vmem>>, vector<4x384xbf16>
      %cst_30 = arith.constant dense<0.000000e+00> : vector<32x384xf32>
      %34 = tpu.matmul %32, %33, %cst_30 {dimension_numbers = #tpu.dot_dimension_numbers<[1], [0], [0], [1], [0, 0, 1, 1], [], []>} : vector<32x4xbf16>, vector<4x384xbf16>, vector<32x384xf32> -> vector<32x384xf32>
      %35 = arith.addf %30, %34 : vector<32x384xf32>
      %c4 = arith.constant 4 : index
      %c0_31 = arith.constant 0 : index
      %c0_32 = arith.constant 0 : index
      %36 = vector.load %arg3[%c4, %c0_31, %c0_32] : memref<9x32x4xbf16, #tpu.memory_space<vmem>>, vector<1x32x4xbf16>
      %37 = vector.shape_cast %36 : vector<1x32x4xbf16> to vector<32x4xbf16>
      %c0_33 = arith.constant 0 : index
      %c128_34 = arith.constant 128 : index
      %38 = vector.load %arg12[%c0_33, %c128_34] : memref<4x531xbf16, #tpu.memory_space<vmem>>, vector<4x384xbf16>
      %cst_35 = arith.constant dense<0.000000e+00> : vector<32x384xf32>
      %39 = tpu.matmul %37, %38, %cst_35 {dimension_numbers = #tpu.dot_dimension_numbers<[1], [0], [0], [1], [0, 0, 1, 1], [], []>} : vector<32x4xbf16>, vector<4x384xbf16>, vector<32x384xf32> -> vector<32x384xf32>
      %40 = arith.addf %35, %39 : vector<32x384xf32>
      %c5 = arith.constant 5 : index
      %c0_36 = arith.constant 0 : index
      %c0_37 = arith.constant 0 : index
      %41 = vector.load %arg3[%c5, %c0_36, %c0_37] : memref<9x32x4xbf16, #tpu.memory_space<vmem>>, vector<1x32x4xbf16>
      %42 = vector.shape_cast %41 : vector<1x32x4xbf16> to vector<32x4xbf16>
      %c0_38 = arith.constant 0 : index
      %c129 = arith.constant 129 : index
      %43 = vector.load %arg12[%c0_38, %c129] : memref<4x531xbf16, #tpu.memory_space<vmem>>, vector<4x384xbf16>
      %cst_39 = arith.constant dense<0.000000e+00> : vector<32x384xf32>
      %44 = tpu.matmul %42, %43, %cst_39 {dimension_numbers = #tpu.dot_dimension_numbers<[1], [0], [0], [1], [0, 0, 1, 1], [], []>} : vector<32x4xbf16>, vector<4x384xbf16>, vector<32x384xf32> -> vector<32x384xf32>
      %45 = arith.addf %40, %44 : vector<32x384xf32>
      %c6 = arith.constant 6 : index
      %c0_40 = arith.constant 0 : index
      %c0_41 = arith.constant 0 : index
      %46 = vector.load %arg3[%c6, %c0_40, %c0_41] : memref<9x32x4xbf16, #tpu.memory_space<vmem>>, vector<1x32x4xbf16>
      %47 = vector.shape_cast %46 : vector<1x32x4xbf16> to vector<32x4xbf16>
      %c0_42 = arith.constant 0 : index
      %c145 = arith.constant 145 : index
      %48 = vector.load %arg12[%c0_42, %c145] : memref<4x531xbf16, #tpu.memory_space<vmem>>, vector<4x384xbf16>
      %cst_43 = arith.constant dense<0.000000e+00> : vector<32x384xf32>
      %49 = tpu.matmul %47, %48, %cst_43 {dimension_numbers = #tpu.dot_dimension_numbers<[1], [0], [0], [1], [0, 0, 1, 1], [], []>} : vector<32x4xbf16>, vector<4x384xbf16>, vector<32x384xf32> -> vector<32x384xf32>
      %50 = arith.addf %45, %49 : vector<32x384xf32>
      %c7 = arith.constant 7 : index
      %c0_44 = arith.constant 0 : index
      %c0_45 = arith.constant 0 : index
      %51 = vector.load %arg3[%c7, %c0_44, %c0_45] : memref<9x32x4xbf16, #tpu.memory_space<vmem>>, vector<1x32x4xbf16>
      %52 = vector.shape_cast %51 : vector<1x32x4xbf16> to vector<32x4xbf16>
      %c0_46 = arith.constant 0 : index
      %c146 = arith.constant 146 : index
      %53 = vector.load %arg12[%c0_46, %c146] : memref<4x531xbf16, #tpu.memory_space<vmem>>, vector<4x384xbf16>
      %cst_47 = arith.constant dense<0.000000e+00> : vector<32x384xf32>
      %54 = tpu.matmul %52, %53, %cst_47 {dimension_numbers = #tpu.dot_dimension_numbers<[1], [0], [0], [1], [0, 0, 1, 1], [], []>} : vector<32x4xbf16>, vector<4x384xbf16>, vector<32x384xf32> -> vector<32x384xf32>
      %55 = arith.addf %50, %54 : vector<32x384xf32>
      %c8 = arith.constant 8 : index
      %c0_48 = arith.constant 0 : index
      %c0_49 = arith.constant 0 : index
      %56 = vector.load %arg3[%c8, %c0_48, %c0_49] : memref<9x32x4xbf16, #tpu.memory_space<vmem>>, vector<1x32x4xbf16>
      %57 = vector.shape_cast %56 : vector<1x32x4xbf16> to vector<32x4xbf16>
      %c0_50 = arith.constant 0 : index
      %c147 = arith.constant 147 : index
      %58 = vector.load %arg12[%c0_50, %c147] : memref<4x531xbf16, #tpu.memory_space<vmem>>, vector<4x384xbf16>
      %cst_51 = arith.constant dense<0.000000e+00> : vector<32x384xf32>
      %59 = tpu.matmul %57, %58, %cst_51 {dimension_numbers = #tpu.dot_dimension_numbers<[1], [0], [0], [1], [0, 0, 1, 1], [], []>} : vector<32x4xbf16>, vector<4x384xbf16>, vector<32x384xf32> -> vector<32x384xf32>
      %60 = arith.addf %55, %59 : vector<32x384xf32>
      %61 = vector.broadcast %12 : vector<32x1xf32> to vector<32x384xf32>
      %62 = arith.addf %60, %61 : vector<32x384xf32>
      %63 = vector.broadcast %0 : vector<1x384xf32> to vector<32x384xf32>
      %64 = arith.mulf %62, %63 : vector<32x384xf32>
      %cst_52 = arith.constant dense<0.000000e+00> : vector<32xf32>
      %65 = vector.multi_reduction <add>, %64, %cst_52 [1] : vector<32x384xf32> to vector<32xf32>
      %66 = vector.shape_cast %65 : vector<32xf32> to vector<32x1xf32>
      %67 = arith.mulf %62, %64 : vector<32x384xf32>
      %cst_53 = arith.constant dense<0.000000e+00> : vector<32xf32>
      %68 = vector.multi_reduction <add>, %67, %cst_53 [1] : vector<32x384xf32> to vector<32xf32>
      %69 = vector.shape_cast %68 : vector<32xf32> to vector<32x1xf32>
      %70 = arith.truncf %62 : vector<32x384xf32> to vector<32x384xbf16>
      %71 = arith.index_cast %arg1 : i32 to index
      %c0_54 = arith.constant 0 : index
      %c0_55 = arith.constant 0 : index
      %72 = vector.load %arg9[%71, %c0_54, %c0_55] : memref<2x32x384xbf16, #tpu.memory_space<vmem>>, vector<1x32x384xbf16>
      %73 = vector.shape_cast %72 : vector<1x32x384xbf16> to vector<32x384xbf16>
      %74 = vector.shape_cast %70 : vector<32x384xbf16> to vector<1x32x384xbf16>
      tpu.vector_store %arg9[%71, %c0_54, %c0_55], %74 {strides = array<i32>} : memref<2x32x384xbf16, #tpu.memory_space<vmem>>, vector<1x32x384xbf16>,
      %c0_56 = arith.constant 0 : index
      %c0_57 = arith.constant 0 : index
      %75 = vector.load %arg10[%c0_56, %c0_57] : memref<32x1xf32, #tpu.memory_space<vmem>>, vector<32x1xf32>
      %76 = arith.addf %75, %66 : vector<32x1xf32>
      %c0_58 = arith.constant 0 : index
      %c0_59 = arith.constant 0 : index
      %77 = vector.load %arg10[%c0_58, %c0_59] : memref<32x1xf32, #tpu.memory_space<vmem>>, vector<32x1xf32>
      tpu.vector_store %arg10[%c0_58, %c0_59], %76 {strides = array<i32>} : memref<32x1xf32, #tpu.memory_space<vmem>>, vector<32x1xf32>,
      %c0_60 = arith.constant 0 : index
      %c0_61 = arith.constant 0 : index
      %78 = vector.load %arg11[%c0_60, %c0_61] : memref<32x1xf32, #tpu.memory_space<vmem>>, vector<32x1xf32>
      %79 = arith.addf %78, %69 : vector<32x1xf32>
      %c0_62 = arith.constant 0 : index
      %c0_63 = arith.constant 0 : index
      %80 = vector.load %arg11[%c0_62, %c0_63] : memref<32x1xf32, #tpu.memory_space<vmem>>, vector<32x1xf32>
      tpu.vector_store %arg11[%c0_62, %c0_63], %79 {strides = array<i32>} : memref<32x1xf32, #tpu.memory_space<vmem>>, vector<32x1xf32>,
    } else {
    }
    %c1_i32 = arith.constant 1 : i32
    %4 = arith.cmpi eq, %arg0, %c1_i32 : i32
    %5 = arith.extui %4 : i1 to i32
    %c0_i32_2 = arith.constant 0 : i32
    %6 = arith.cmpi ne, %5, %c0_i32_2 : i32
    scf.if %6 {
      %c0_3 = arith.constant 0 : index
      %c0_4 = arith.constant 0 : index
      %7 = vector.load %arg10[%c0_3, %c0_4] : memref<32x1xf32, #tpu.memory_space<vmem>>, vector<32x1xf32>
      %cst = arith.constant 0.001953125 : f32
      %8 = vector.broadcast %cst : f32 to vector<32x1xf32>
      %9 = arith.mulf %7, %8 : vector<32x1xf32>
      %c0_5 = arith.constant 0 : index
      %c0_6 = arith.constant 0 : index
      %10 = vector.load %arg11[%c0_5, %c0_6] : memref<32x1xf32, #tpu.memory_space<vmem>>, vector<32x1xf32>
      %cst_7 = arith.constant 0.001953125 : f32
      %11 = vector.broadcast %cst_7 : f32 to vector<32x1xf32>
      %12 = arith.mulf %10, %11 : vector<32x1xf32>
      %13 = arith.mulf %9, %9 : vector<32x1xf32>
      %14 = arith.subf %12, %13 : vector<32x1xf32>
      %c0_8 = arith.constant 0 : index
      %c1 = arith.constant 1 : index
      %15 = vector.load %arg5[%c0_8, %c1] : memref<32x6xf32, #tpu.memory_space<vmem>>, vector<32x1xf32>
      %cst_9 = arith.constant 9.99999974E-6 : f32
      %16 = vector.broadcast %cst_9 : f32 to vector<32x1xf32>
      %17 = arith.addf %14, %16 : vector<32x1xf32>
      %18 = math.rsqrt %17 : vector<32x1xf32>
      %19 = arith.mulf %15, %18 : vector<32x1xf32>
      %c0_10 = arith.constant 0 : index
      %c2 = arith.constant 2 : index
      %20 = vector.load %arg5[%c0_10, %c2] : memref<32x6xf32, #tpu.memory_space<vmem>>, vector<32x1xf32>
      %21 = arith.mulf %9, %19 : vector<32x1xf32>
      %22 = arith.subf %20, %21 : vector<32x1xf32>
      %23 = arith.index_cast %arg1 : i32 to index
      %c0_11 = arith.constant 0 : index
      %c0_12 = arith.constant 0 : index
      %24 = vector.load %arg9[%23, %c0_11, %c0_12] : memref<2x32x384xbf16, #tpu.memory_space<vmem>>, vector<1x32x384xbf16>
      %25 = vector.shape_cast %24 : vector<1x32x384xbf16> to vector<32x384xbf16>
      %26 = arith.extf %25 : vector<32x384xbf16> to vector<32x384xf32>
      %c0_13 = arith.constant 0 : index
      %c3 = arith.constant 3 : index
      %27 = vector.load %arg5[%c0_13, %c3] : memref<32x6xf32, #tpu.memory_space<vmem>>, vector<32x1xf32>
      %c0_14 = arith.constant 0 : index
      %c4 = arith.constant 4 : index
      %28 = vector.load %arg5[%c0_14, %c4] : memref<32x6xf32, #tpu.memory_space<vmem>>, vector<32x1xf32>
      %c0_15 = arith.constant 0 : index
      %c5 = arith.constant 5 : index
      %29 = vector.load %arg5[%c0_15, %c5] : memref<32x6xf32, #tpu.memory_space<vmem>>, vector<32x1xf32>
      %30 = vector.broadcast %19 : vector<32x1xf32> to vector<32x384xf32>
      %31 = arith.mulf %26, %30 : vector<32x384xf32>
      %32 = vector.broadcast %22 : vector<32x1xf32> to vector<32x384xf32>
      %33 = arith.addf %31, %32 : vector<32x384xf32>
      %cst_16 = arith.constant 0.000000e+00 : f32
      %34 = vector.broadcast %cst_16 : f32 to vector<32x384xf32>
      %35 = arith.maximumf %33, %34 : vector<32x384xf32>
      %36 = vector.broadcast %0 : vector<1x384xf32> to vector<32x384xf32>
      %37 = arith.mulf %35, %36 : vector<32x384xf32>
      %38 = arith.truncf %37 : vector<32x384xf32> to vector<32x384xbf16>
      %c0_17 = arith.constant 0 : index
      %c128 = arith.constant 128 : index
      %39 = vector.load %arg13[%c0_17, %c128] : memref<32x531xbf16, #tpu.memory_space<vmem>>, vector<32x384xbf16>
      tpu.vector_store %arg13[%c0_17, %c128], %38 {strides = array<i32>} : memref<32x531xbf16, #tpu.memory_space<vmem>>, vector<32x384xbf16>,
      %cst_18 = arith.constant 0.000000e+00 : bf16
      %40 = vector.broadcast %cst_18 : bf16 to vector<32x19xbf16>
      %c0_19 = arith.constant 0 : index
      %c109 = arith.constant 109 : index
      %41 = vector.load %arg13[%c0_19, %c109] : memref<32x531xbf16, #tpu.memory_space<vmem>>, vector<32x19xbf16>
      tpu.vector_store %arg13[%c0_19, %c109], %40 {strides = array<i32>} : memref<32x531xbf16, #tpu.memory_space<vmem>>, vector<32x19xbf16>,
      %c0_20 = arith.constant 0 : index
      %c512 = arith.constant 512 : index
      %42 = vector.load %arg13[%c0_20, %c512] : memref<32x531xbf16, #tpu.memory_space<vmem>>, vector<32x19xbf16>
      tpu.vector_store %arg13[%c0_20, %c512], %40 {strides = array<i32>} : memref<32x531xbf16, #tpu.memory_space<vmem>>, vector<32x19xbf16>,
      %c0_21 = arith.constant 0 : index
      %c109_22 = arith.constant 109 : index
      %43 = vector.load %arg13[%c0_21, %c109_22] : memref<32x531xbf16, #tpu.memory_space<vmem>>, vector<32x384xbf16>
      %c0_23 = arith.constant 0 : index
      %c0_24 = arith.constant 0 : index
      %44 = vector.load %arg14[%c0_23, %c0_24] : memref<288x384xbf16, #tpu.memory_space<vmem>>, vector<32x384xbf16>
      tpu.vector_store %arg14[%c0_23, %c0_24], %43 {strides = array<i32>} : memref<288x384xbf16, #tpu.memory_space<vmem>>, vector<32x384xbf16>,
      %c0_25 = arith.constant 0 : index
      %c110 = arith.constant 110 : index
      %45 = vector.load %arg13[%c0_25, %c110] : memref<32x531xbf16, #tpu.memory_space<vmem>>, vector<32x384xbf16>
      %c32 = arith.constant 32 : index
      %c0_26 = arith.constant 0 : index
      %46 = vector.load %arg14[%c32, %c0_26] : memref<288x384xbf16, #tpu.memory_space<vmem>>, vector<32x384xbf16>
      tpu.vector_store %arg14[%c32, %c0_26], %45 {strides = array<i32>} : memref<288x384xbf16, #tpu.memory_space<vmem>>, vector<32x384xbf16>,
      %c0_27 = arith.constant 0 : index
      %c111 = arith.constant 111 : index
      %47 = vector.load %arg13[%c0_27, %c111] : memref<32x531xbf16, #tpu.memory_space<vmem>>, vector<32x384xbf16>
      %c64 = arith.constant 64 : index
      %c0_28 = arith.constant 0 : index
      %48 = vector.load %arg14[%c64, %c0_28] : memref<288x384xbf16, #tpu.memory_space<vmem>>, vector<32x384xbf16>
      tpu.vector_store %arg14[%c64, %c0_28], %47 {strides = array<i32>} : memref<288x384xbf16, #tpu.memory_space<vmem>>, vector<32x384xbf16>,
      %c0_29 = arith.constant 0 : index
      %c127 = arith.constant 127 : index
      %49 = vector.load %arg13[%c0_29, %c127] : memref<32x531xbf16, #tpu.memory_space<vmem>>, vector<32x384xbf16>
      %c96 = arith.constant 96 : index
      %c0_30 = arith.constant 0 : index
      %50 = vector.load %arg14[%c96, %c0_30] : memref<288x384xbf16, #tpu.memory_space<vmem>>, vector<32x384xbf16>
      tpu.vector_store %arg14[%c96, %c0_30], %49 {strides = array<i32>} : memref<288x384xbf16, #tpu.memory_space<vmem>>, vector<32x384xbf16>,
      %c0_31 = arith.constant 0 : index
      %c128_32 = arith.constant 128 : index
      %51 = vector.load %arg13[%c0_31, %c128_32] : memref<32x531xbf16, #tpu.memory_space<vmem>>, vector<32x384xbf16>
      %c128_33 = arith.constant 128 : index
      %c0_34 = arith.constant 0 : index
      %52 = vector.load %arg14[%c128_33, %c0_34] : memref<288x384xbf16, #tpu.memory_space<vmem>>, vector<32x384xbf16>
      tpu.vector_store %arg14[%c128_33, %c0_34], %51 {strides = array<i32>} : memref<288x384xbf16, #tpu.memory_space<vmem>>, vector<32x384xbf16>,
      %c0_35 = arith.constant 0 : index
      %c129 = arith.constant 129 : index
      %53 = vector.load %arg13[%c0_35, %c129] : memref<32x531xbf16, #tpu.memory_space<vmem>>, vector<32x384xbf16>
      %c160 = arith.constant 160 : index
      %c0_36 = arith.constant 0 : index
      %54 = vector.load %arg14[%c160, %c0_36] : memref<288x384xbf16, #tpu.memory_space<vmem>>, vector<32x384xbf16>
      tpu.vector_store %arg14[%c160, %c0_36], %53 {strides = array<i32>} : memref<288x384xbf16, #tpu.memory_space<vmem>>, vector<32x384xbf16>,
      %c0_37 = arith.constant 0 : index
      %c145 = arith.constant 145 : index
      %55 = vector.load %arg13[%c0_37, %c145] : memref<32x531xbf16, #tpu.memory_space<vmem>>, vector<32x384xbf16>
      %c192 = arith.constant 192 : index
      %c0_38 = arith.constant 0 : index
      %56 = vector.load %arg14[%c192, %c0_38] : memref<288x384xbf16, #tpu.memory_space<vmem>>, vector<32x384xbf16>
      tpu.vector_store %arg14[%c192, %c0_38], %55 {strides = array<i32>} : memref<288x384xbf16, #tpu.memory_space<vmem>>, vector<32x384xbf16>,
      %c0_39 = arith.constant 0 : index
      %c146 = arith.constant 146 : index
      %57 = vector.load %arg13[%c0_39, %c146] : memref<32x531xbf16, #tpu.memory_space<vmem>>, vector<32x384xbf16>
      %c224 = arith.constant 224 : index
      %c0_40 = arith.constant 0 : index
      %58 = vector.load %arg14[%c224, %c0_40] : memref<288x384xbf16, #tpu.memory_space<vmem>>, vector<32x384xbf16>
      tpu.vector_store %arg14[%c224, %c0_40], %57 {strides = array<i32>} : memref<288x384xbf16, #tpu.memory_space<vmem>>, vector<32x384xbf16>,
      %c0_41 = arith.constant 0 : index
      %c147 = arith.constant 147 : index
      %59 = vector.load %arg13[%c0_41, %c147] : memref<32x531xbf16, #tpu.memory_space<vmem>>, vector<32x384xbf16>
      %c256 = arith.constant 256 : index
      %c0_42 = arith.constant 0 : index
      %60 = vector.load %arg14[%c256, %c0_42] : memref<288x384xbf16, #tpu.memory_space<vmem>>, vector<32x384xbf16>
      tpu.vector_store %arg14[%c256, %c0_42], %59 {strides = array<i32>} : memref<288x384xbf16, #tpu.memory_space<vmem>>, vector<32x384xbf16>,
      %c0_43 = arith.constant 0 : index
      %c0_44 = arith.constant 0 : index
      %61 = vector.load %arg4[%c0_43, %c0_44] : memref<32x288xbf16, #tpu.memory_space<vmem>>, vector<32x288xbf16>
      %c0_45 = arith.constant 0 : index
      %c0_46 = arith.constant 0 : index
      %62 = vector.load %arg14[%c0_45, %c0_46] : memref<288x384xbf16, #tpu.memory_space<vmem>>, vector<288x384xbf16>
      %cst_47 = arith.constant dense<0.000000e+00> : vector<32x384xf32>
      %63 = tpu.matmul %61, %62, %cst_47 {dimension_numbers = #tpu.dot_dimension_numbers<[1], [0], [0], [1], [0, 0, 1, 1], [], []>} : vector<32x288xbf16>, vector<288x384xbf16>, vector<32x384xf32> -> vector<32x384xf32>
      %64 = vector.broadcast %27 : vector<32x1xf32> to vector<32x384xf32>
      %65 = arith.addf %63, %64 : vector<32x384xf32>
      %66 = vector.broadcast %0 : vector<1x384xf32> to vector<32x384xf32>
      %67 = arith.mulf %65, %66 : vector<32x384xf32>
      %cst_48 = arith.constant dense<0.000000e+00> : vector<32xf32>
      %68 = vector.multi_reduction <add>, %67, %cst_48 [1] : vector<32x384xf32> to vector<32xf32>
      %69 = vector.shape_cast %68 : vector<32xf32> to vector<32x1xf32>
      %70 = arith.mulf %65, %67 : vector<32x384xf32>
      %cst_49 = arith.constant dense<0.000000e+00> : vector<32xf32>
      %71 = vector.multi_reduction <add>, %70, %cst_49 [1] : vector<32x384xf32> to vector<32xf32>
      %72 = vector.shape_cast %71 : vector<32xf32> to vector<32x1xf32>
      %c0_50 = arith.constant 0 : index
      %c0_51 = arith.constant 0 : index
      %73 = vector.load %arg6[%c0_50, %c0_51] : memref<32x32xf32, #tpu.memory_space<vmem>>, vector<32x32xf32>
      %cst_52 = arith.constant dense<0.000000e+00> : vector<32x1xf32>
      %74 = tpu.matmul %73, %69, %cst_52 {dimension_numbers = #tpu.dot_dimension_numbers<[1], [0], [0], [1], [0, 0, 1, 1], [], []>} : vector<32x32xf32>, vector<32x1xf32>, vector<32x1xf32> -> vector<32x1xf32>
      %c0_53 = arith.constant 0 : index
      %c0_54 = arith.constant 0 : index
      %75 = vector.load %arg6[%c0_53, %c0_54] : memref<32x32xf32, #tpu.memory_space<vmem>>, vector<32x32xf32>
      %cst_55 = arith.constant dense<0.000000e+00> : vector<32x1xf32>
      %76 = tpu.matmul %75, %72, %cst_55 {dimension_numbers = #tpu.dot_dimension_numbers<[1], [0], [0], [1], [0, 0, 1, 1], [], []>} : vector<32x32xf32>, vector<32x1xf32>, vector<32x1xf32> -> vector<32x1xf32>
      %77 = arith.mulf %74, %74 : vector<32x1xf32>
      %78 = arith.subf %76, %77 : vector<32x1xf32>
      %cst_56 = arith.constant 9.99999974E-6 : f32
      %79 = vector.broadcast %cst_56 : f32 to vector<32x1xf32>
      %80 = arith.addf %78, %79 : vector<32x1xf32>
      %81 = math.rsqrt %80 : vector<32x1xf32>
      %82 = vector.broadcast %74 : vector<32x1xf32> to vector<32x384xf32>
      %83 = arith.subf %65, %82 : vector<32x384xf32>
      %84 = arith.mulf %81, %28 : vector<32x1xf32>
      %85 = vector.broadcast %84 : vector<32x1xf32> to vector<32x384xf32>
      %86 = arith.mulf %83, %85 : vector<32x384xf32>
      %87 = vector.broadcast %29 : vector<32x1xf32> to vector<32x384xf32>
      %88 = arith.addf %86, %87 : vector<32x384xf32>
      %cst_57 = arith.constant 0.000000e+00 : f32
      %89 = vector.broadcast %cst_57 : f32 to vector<32x384xf32>
      %90 = arith.maximumf %88, %89 : vector<32x384xf32>
      %c0_58 = arith.constant 0 : index
      %c0_59 = arith.constant 0 : index
      %c0_60 = arith.constant 0 : index
      %91 = vector.load %arg8[%c0_58, %c0_59, %c0_60] : memref<1x32x384xf32, #tpu.memory_space<vmem>>, vector<1x32x384xf32>
      %92 = vector.shape_cast %91 : vector<1x32x384xf32> to vector<32x384xf32>
      %93 = vector.shape_cast %90 : vector<32x384xf32> to vector<1x32x384xf32>
      tpu.vector_store %arg8[%c0_58, %c0_59, %c0_60], %93 {strides = array<i32>} : memref<1x32x384xf32, #tpu.memory_space<vmem>>, vector<1x32x384xf32>,
    } else {
    }
    return
  }
  func.func @transform_0(%arg0: i32, %arg1: i32) -> (i32, i32, i32) {
    %c1_i32 = arith.constant 1 : i32
    %0 = arith.subi %c1_i32, %arg0 : i32
    %1 = arith.muli %arg1, %0 : i32
    %c0_i32 = arith.constant 0 : i32
    %c0_i32_0 = arith.constant 0 : i32
    %c0_i32_1 = arith.constant 0 : i32
    return %1, %c0_i32, %c0_i32_0 : i32, i32, i32
  }
  func.func @transform_1(%arg0: i32, %arg1: i32) -> (i32, i32, i32) {
    %c0_i32 = arith.constant 0 : i32
    %c0_i32_0 = arith.constant 0 : i32
    %c0_i32_1 = arith.constant 0 : i32
    %c0_i32_2 = arith.constant 0 : i32
    return %c0_i32, %c0_i32_0, %c0_i32_1 : i32, i32, i32
  }
  func.func @transform_2(%arg0: i32, %arg1: i32) -> (i32, i32) {
    %c0_i32 = arith.constant 0 : i32
    %c0_i32_0 = arith.constant 0 : i32
    %c0_i32_1 = arith.constant 0 : i32
    return %c0_i32, %c0_i32_0 : i32, i32
  }
  func.func @transform_3(%arg0: i32, %arg1: i32) -> (i32, i32) {
    %c0_i32 = arith.constant 0 : i32
    %c0_i32_0 = arith.constant 0 : i32
    %c0_i32_1 = arith.constant 0 : i32
    return %c0_i32, %c0_i32_0 : i32, i32
  }
  func.func @transform_4(%arg0: i32, %arg1: i32) -> (i32, i32) {
    %c0_i32 = arith.constant 0 : i32
    %c0_i32_0 = arith.constant 0 : i32
    %c0_i32_1 = arith.constant 0 : i32
    return %c0_i32, %c0_i32_0 : i32, i32
  }
  func.func @transform_5(%arg0: i32, %arg1: i32) -> (i32, i32) {
    %c0_i32 = arith.constant 0 : i32
    %c0_i32_0 = arith.constant 0 : i32
    %c0_i32_1 = arith.constant 0 : i32
    return %c0_i32, %c0_i32_0 : i32, i32
  }
  func.func @transform_6(%arg0: i32, %arg1: i32) -> (i32, i32, i32) {
    %0 = arith.muli %arg0, %arg1 : i32
    %c0_i32 = arith.constant 0 : i32
    %c0_i32_0 = arith.constant 0 : i32
    %c0_i32_1 = arith.constant 0 : i32
    return %0, %c0_i32, %c0_i32_0 : i32, i32, i32
  }
}

</mosaic_0001>

<llo_original>
// kernel: double_conv_forward.1
$region0: #{double_conv_forward.1}
  #allocation0 [shape = 'u32[]', space=smem, size = 0x4, offset = 0x4, fixed_abs, tag = 'smem constant byte address 0x4 - core index']
  #allocation1 [shape = 'u32[72,128]{1,0:T(1,128)}', space=vmem, size = 0x9000, scoped, tag = 'internal scratch']
  #allocation2 [shape = 'bf16[2,32,384]{2,1,0:T(8,128)(2,1)}', space=vmem, size = 0xc000, scoped, tag = 'scratch operand']
  #allocation3 [shape = 'f32[32,1]{1,0:T(8,128)}', space=vmem, size = 0x4000, scoped, tag = 'scratch operand']
  #allocation4 [shape = 'f32[32,1]{1,0:T(8,128)}', space=vmem, size = 0x4000, scoped, tag = 'scratch operand']
  #allocation5 [shape = 'bf16[4,531]{1,0:T(4,128)(2,1)}', space=vmem, size = 0x1400, scoped, tag = 'scratch operand']
  #allocation6 [shape = 'bf16[32,531]{1,0:T(8,128)(2,1)}', space=vmem, size = 0xa000, scoped, tag = 'scratch operand']
  #allocation7 [shape = 'bf16[288,384]{1,0:T(8,128)(2,1)}', space=vmem, size = 0x36000, scoped, tag = 'scratch operand']
  %s0 = inlined_call_operand.vmem [shape: bf16[2,4,384], index: 0, kind: input, shape index: {}]
  %s1 = inlined_call_operand.vmem [shape: bf16[9,32,4], index: 1, kind: input, shape index: {}]
  %s2 = inlined_call_operand.vmem [shape: bf16[32,288], index: 2, kind: input, shape index: {}]
  %s3 = inlined_call_operand.vmem [shape: f32[32,6], index: 3, kind: input, shape index: {}]
  %s4 = inlined_call_operand.vmem [shape: f32[32,32], index: 4, kind: input, shape index: {}]
  %s5 = inlined_call_operand.vmem [shape: f32[1,384], index: 5, kind: input, shape index: {}]
  %s6 = inlined_call_operand.vmem [shape: f32[2,32,384], index: 6, kind: output, shape index: {}]
  %s7 = sld [smem:[#allocation0]]
  $region69: #{double_conv_forward.1} parent=0
    _
  %s9 = ssub.s32 1, %s7
  %s10 = scalar_select 0, %s9, %s7
  loop: start=0, step=1, limit=6
  $region2: #{double_conv_forward.1} parent=0 // loop_pre_header
    _
  $region3: #{double_conv_forward.1} parent=0 // loop_header
    %s12 = sphi 0, %s16
    %p13 = scmp.ge.s32.totalorder %s12, 6
    %s19 = sphi 0, %s31
    %s20 = sphi 0, %s27
    %s21 = sphi 0, %s19
    %s22 = sphi 0, %s20
    %s23 = sphi 0, %s21
    %s24 = sphi 0, %s22
    %s38 = sphi 0, %s40
    %s41 = sphi 0, %s38
    %s42 = sphi 0, %s41
    %s58 = sphi 0, %s42
    %s62 = sphi 0, %s62
    %s64 = sphi 0, %s62
    %s65 = sphi 0, %s64
    %s79 = sphi 0, %s65
    %s83 = sphi 0, %s83
    %s85 = sphi 0, %s83
    %s86 = sphi 0, %s85
    %s100 = sphi 0, %s86
    %s104 = sphi 0, %s104
    %s106 = sphi 0, %s104
    %s107 = sphi 0, %s106
    %s121 = sphi 0, %s107
    %s125 = sphi 0, %s125
    %s127 = sphi 0, %s125
    %s128 = sphi 0, %s127
    %s142 = sphi 0, %s128
    %s146 = sphi 0, %s146
    %s148 = sphi 0, %s146
    %s149 = sphi 0, %s148
    %s163 = sphi 0, %s149
    %s171 = sphi 0, %s173
    %s174 = sphi 0, %s171
    %s175 = sphi 0, %s174
    %s191 = sphi 0, %s175
  $region4: #{double_conv_forward.1} parent=0 // loop_header_branch
    %15 = sbr.rel (%p13) target = $region8
  $region5: #{double_conv_forward.1} parent=0 // loop_body
    %s17 = ssub.s32 %s12, 1
    %s18 = ssub.s32 %s12, 2
    %s25 = sadd.s32 1, %s20
    %p26 = scmp.ge.s32.totalorder %s25, 2
    %s27 = scalar_select %p26, 0, %s25
    %s28 = sadd.s32 1, %s19
    %s29 = scalar_select %p26, %s28, %s19
    %p30 = scmp.ge.s32.totalorder %s29, 2
    %s31 = scalar_select %p30, 0, %s29
    %s32 = ssub.s32 1, %s19
    %s33 = smul.u32 %s20, %s32
    %s34 = ssub.s32 1, %s31
    %s35 = smul.u32 %s27, %s34
    %s36 = ssub.s32 %s33, %s35
    %p37 = scmp.eq.s32.totalorder %s36, 0
    %s39 = sadd.s32 %s38, 1
    %s40 = scalar_select %p37, %s38, %s39
    %p43 = pneg %p37
    %p44 = scmp.eq.s32.totalorder %s12, 3
    %p45 = por %p43, %p44
    %p46 = scmp.ne.s32.totalorder %s38, %s41
    %p47 = scmp.eq.s32.totalorder %s12, 0
    %p48 = por %p46, %p47
    %p49 = scmp.ne.s32.totalorder %s38, %s41
    %p50 = scmp.eq.s32.totalorder %s17, 3
    %p51 = por %p49, %p50
    %p52 = scmp.ne.s32.totalorder %s41, %s42
    %p53 = scmp.eq.s32.totalorder %s17, 0
    %p54 = por %p52, %p53
    %p55 = scmp.ne.s32.totalorder %s41, %s42
    %p56 = scmp.eq.s32.totalorder %s18, 3
    %p57 = por %p55, %p56
    %p59 = scmp.ne.s32.totalorder %s42, %s58
    %p60 = scmp.eq.s32.totalorder %s18, 0
    %p61 = por %p59, %p60
    %s63 = sadd.s32 %s62, 1
    %p66 = scmp.eq.s32.totalorder %s12, 3
    %p67 = scmp.ne.s32.totalorder %s62, %s64
    %p68 = scmp.eq.s32.totalorder %s12, 0
    %p69 = por %p67, %p68
    %p70 = scmp.ne.s32.totalorder %s62, %s64
    %p71 = scmp.eq.s32.totalorder %s17, 3
    %p72 = por %p70, %p71
    %p73 = scmp.ne.s32.totalorder %s64, %s65
    %p74 = scmp.eq.s32.totalorder %s17, 0
    %p75 = por %p73, %p74
    %p76 = scmp.ne.s32.totalorder %s64, %s65
    %p77 = scmp.eq.s32.totalorder %s18, 3
    %p78 = por %p76, %p77
    %p80 = scmp.ne.s32.totalorder %s65, %s79
    %p81 = scmp.eq.s32.totalorder %s18, 0
    %p82 = por %p80, %p81
    %s84 = sadd.s32 %s83, 1
    %p87 = scmp.eq.s32.totalorder %s12, 3
    %p88 = scmp.ne.s32.totalorder %s83, %s85
    %p89 = scmp.eq.s32.totalorder %s12, 0
    %p90 = por %p88, %p89
    %p91 = scmp.ne.s32.totalorder %s83, %s85
    %p92 = scmp.eq.s32.totalorder %s17, 3
    %p93 = por %p91, %p92
    %p94 = scmp.ne.s32.totalorder %s85, %s86
    %p95 = scmp.eq.s32.totalorder %s17, 0
    %p96 = por %p94, %p95
    %p97 = scmp.ne.s32.totalorder %s85, %s86
    %p98 = scmp.eq.s32.totalorder %s18, 3
    %p99 = por %p97, %p98
    %p101 = scmp.ne.s32.totalorder %s86, %s100
    %p102 = scmp.eq.s32.totalorder %s18, 0
    %p103 = por %p101, %p102
    %s105 = sadd.s32 %s104, 1
    %p108 = scmp.eq.s32.totalorder %s12, 3
    %p109 = scmp.ne.s32.totalorder %s104, %s106
    %p110 = scmp.eq.s32.totalorder %s12, 0
    %p111 = por %p109, %p110
    %p112 = scmp.ne.s32.totalorder %s104, %s106
    %p113 = scmp.eq.s32.totalorder %s17, 3
    %p114 = por %p112, %p113
    %p115 = scmp.ne.s32.totalorder %s106, %s107
    %p116 = scmp.eq.s32.totalorder %s17, 0
    %p117 = por %p115, %p116
    %p118 = scmp.ne.s32.totalorder %s106, %s107
    %p119 = scmp.eq.s32.totalorder %s18, 3
    %p120 = por %p118, %p119
    %p122 = scmp.ne.s32.totalorder %s107, %s121
    %p123 = scmp.eq.s32.totalorder %s18, 0
    %p124 = por %p122, %p123
    %s126 = sadd.s32 %s125, 1
    %p129 = scmp.eq.s32.totalorder %s12, 3
    %p130 = scmp.ne.s32.totalorder %s125, %s127
    %p131 = scmp.eq.s32.totalorder %s12, 0
    %p132 = por %p130, %p131
    %p133 = scmp.ne.s32.totalorder %s125, %s127
    %p134 = scmp.eq.s32.totalorder %s17, 3
    %p135 = por %p133, %p134
    %p136 = scmp.ne.s32.totalorder %s127, %s128
    %p137 = scmp.eq.s32.totalorder %s17, 0
    %p138 = por %p136, %p137
    %p139 = scmp.ne.s32.totalorder %s127, %s128
    %p140 = scmp.eq.s32.totalorder %s18, 3
    %p141 = por %p139, %p140
    %p143 = scmp.ne.s32.totalorder %s128, %s142
    %p144 = scmp.eq.s32.totalorder %s18, 0
    %p145 = por %p143, %p144
    %s147 = sadd.s32 %s146, 1
    %p150 = scmp.eq.s32.totalorder %s12, 3
    %p151 = scmp.ne.s32.totalorder %s146, %s148
    %p152 = scmp.eq.s32.totalorder %s12, 0
    %p153 = por %p151, %p152
    %p154 = scmp.ne.s32.totalorder %s146, %s148
    %p155 = scmp.eq.s32.totalorder %s17, 3
    %p156 = por %p154, %p155
    %p157 = scmp.ne.s32.totalorder %s148, %s149
    %p158 = scmp.eq.s32.totalorder %s17, 0
    %p159 = por %p157, %p158
    %p160 = scmp.ne.s32.totalorder %s148, %s149
    %p161 = scmp.eq.s32.totalorder %s18, 3
    %p162 = por %p160, %p161
    %p164 = scmp.ne.s32.totalorder %s149, %s163
    %p165 = scmp.eq.s32.totalorder %s18, 0
    %p166 = por %p164, %p165
    %s167 = smul.u32 %s19, %s20
    %s168 = smul.u32 %s31, %s27
    %s169 = ssub.s32 %s167, %s168
    %p170 = scmp.eq.s32.totalorder %s169, 0
    %s172 = sadd.s32 %s171, 1
    %s173 = scalar_select %p170, %s171, %s172
    %p176 = pneg %p170
    %p177 = scmp.eq.s32.totalorder %s12, 3
    %p178 = por %p176, %p177
    %p179 = scmp.ne.s32.totalorder %s171, %s174
    %p180 = scmp.eq.s32.totalorder %s12, 0
    %p181 = por %p179, %p180
    %p182 = scmp.ne.s32.totalorder %s171, %s174
    %p183 = scmp.eq.s32.totalorder %s17, 3
    %p184 = por %p182, %p183
    %p185 = scmp.ne.s32.totalorder %s174, %s175
    %p186 = scmp.eq.s32.totalorder %s17, 0
    %p187 = por %p185, %p186
    %p188 = scmp.ne.s32.totalorder %s174, %s175
    %p189 = scmp.eq.s32.totalorder %s18, 3
    %p190 = por %p188, %p189
    %p192 = scmp.ne.s32.totalorder %s175, %s191
    %p193 = scmp.eq.s32.totalorder %s18, 0
    %p194 = por %p192, %p193
    %p195 = scmp.le.s32.totalorder 1, %s12
    %p196 = scmp.lt.s32.totalorder %s12, 5
    %p197 = pnand %p195, %p196
    %p198 = pneg %p197
    // Predicated region
    $region9: #{double_conv_forward.1} parent=5 // pred_check
      _
    $region10: #{double_conv_forward.1} parent=5 // pred_check_branch
      %200 = sbr.rel (%p197) target = $region12
    $region11: #{double_conv_forward.1} parent=5 // pred_region
      %s201 = ssub.s32 %s12, 1
      // Predicated region
      $region13: #{double_conv_forward.1} parent=11 // pred_check
        %p202 = pneg %p75
      $region14: #{double_conv_forward.1} parent=11 // pred_check_branch
        %204 = sbr.rel (%p202) target = $region16
      $region15: #{double_conv_forward.1} parent=11 // pred_region
        _
      $region16: #{double_conv_forward.1} parent=11 // pred_fallthru
        _
      // Predicated region
      $region17: #{double_conv_forward.1} parent=11 // pred_check
        %p205 = pneg %p96
      $region18: #{double_conv_forward.1} parent=11 // pred_check_branch
        %207 = sbr.rel (%p205) target = $region20
      $region19: #{double_conv_forward.1} parent=11 // pred_region
        _
      $region20: #{double_conv_forward.1} parent=11 // pred_fallthru
        _
      // Predicated region
      $region21: #{double_conv_forward.1} parent=11 // pred_check
        %p208 = pneg %p117
      $region22: #{double_conv_forward.1} parent=11 // pred_check_branch
        %210 = sbr.rel (%p208) target = $region24
      $region23: #{double_conv_forward.1} parent=11 // pred_region
        _
      $region24: #{double_conv_forward.1} parent=11 // pred_fallthru
        _
      // Predicated region
      $region25: #{double_conv_forward.1} parent=11 // pred_check
        %p211 = pneg %p138
      $region26: #{double_conv_forward.1} parent=11 // pred_check_branch
        %213 = sbr.rel (%p211) target = $region28
      $region27: #{double_conv_forward.1} parent=11 // pred_region
        _
      $region28: #{double_conv_forward.1} parent=11 // pred_fallthru
        _
      // Predicated region
      $region29: #{double_conv_forward.1} parent=11 // pred_check
        %p214 = pneg %p159
      $region30: #{double_conv_forward.1} parent=11 // pred_check_branch
        %216 = sbr.rel (%p214) target = $region32
      $region31: #{double_conv_forward.1} parent=11 // pred_region
        _
      $region32: #{double_conv_forward.1} parent=11 // pred_fallthru
        _
    $region12: #{double_conv_forward.1} parent=5 // pred_fallthru
      _
    %p217 = scmp.lt.s32.totalorder %s12, 4
    // Predicated region
    $region33: #{double_conv_forward.1} parent=5 // pred_check
      %p218 = pneg %p217
    $region34: #{double_conv_forward.1} parent=5 // pred_check_branch
      %220 = sbr.rel (%p218) target = $region36
    $region35: #{double_conv_forward.1} parent=5 // pred_region
      // Predicated region
      $region37: #{double_conv_forward.1} parent=35 // pred_check
        %p221 = pneg %p48
      $region38: #{double_conv_forward.1} parent=35 // pred_check_branch
        %223 = sbr.rel (%p221) target = $region40
      $region39: #{double_conv_forward.1} parent=35 // pred_region
        %s224 = ssub.s32 1, %s19
        %s225 = smul.u32 %s20, %s224
        %p226 = scmp.lt.s32.totalorder %s225, 1
        %s227 = scalar_select %p226, %s225, 1
        %s228 = smul.addr %s227, 3
        %s229 = smul.addr %s228, 2
        %s230 = scalar_lea.vmem %s0, %s229
        %s231 = ssub.s32 1, %s19
        %s232 = smul.u32 %s20, %s231
      $region40: #{double_conv_forward.1} parent=35 // pred_fallthru
        _
    $region36: #{double_conv_forward.1} parent=5 // pred_fallthru
      _
    %p233 = scmp.le.s32.totalorder 1, %s12
    %p234 = scmp.lt.s32.totalorder %s12, 5
    %p235 = pnand %p233, %p234
    %p236 = pneg %p235
    // Predicated region
    $region41: #{double_conv_forward.1} parent=5 // pred_check
      _
    $region42: #{double_conv_forward.1} parent=5 // pred_check_branch
      %238 = sbr.rel (%p235) target = $region44
    $region43: #{double_conv_forward.1} parent=5 // pred_region
      %s239 = ssub.s32 %s12, 1
      %s240 = ssub.s32 1, %s21
      %s241 = smul.u32 %s22, %s240
      %p242 = scmp.lt.s32.totalorder %s241, 1
      %s243 = scalar_select %p242, %s241, 1
      %s244 = smul.addr %s243, 3
      %s245 = smul.addr %s244, 2
      %s246 = scalar_lea.vmem %s0, %s245
      %p247 = pneg %p54
      %p248 = pneg %p51
      %p249 = pneg %p75
      %p250 = pneg %p72
      %p251 = pneg %p96
      %p252 = pneg %p93
      %p253 = pneg %p117
      %p254 = pneg %p114
      %p255 = pneg %p138
      %p256 = pneg %p135
      %p257 = pneg %p159
      %p258 = pneg %p156
      %p259 = pneg %p187
      %p260 = pneg %p184
      %s261 = smul.u32 %s21, %s22
      %p262 = scmp.lt.s32.totalorder %s261, 1
      %s263 = scalar_select %p262, %s261, 1
      %s264 = smul.addr %s263, 12
      %s265 = smul.addr %s264, 8
      %s266 = scalar_lea.vmem %s6, %s265
      %s267 = ssub.s32 1, %s21
      %s268 = smul.u32 %s22, %s267
      %p269 = scmp.lt.s32.totalorder %s268, 1
      %s270 = scalar_select %p269, %s268, 1
      %s271 = smul.addr %s270, 3
      %s272 = smul.addr %s271, 2
      %s273 = scalar_lea.vmem %s0, %s272
      %s274 = ssub.s32 1, %s21
      %s275 = smul.u32 %s22, %s274
      %s276 = smul.u32 %s21, %s22
      %p277 = scmp.lt.s32.totalorder %s276, 1
      %s278 = scalar_select %p277, %s276, 1
      %s279 = smul.addr %s278, 12
      %s280 = smul.addr %s279, 8
      %s281 = scalar_lea.vmem %s6, %s280
      %s282 = smul.u32 %s21, %s22
      %v284 = vld [vmem:[%s5] sm:$0x7]
      %p285 = scmp.eq.s32.totalorder %s21, 0
      // Predicated region
      $region45: #{double_conv_forward.1} parent=43 // pred_check
        %p286 = pneg %p285
      $region46: #{double_conv_forward.1} parent=43 // pred_check_branch
        %288 = sbr.rel (%p286) target = $region48
      $region47: #{double_conv_forward.1} parent=43 // pred_region
        %p289 = scmp.eq.s32.totalorder %s22, 0
        // Predicated region
        $region49: #{double_conv_forward.1} parent=47 // pred_check
          %p290 = pneg %p289
        $region50: #{double_conv_forward.1} parent=47 // pred_check_branch
          %292 = sbr.rel (%p290) target = $region52
        $region51: #{double_conv_forward.1} parent=47 // pred_region
          %vm293 = vcmask 7168
          %294 = vst.msk [vmem:[#allocation3] sm:$0xff] %vm293, 0.0
          %295 = vst.msk [vmem:[#allocation3 + $0x8] sm:$0xff] %vm293, 0.0
          %296 = vst.msk [vmem:[#allocation3 + $0x10] sm:$0xff] %vm293, 0.0
          %297 = vst.msk [vmem:[#allocation3 + $0x18] sm:$0xff] %vm293, 0.0
          %298 = vst.msk [vmem:[#allocation4] sm:$0xff] %vm293, 0.0
          %299 = vst.msk [vmem:[#allocation4 + $0x8] sm:$0xff] %vm293, 0.0
          %300 = vst.msk [vmem:[#allocation4 + $0x10] sm:$0xff] %vm293, 0.0
          %301 = vst.msk [vmem:[#allocation4 + $0x18] sm:$0xff] %vm293, 0.0
        $region52: #{double_conv_forward.1} parent=47 // pred_fallthru
          _
        %v302 = vld [vmem:[%s273] sm:$0x3f]
        %v303 = vld [vmem:[%s3] sm:$0xff]
        %v304 = vld [vmem:[%s3 + $0x8] sm:$0xff]
        %v305 = vld [vmem:[%s3 + $0x10] sm:$0xff]
        %v306 = vld [vmem:[%s3 + $0x18] sm:$0xff]
        %307 = vst [vmem:[#allocation5 + $0x2] sm:$0x3f] %v302
        %vm308 = vcmask 1042280
        %309 = vst.msk [vmem:[#allocation5] sm:$0x3] %vm308, 0
        %vm310 = vcmask 148480
        %311 = vst.msk [vmem:[#allocation5 + $0x8] sm:$0x3] %vm310, 0
        %v312 = vld [vmem:[%s1] sm:$0xf]
        %v313 = vld [vmem:[%s1 + $0x4] sm:$0xf]
        %v314 = vld [vmem:[%s1 + $0x8] sm:$0xf]
        %v315 = vld [vmem:[%s1 + $0xc] sm:$0xf]
        %v316 = vld [vmem:[#allocation5] sm:$0xff]
        %s317 = scalar_lea.vmem %s1, 16
        %v318 = vld [vmem:[%s317] sm:$0xf]
        %v319 = vld [vmem:[%s317 + $0x4] sm:$0xf]
        %v320 = vld [vmem:[%s317 + $0x8] sm:$0xf]
        %v321 = vld [vmem:[%s317 + $0xc] sm:$0xf]
        %v326 = vunpack.c.l.b16 %v318
        %v327 = vunpack.c.l.b16 %v319
        %v328 = vunpack.c.l.b16 %v320
        %v329 = vunpack.c.l.b16 %v321
        %v330 = vpack.c.b16 %v327, %v326
        %v331 = vpack.c.b16 %v329, %v328
        %333 = vst [vmem:[#allocation1] ss:$4 sm:$0xff] %v316
        %v334 = vld.sshfl [vmem:[#allocation1] sm:$0xff pattern:$0x73625140]
        %v336 = vld.sshfl [vmem:[#allocation1 + $0x8] sm:$0xff pattern:$0x73625140]
        %v338 = vld.sshfl [vmem:[#allocation1 + $0x10] sm:$0xff pattern:$0x73625140]
        %v340 = vld.sshfl [vmem:[#allocation1 + $0x18] sm:$0xff pattern:$0x73625140]
        %342 = vrot.lane.b32.xlu0 %v334, 18
        %v343 = vpop.permute.xlu0 %342
        %344 = vrot.lane.b32.xlu0 %v336, 18
        %v345 = vpop.permute.xlu0 %344
        %346 = vrot.lane.b32.xlu0 %v338, 18
        %v347 = vpop.permute.xlu0 %346
        %348 = vrot.lane.b32.xlu0 %v340, 18
        %v349 = vpop.permute.xlu0 %348
        %vm350 = vcmask 146432
        %v351 = vsel %vm350, %v343, %v345
        %v352 = vsel %vm350, %v345, %v347
        %v353 = vsel %vm350, %v347, %v349
        %vm354 = vcmask 31744
        %v356 = vsel %vm354, %v330, 0
        %v359 = vsel %vm354, %v331, 0
        %vm361 = vcmask 1041408
        %v363 = vsel %vm361, %v351, 0
        %v366 = vsel %vm361, %v352, 0
        %v369 = vsel %vm361, %v353, 0
        %371 = vmatpush.bf16.msra.mxu0 0
        %372 = vmatpush.bf16.msra.mxu0 0
        %373 = vmatpush.bf16.msra.mxu0 0
        %374 = vmatpush.bf16.msra.mxu0 0
        %375 = vmatpush.bf16.msra.mxu0 0
        %376 = vmatpush.bf16.msra.mxu0 0
        %377 = vmatpush.bf16.msra.mxu0 0
        %378 = vmatpush.bf16.msra.mxu0 %v363
        %379 = vmatmul.bf16.gmra.mxu0 %v356
        %v380 = vpop.f32.mrf.mxu0
        %v381 = vadd.f32 0.0, %v380
        %v382 = vpop.f32.mrf.mxu0
        %v383 = vadd.f32 0.0, %v382
        %384 = vmatmul.bf16.gmra.mxu0 %v359
        %v385 = vpop.f32.mrf.mxu0
        %v386 = vadd.f32 0.0, %v385
        %v387 = vpop.f32.mrf.mxu0
        %v388 = vadd.f32 0.0, %v387
        %389 = vdwg.mxu0
        %390 = vmatpush.bf16.msra.mxu0 0
        %391 = vmatpush.bf16.msra.mxu0 0
        %392 = vmatpush.bf16.msra.mxu0 0
        %393 = vmatpush.bf16.msra.mxu0 0
        %394 = vmatpush.bf16.msra.mxu0 0
        %395 = vmatpush.bf16.msra.mxu0 0
        %396 = vmatpush.bf16.msra.mxu0 0
        %397 = vmatpush.bf16.msra.mxu0 %v366
        %398 = vmatmul.bf16.gmra.mxu0 %v356
        %v399 = vpop.f32.mrf.mxu0
        %v400 = vadd.f32 0.0, %v399
        %v401 = vpop.f32.mrf.mxu0
        %v402 = vadd.f32 0.0, %v401
        %403 = vmatmul.bf16.gmra.mxu0 %v359
        %v404 = vpop.f32.mrf.mxu0
        %v405 = vadd.f32 0.0, %v404
        %v406 = vpop.f32.mrf.mxu0
        %v407 = vadd.f32 0.0, %v406
        %408 = vdwg.mxu0
        %409 = vmatpush.bf16.msra.mxu0 0
        %410 = vmatpush.bf16.msra.mxu0 0
        %411 = vmatpush.bf16.msra.mxu0 0
        %412 = vmatpush.bf16.msra.mxu0 0
        %413 = vmatpush.bf16.msra.mxu0 0
        %414 = vmatpush.bf16.msra.mxu0 0
        %415 = vmatpush.bf16.msra.mxu0 0
        %416 = vmatpush.bf16.msra.mxu0 %v369
        %417 = vmatmul.bf16.gmra.mxu0 %v356
        %v418 = vpop.f32.mrf.mxu0
        %v419 = vadd.f32 0.0, %v418
        %v420 = vpop.f32.mrf.mxu0
        %v421 = vadd.f32 0.0, %v420
        %422 = vmatmul.bf16.gmra.mxu0 %v359
        %v423 = vpop.f32.mrf.mxu0
        %v424 = vadd.f32 0.0, %v423
        %v425 = vpop.f32.mrf.mxu0
        %v426 = vadd.f32 0.0, %v425
        %427 = vdwg.mxu0
        %v432 = vunpack.c.l.b16 %v312
        %v433 = vunpack.c.l.b16 %v313
        %v434 = vunpack.c.l.b16 %v314
        %v435 = vunpack.c.l.b16 %v315
        %v436 = vpack.c.b16 %v433, %v432
        %v437 = vpack.c.b16 %v435, %v434
        %438 = vst [vmem:[#allocation1] ss:$4 sm:$0xff] %v316
        %v439 = vld.sshfl [vmem:[#allocation1] sm:$0xff pattern:$0x73625140]
        %v441 = vld.sshfl [vmem:[#allocation1 + $0x8] sm:$0xff pattern:$0x73625140]
        %v443 = vld.sshfl [vmem:[#allocation1 + $0x10] sm:$0xff pattern:$0x73625140]
        %v445 = vld.sshfl [vmem:[#allocation1 + $0x18] sm:$0xff pattern:$0x73625140]
        %447 = vrot.lane.b32.xlu0 %v439, 19
        %v448 = vpop.permute.xlu0 %447
        %449 = vrot.lane.b32.xlu0 %v441, 19
        %v450 = vpop.permute.xlu0 %449
        %451 = vrot.lane.b32.xlu0 %v443, 19
        %v452 = vpop.permute.xlu0 %451
        %453 = vrot.lane.b32.xlu0 %v445, 19
        %v454 = vpop.permute.xlu0 %453
        %vm455 = vcmask 154624
        %v456 = vsel %vm455, %v448, %v450
        %v457 = vsel %vm455, %v450, %v452
        %v458 = vsel %vm455, %v452, %v454
        %v460 = vsel %vm354, %v436, 0
        %v463 = vsel %vm354, %v437, 0
        %v466 = vsel %vm361, %v456, 0
        %v469 = vsel %vm361, %v457, 0
        %v472 = vsel %vm361, %v458, 0
        %474 = vmatpush.bf16.msra.mxu0 0
        %475 = vmatpush.bf16.msra.mxu0 0
        %476 = vmatpush.bf16.msra.mxu0 0
        %477 = vmatpush.bf16.msra.mxu0 0
        %478 = vmatpush.bf16.msra.mxu0 0
        %479 = vmatpush.bf16.msra.mxu0 0
        %480 = vmatpush.bf16.msra.mxu0 0
        %481 = vmatpush.bf16.msra.mxu0 %v466
        %482 = vmatmul.bf16.gmra.mxu0 %v460
        %v483 = vpop.f32.mrf.mxu0
        %v484 = vadd.f32 %v381, %v483
        %v485 = vpop.f32.mrf.mxu0
        %v486 = vadd.f32 %v383, %v485
        %487 = vmatmul.bf16.gmra.mxu0 %v463
        %v488 = vpop.f32.mrf.mxu0
        %v489 = vadd.f32 %v386, %v488
        %v490 = vpop.f32.mrf.mxu0
        %v491 = vadd.f32 %v388, %v490
        %492 = vdwg.mxu0
        %493 = vmatpush.bf16.msra.mxu0 0
        %494 = vmatpush.bf16.msra.mxu0 0
        %495 = vmatpush.bf16.msra.mxu0 0
        %496 = vmatpush.bf16.msra.mxu0 0
        %497 = vmatpush.bf16.msra.mxu0 0
        %498 = vmatpush.bf16.msra.mxu0 0
        %499 = vmatpush.bf16.msra.mxu0 0
        %500 = vmatpush.bf16.msra.mxu0 %v469
        %501 = vmatmul.bf16.gmra.mxu0 %v460
        %v502 = vpop.f32.mrf.mxu0
        %v503 = vadd.f32 %v400, %v502
        %v504 = vpop.f32.mrf.mxu0
        %v505 = vadd.f32 %v402, %v504
        %506 = vmatmul.bf16.gmra.mxu0 %v463
        %v507 = vpop.f32.mrf.mxu0
        %v508 = vadd.f32 %v405, %v507
        %v509 = vpop.f32.mrf.mxu0
        %v510 = vadd.f32 %v407, %v509
        %511 = vdwg.mxu0
        %512 = vmatpush.bf16.msra.mxu0 0
        %513 = vmatpush.bf16.msra.mxu0 0
        %514 = vmatpush.bf16.msra.mxu0 0
        %515 = vmatpush.bf16.msra.mxu0 0
        %516 = vmatpush.bf16.msra.mxu0 0
        %517 = vmatpush.bf16.msra.mxu0 0
        %518 = vmatpush.bf16.msra.mxu0 0
        %519 = vmatpush.bf16.msra.mxu0 %v472
        %520 = vmatmul.bf16.gmra.mxu0 %v460
        %v521 = vpop.f32.mrf.mxu0
        %v522 = vadd.f32 %v419, %v521
        %v523 = vpop.f32.mrf.mxu0
        %v524 = vadd.f32 %v421, %v523
        %525 = vmatmul.bf16.gmra.mxu0 %v463
        %v526 = vpop.f32.mrf.mxu0
        %v527 = vadd.f32 %v424, %v526
        %v528 = vpop.f32.mrf.mxu0
        %v529 = vadd.f32 %v426, %v528
        %530 = vdwg.mxu0
        %s531 = scalar_lea.vmem %s1, 32
        %v532 = vld [vmem:[%s531] sm:$0xf]
        %v533 = vld [vmem:[%s531 + $0x4] sm:$0xf]
        %v534 = vld [vmem:[%s531 + $0x8] sm:$0xf]
        %v535 = vld [vmem:[%s531 + $0xc] sm:$0xf]
        %v536 = vld [vmem:[#allocation5] sm:$0xff]
        %v541 = vunpack.c.l.b16 %v532
        %v542 = vunpack.c.l.b16 %v533
        %v543 = vunpack.c.l.b16 %v534
        %v544 = vunpack.c.l.b16 %v535
        %v545 = vpack.c.b16 %v542, %v541
        %v546 = vpack.c.b16 %v544, %v543
        %548 = vst [vmem:[#allocation1] ss:$4 sm:$0xff] %v536
        %v549 = vld.sshfl [vmem:[#allocation1] sm:$0xff pattern:$0x73625140]
        %v551 = vld.sshfl [vmem:[#allocation1 + $0x8] sm:$0xff pattern:$0x73625140]
        %v553 = vld.sshfl [vmem:[#allocation1 + $0x10] sm:$0xff pattern:$0x73625140]
        %v555 = vld.sshfl [vmem:[#allocation1 + $0x18] sm:$0xff pattern:$0x73625140]
        %557 = vrot.lane.b32.xlu0 %v549, 17
        %v558 = vpop.permute.xlu0 %557
        %559 = vrot.lane.b32.xlu0 %v551, 17
        %v560 = vpop.permute.xlu0 %559
        %561 = vrot.lane.b32.xlu0 %v553, 17
        %v562 = vpop.permute.xlu0 %561
        %563 = vrot.lane.b32.xlu0 %v555, 17
        %v564 = vpop.permute.xlu0 %563
        %vm565 = vcmask 138240
        %v566 = vsel %vm565, %v558, %v560
        %v567 = vsel %vm565, %v560, %v562
        %v568 = vsel %vm565, %v562, %v564
        %v570 = vsel %vm354, %v545, 0
        %v573 = vsel %vm354, %v546, 0
        %v576 = vsel %vm361, %v566, 0
        %v579 = vsel %vm361, %v567, 0
        %v582 = vsel %vm361, %v568, 0
        %584 = vmatpush.bf16.msra.mxu0 0
        %585 = vmatpush.bf16.msra.mxu0 0
        %586 = vmatpush.bf16.msra.mxu0 0
        %587 = vmatpush.bf16.msra.mxu0 0
        %588 = vmatpush.bf16.msra.mxu0 0
        %589 = vmatpush.bf16.msra.mxu0 0
        %590 = vmatpush.bf16.msra.mxu0 0
        %591 = vmatpush.bf16.msra.mxu0 %v576
        %592 = vmatmul.bf16.gmra.mxu0 %v570
        %v593 = vpop.f32.mrf.mxu0
        %v594 = vadd.f32 0.0, %v593
        %v595 = vpop.f32.mrf.mxu0
        %v596 = vadd.f32 0.0, %v595
        %597 = vmatmul.bf16.gmra.mxu0 %v573
        %v598 = vpop.f32.mrf.mxu0
        %v599 = vadd.f32 0.0, %v598
        %v600 = vpop.f32.mrf.mxu0
        %v601 = vadd.f32 0.0, %v600
        %602 = vdwg.mxu0
        %603 = vmatpush.bf16.msra.mxu0 0
        %604 = vmatpush.bf16.msra.mxu0 0
        %605 = vmatpush.bf16.msra.mxu0 0
        %606 = vmatpush.bf16.msra.mxu0 0
        %607 = vmatpush.bf16.msra.mxu0 0
        %608 = vmatpush.bf16.msra.mxu0 0
        %609 = vmatpush.bf16.msra.mxu0 0
        %610 = vmatpush.bf16.msra.mxu0 %v579
        %611 = vmatmul.bf16.gmra.mxu0 %v570
        %v612 = vpop.f32.mrf.mxu0
        %v613 = vadd.f32 0.0, %v612
        %v614 = vpop.f32.mrf.mxu0
        %v615 = vadd.f32 0.0, %v614
        %616 = vmatmul.bf16.gmra.mxu0 %v573
        %v617 = vpop.f32.mrf.mxu0
        %v618 = vadd.f32 0.0, %v617
        %v619 = vpop.f32.mrf.mxu0
        %v620 = vadd.f32 0.0, %v619
        %621 = vdwg.mxu0
        %622 = vmatpush.bf16.msra.mxu0 0
        %623 = vmatpush.bf16.msra.mxu0 0
        %624 = vmatpush.bf16.msra.mxu0 0
        %625 = vmatpush.bf16.msra.mxu0 0
        %626 = vmatpush.bf16.msra.mxu0 0
        %627 = vmatpush.bf16.msra.mxu0 0
        %628 = vmatpush.bf16.msra.mxu0 0
        %629 = vmatpush.bf16.msra.mxu0 %v582
        %630 = vmatmul.bf16.gmra.mxu0 %v570
        %v631 = vpop.f32.mrf.mxu0
        %v632 = vadd.f32 0.0, %v631
        %v633 = vpop.f32.mrf.mxu0
        %v634 = vadd.f32 0.0, %v633
        %635 = vmatmul.bf16.gmra.mxu0 %v573
        %v636 = vpop.f32.mrf.mxu0
        %v637 = vadd.f32 0.0, %v636
        %v638 = vpop.f32.mrf.mxu0
        %v639 = vadd.f32 0.0, %v638
        %640 = vdwg.mxu0
        %v641 = vadd.f32 %v484, %v594
        %v642 = vadd.f32 %v503, %v613
        %v643 = vadd.f32 %v522, %v632
        %v644 = vadd.f32 %v486, %v596
        %v645 = vadd.f32 %v505, %v615
        %v646 = vadd.f32 %v524, %v634
        %v647 = vadd.f32 %v489, %v599
        %v648 = vadd.f32 %v508, %v618
        %v649 = vadd.f32 %v527, %v637
        %v650 = vadd.f32 %v491, %v601
        %v651 = vadd.f32 %v510, %v620
        %v652 = vadd.f32 %v529, %v639
        %s653 = scalar_lea.vmem %s1, 48
        %v654 = vld [vmem:[%s653] sm:$0xf]
        %v655 = vld [vmem:[%s653 + $0x4] sm:$0xf]
        %v656 = vld [vmem:[%s653 + $0x8] sm:$0xf]
        %v657 = vld [vmem:[%s653 + $0xc] sm:$0xf]
        %v658 = vld [vmem:[#allocation5] sm:$0xff]
        %v663 = vunpack.c.l.b16 %v654
        %v664 = vunpack.c.l.b16 %v655
        %v665 = vunpack.c.l.b16 %v656
        %v666 = vunpack.c.l.b16 %v657
        %v667 = vpack.c.b16 %v664, %v663
        %v668 = vpack.c.b16 %v666, %v665
        %670 = vst [vmem:[#allocation1] ss:$4 sm:$0xff] %v658
        %v671 = vld.sshfl [vmem:[#allocation1] sm:$0xff pattern:$0x73625140]
        %v673 = vld.sshfl [vmem:[#allocation1 + $0x8] sm:$0xff pattern:$0x73625140]
        %v675 = vld.sshfl [vmem:[#allocation1 + $0x10] sm:$0xff pattern:$0x73625140]
        %v677 = vld.sshfl [vmem:[#allocation1 + $0x18] sm:$0xff pattern:$0x73625140]
        %679 = vrot.lane.b32.xlu0 %v671, 1
        %v680 = vpop.permute.xlu0 %679
        %681 = vrot.lane.b32.xlu0 %v673, 1
        %v682 = vpop.permute.xlu0 %681
        %683 = vrot.lane.b32.xlu0 %v675, 1
        %v684 = vpop.permute.xlu0 %683
        %685 = vrot.lane.b32.xlu0 %v677, 1
        %v686 = vpop.permute.xlu0 %685
        %vm687 = vcmask 7168
        %v688 = vsel %vm687, %v680, %v682
        %v689 = vsel %vm687, %v682, %v684
        %v690 = vsel %vm687, %v684, %v686
        %v692 = vsel %vm354, %v667, 0
        %v695 = vsel %vm354, %v668, 0
        %v698 = vsel %vm361, %v688, 0
        %v701 = vsel %vm361, %v689, 0
        %v704 = vsel %vm361, %v690, 0
        %706 = vmatpush.bf16.msra.mxu0 0
        %707 = vmatpush.bf16.msra.mxu0 0
        %708 = vmatpush.bf16.msra.mxu0 0
        %709 = vmatpush.bf16.msra.mxu0 0
        %710 = vmatpush.bf16.msra.mxu0 0
        %711 = vmatpush.bf16.msra.mxu0 0
        %712 = vmatpush.bf16.msra.mxu0 0
        %713 = vmatpush.bf16.msra.mxu0 %v698
        %714 = vmatmul.bf16.gmra.mxu0 %v692
        %v715 = vpop.f32.mrf.mxu0
        %v716 = vadd.f32 0.0, %v715
        %v717 = vpop.f32.mrf.mxu0
        %v718 = vadd.f32 0.0, %v717
        %719 = vmatmul.bf16.gmra.mxu0 %v695
        %v720 = vpop.f32.mrf.mxu0
        %v721 = vadd.f32 0.0, %v720
        %v722 = vpop.f32.mrf.mxu0
        %v723 = vadd.f32 0.0, %v722
        %724 = vdwg.mxu0
        %725 = vmatpush.bf16.msra.mxu0 0
        %726 = vmatpush.bf16.msra.mxu0 0
        %727 = vmatpush.bf16.msra.mxu0 0
        %728 = vmatpush.bf16.msra.mxu0 0
        %729 = vmatpush.bf16.msra.mxu0 0
        %730 = vmatpush.bf16.msra.mxu0 0
        %731 = vmatpush.bf16.msra.mxu0 0
        %732 = vmatpush.bf16.msra.mxu0 %v701
        %733 = vmatmul.bf16.gmra.mxu0 %v692
        %v734 = vpop.f32.mrf.mxu0
        %v735 = vadd.f32 0.0, %v734
        %v736 = vpop.f32.mrf.mxu0
        %v737 = vadd.f32 0.0, %v736
        %738 = vmatmul.bf16.gmra.mxu0 %v695
        %v739 = vpop.f32.mrf.mxu0
        %v740 = vadd.f32 0.0, %v739
        %v741 = vpop.f32.mrf.mxu0
        %v742 = vadd.f32 0.0, %v741
        %743 = vdwg.mxu0
        %744 = vmatpush.bf16.msra.mxu0 0
        %745 = vmatpush.bf16.msra.mxu0 0
        %746 = vmatpush.bf16.msra.mxu0 0
        %747 = vmatpush.bf16.msra.mxu0 0
        %748 = vmatpush.bf16.msra.mxu0 0
        %749 = vmatpush.bf16.msra.mxu0 0
        %750 = vmatpush.bf16.msra.mxu0 0
        %751 = vmatpush.bf16.msra.mxu0 %v704
        %752 = vmatmul.bf16.gmra.mxu0 %v692
        %v753 = vpop.f32.mrf.mxu0
        %v754 = vadd.f32 0.0, %v753
        %v755 = vpop.f32.mrf.mxu0
        %v756 = vadd.f32 0.0, %v755
        %757 = vmatmul.bf16.gmra.mxu0 %v695
        %v758 = vpop.f32.mrf.mxu0
        %v759 = vadd.f32 0.0, %v758
        %v760 = vpop.f32.mrf.mxu0
        %v761 = vadd.f32 0.0, %v760
        %762 = vdwg.mxu0
        %v763 = vadd.f32 %v641, %v716
        %v764 = vadd.f32 %v642, %v735
        %v765 = vadd.f32 %v643, %v754
        %v766 = vadd.f32 %v644, %v718
        %v767 = vadd.f32 %v645, %v737
        %v768 = vadd.f32 %v646, %v756
        %v769 = vadd.f32 %v647, %v721
        %v770 = vadd.f32 %v648, %v740
        %v771 = vadd.f32 %v649, %v759
        %v772 = vadd.f32 %v650, %v723
        %v773 = vadd.f32 %v651, %v742
        %v774 = vadd.f32 %v652, %v761
        %s775 = scalar_lea.vmem %s1, 64
        %v776 = vld [vmem:[%s775] sm:$0xf]
        %v777 = vld [vmem:[%s775 + $0x4] sm:$0xf]
        %v778 = vld [vmem:[%s775 + $0x8] sm:$0xf]
        %v779 = vld [vmem:[%s775 + $0xc] sm:$0xf]
        %v780 = vld [vmem:[#allocation5 + $0x2] sm:$0x3f]
        %v785 = vunpack.c.l.b16 %v776
        %v786 = vunpack.c.l.b16 %v777
        %v787 = vunpack.c.l.b16 %v778
        %v788 = vunpack.c.l.b16 %v779
        %v789 = vpack.c.b16 %v786, %v785
        %v790 = vpack.c.b16 %v788, %v787
        %792 = vst [vmem:[#allocation1] ss:$4 sm:$0xff] %v780
        %v793 = vld.sshfl [vmem:[#allocation1] sm:$0xff pattern:$0x73625140]
        %v794 = vld.sshfl [vmem:[#allocation1 + $0x8] sm:$0xff pattern:$0x73625140]
        %v795 = vld.sshfl [vmem:[#allocation1 + $0x10] sm:$0xff pattern:$0x73625140]
        %v797 = vsel %vm354, %v789, 0
        %v800 = vsel %vm354, %v790, 0
        %v802 = vsel %vm361, %v793, 0
        %v804 = vsel %vm361, %v794, 0
        %v806 = vsel %vm361, %v795, 0
        %808 = vmatpush.bf16.msra.mxu0 0
        %809 = vmatpush.bf16.msra.mxu0 0
        %810 = vmatpush.bf16.msra.mxu0 0
        %811 = vmatpush.bf16.msra.mxu0 0
        %812 = vmatpush.bf16.msra.mxu0 0
        %813 = vmatpush.bf16.msra.mxu0 0
        %814 = vmatpush.bf16.msra.mxu0 0
        %815 = vmatpush.bf16.msra.mxu0 %v802
        %816 = vmatmul.bf16.gmra.mxu0 %v797
        %v817 = vpop.f32.mrf.mxu0
        %v818 = vadd.f32 0.0, %v817
        %v819 = vpop.f32.mrf.mxu0
        %v820 = vadd.f32 0.0, %v819
        %821 = vmatmul.bf16.gmra.mxu0 %v800
        %v822 = vpop.f32.mrf.mxu0
        %v823 = vadd.f32 0.0, %v822
        %v824 = vpop.f32.mrf.mxu0
        %v825 = vadd.f32 0.0, %v824
        %826 = vdwg.mxu0
        %827 = vmatpush.bf16.msra.mxu0 0
        %828 = vmatpush.bf16.msra.mxu0 0
        %829 = vmatpush.bf16.msra.mxu0 0
        %830 = vmatpush.bf16.msra.mxu0 0
        %831 = vmatpush.bf16.msra.mxu0 0
        %832 = vmatpush.bf16.msra.mxu0 0
        %833 = vmatpush.bf16.msra.mxu0 0
        %834 = vmatpush.bf16.msra.mxu0 %v804
        %835 = vmatmul.bf16.gmra.mxu0 %v797
        %v836 = vpop.f32.mrf.mxu0
        %v837 = vadd.f32 0.0, %v836
        %v838 = vpop.f32.mrf.mxu0
        %v839 = vadd.f32 0.0, %v838
        %840 = vmatmul.bf16.gmra.mxu0 %v800
        %v841 = vpop.f32.mrf.mxu0
        %v842 = vadd.f32 0.0, %v841
        %v843 = vpop.f32.mrf.mxu0
        %v844 = vadd.f32 0.0, %v843
        %845 = vdwg.mxu0
        %846 = vmatpush.bf16.msra.mxu0 0
        %847 = vmatpush.bf16.msra.mxu0 0
        %848 = vmatpush.bf16.msra.mxu0 0
        %849 = vmatpush.bf16.msra.mxu0 0
        %850 = vmatpush.bf16.msra.mxu0 0
        %851 = vmatpush.bf16.msra.mxu0 0
        %852 = vmatpush.bf16.msra.mxu0 0
        %853 = vmatpush.bf16.msra.mxu0 %v806
        %854 = vmatmul.bf16.gmra.mxu0 %v797
        %v855 = vpop.f32.mrf.mxu0
        %v856 = vadd.f32 0.0, %v855
        %v857 = vpop.f32.mrf.mxu0
        %v858 = vadd.f32 0.0, %v857
        %859 = vmatmul.bf16.gmra.mxu0 %v800
        %v860 = vpop.f32.mrf.mxu0
        %v861 = vadd.f32 0.0, %v860
        %v862 = vpop.f32.mrf.mxu0
        %v863 = vadd.f32 0.0, %v862
        %864 = vdwg.mxu0
        %v865 = vadd.f32 %v763, %v818
        %v866 = vadd.f32 %v764, %v837
        %v867 = vadd.f32 %v765, %v856
        %v868 = vadd.f32 %v766, %v820
        %v869 = vadd.f32 %v767, %v839
        %v870 = vadd.f32 %v768, %v858
        %v871 = vadd.f32 %v769, %v823
        %v872 = vadd.f32 %v770, %v842
        %v873 = vadd.f32 %v771, %v861
        %v874 = vadd.f32 %v772, %v825
        %v875 = vadd.f32 %v773, %v844
        %v876 = vadd.f32 %v774, %v863
        %s877 = scalar_lea.vmem %s1, 80
        %v878 = vld [vmem:[%s877] sm:$0xf]
        %v879 = vld [vmem:[%s877 + $0x4] sm:$0xf]
        %v880 = vld [vmem:[%s877 + $0x8] sm:$0xf]
        %v881 = vld [vmem:[%s877 + $0xc] sm:$0xf]
        %v882 = vld [vmem:[#allocation5 + $0x2] sm:$0xff]
        %v887 = vunpack.c.l.b16 %v878
        %v888 = vunpack.c.l.b16 %v879
        %v889 = vunpack.c.l.b16 %v880
        %v890 = vunpack.c.l.b16 %v881
        %v891 = vpack.c.b16 %v888, %v887
        %v892 = vpack.c.b16 %v890, %v889
        %894 = vst [vmem:[#allocation1] ss:$4 sm:$0xff] %v882
        %v895 = vld.sshfl [vmem:[#allocation1] sm:$0xff pattern:$0x73625140]
        %v897 = vld.sshfl [vmem:[#allocation1 + $0x8] sm:$0xff pattern:$0x73625140]
        %v899 = vld.sshfl [vmem:[#allocation1 + $0x10] sm:$0xff pattern:$0x73625140]
        %v901 = vld.sshfl [vmem:[#allocation1 + $0x18] sm:$0xff pattern:$0x73625140]
        %903 = vrot.lane.b32.xlu0 %v895, 127
        %v904 = vpop.permute.xlu0 %903
        %905 = vrot.lane.b32.xlu0 %v897, 127
        %v906 = vpop.permute.xlu0 %905
        %907 = vrot.lane.b32.xlu0 %v899, 127
        %v908 = vpop.permute.xlu0 %907
        %909 = vrot.lane.b32.xlu0 %v901, 127
        %v910 = vpop.permute.xlu0 %909
        %vm911 = vcmask 1039360
        %v912 = vsel %vm911, %v904, %v906
        %v913 = vsel %vm911, %v906, %v908
        %v914 = vsel %vm911, %v908, %v910
        %v916 = vsel %vm354, %v891, 0
        %v919 = vsel %vm354, %v892, 0
        %v922 = vsel %vm361, %v912, 0
        %v925 = vsel %vm361, %v913, 0
        %v928 = vsel %vm361, %v914, 0
        %930 = vmatpush.bf16.msra.mxu0 0
        %931 = vmatpush.bf16.msra.mxu0 0
        %932 = vmatpush.bf16.msra.mxu0 0
        %933 = vmatpush.bf16.msra.mxu0 0
        %934 = vmatpush.bf16.msra.mxu0 0
        %935 = vmatpush.bf16.msra.mxu0 0
        %936 = vmatpush.bf16.msra.mxu0 0
        %937 = vmatpush.bf16.msra.mxu0 %v922
        %938 = vmatmul.bf16.gmra.mxu0 %v916
        %v939 = vpop.f32.mrf.mxu0
        %v940 = vadd.f32 0.0, %v939
        %v941 = vpop.f32.mrf.mxu0
        %v942 = vadd.f32 0.0, %v941
        %943 = vmatmul.bf16.gmra.mxu0 %v919
        %v944 = vpop.f32.mrf.mxu0
        %v945 = vadd.f32 0.0, %v944
        %v946 = vpop.f32.mrf.mxu0
        %v947 = vadd.f32 0.0, %v946
        %948 = vdwg.mxu0
        %949 = vmatpush.bf16.msra.mxu0 0
        %950 = vmatpush.bf16.msra.mxu0 0
        %951 = vmatpush.bf16.msra.mxu0 0
        %952 = vmatpush.bf16.msra.mxu0 0
        %953 = vmatpush.bf16.msra.mxu0 0
        %954 = vmatpush.bf16.msra.mxu0 0
        %955 = vmatpush.bf16.msra.mxu0 0
        %956 = vmatpush.bf16.msra.mxu0 %v925
        %957 = vmatmul.bf16.gmra.mxu0 %v916
        %v958 = vpop.f32.mrf.mxu0
        %v959 = vadd.f32 0.0, %v958
        %v960 = vpop.f32.mrf.mxu0
        %v961 = vadd.f32 0.0, %v960
        %962 = vmatmul.bf16.gmra.mxu0 %v919
        %v963 = vpop.f32.mrf.mxu0
        %v964 = vadd.f32 0.0, %v963
        %v965 = vpop.f32.mrf.mxu0
        %v966 = vadd.f32 0.0, %v965
        %967 = vdwg.mxu0
        %968 = vmatpush.bf16.msra.mxu0 0
        %969 = vmatpush.bf16.msra.mxu0 0
        %970 = vmatpush.bf16.msra.mxu0 0
        %971 = vmatpush.bf16.msra.mxu0 0
        %972 = vmatpush.bf16.msra.mxu0 0
        %973 = vmatpush.bf16.msra.mxu0 0
        %974 = vmatpush.bf16.msra.mxu0 0
        %975 = vmatpush.bf16.msra.mxu0 %v928
        %976 = vmatmul.bf16.gmra.mxu0 %v916
        %v977 = vpop.f32.mrf.mxu0
        %v978 = vadd.f32 0.0, %v977
        %v979 = vpop.f32.mrf.mxu0
        %v980 = vadd.f32 0.0, %v979
        %981 = vmatmul.bf16.gmra.mxu0 %v919
        %v982 = vpop.f32.mrf.mxu0
        %v983 = vadd.f32 0.0, %v982
        %v984 = vpop.f32.mrf.mxu0
        %v985 = vadd.f32 0.0, %v984
        %986 = vdwg.mxu0
        %v987 = vadd.f32 %v865, %v940
        %v988 = vadd.f32 %v866, %v959
        %v989 = vadd.f32 %v867, %v978
        %v990 = vadd.f32 %v868, %v942
        %v991 = vadd.f32 %v869, %v961
        %v992 = vadd.f32 %v870, %v980
        %v993 = vadd.f32 %v871, %v945
        %v994 = vadd.f32 %v872, %v964
        %v995 = vadd.f32 %v873, %v983
        %v996 = vadd.f32 %v874, %v947
        %v997 = vadd.f32 %v875, %v966
        %v998 = vadd.f32 %v876, %v985
        %s999 = scalar_lea.vmem %s1, 96
        %v1000 = vld [vmem:[%s999] sm:$0xf]
        %v1001 = vld [vmem:[%s999 + $0x4] sm:$0xf]
        %v1002 = vld [vmem:[%s999 + $0x8] sm:$0xf]
        %v1003 = vld [vmem:[%s999 + $0xc] sm:$0xf]
        %v1004 = vld [vmem:[#allocation5 + $0x2] sm:$0xff]
        %v1009 = vunpack.c.l.b16 %v1000
        %v1010 = vunpack.c.l.b16 %v1001
        %v1011 = vunpack.c.l.b16 %v1002
        %v1012 = vunpack.c.l.b16 %v1003
        %v1013 = vpack.c.b16 %v1010, %v1009
        %v1014 = vpack.c.b16 %v1012, %v1011
        %1016 = vst [vmem:[#allocation1] ss:$4 sm:$0xff] %v1004
        %v1017 = vld.sshfl [vmem:[#allocation1] sm:$0xff pattern:$0x73625140]
        %v1019 = vld.sshfl [vmem:[#allocation1 + $0x8] sm:$0xff pattern:$0x73625140]
        %v1021 = vld.sshfl [vmem:[#allocation1 + $0x10] sm:$0xff pattern:$0x73625140]
        %v1023 = vld.sshfl [vmem:[#allocation1 + $0x18] sm:$0xff pattern:$0x73625140]
        %1025 = vrot.lane.b32.xlu0 %v1017, 111
        %v1026 = vpop.permute.xlu0 %1025
        %1027 = vrot.lane.b32.xlu0 %v1019, 111
        %v1028 = vpop.permute.xlu0 %1027
        %1029 = vrot.lane.b32.xlu0 %v1021, 111
        %v1030 = vpop.permute.xlu0 %1029
        %1031 = vrot.lane.b32.xlu0 %v1023, 111
        %v1032 = vpop.permute.xlu0 %1031
        %vm1033 = vcmask 908288
        %v1034 = vsel %vm1033, %v1026, %v1028
        %v1035 = vsel %vm1033, %v1028, %v1030
        %v1036 = vsel %vm1033, %v1030, %v1032
        %v1038 = vsel %vm354, %v1013, 0
        %v1041 = vsel %vm354, %v1014, 0
        %v1044 = vsel %vm361, %v1034, 0
        %v1047 = vsel %vm361, %v1035, 0
        %v1050 = vsel %vm361, %v1036, 0
        %1052 = vmatpush.bf16.msra.mxu0 0
        %1053 = vmatpush.bf16.msra.mxu0 0
        %1054 = vmatpush.bf16.msra.mxu0 0
        %1055 = vmatpush.bf16.msra.mxu0 0
        %1056 = vmatpush.bf16.msra.mxu0 0
        %1057 = vmatpush.bf16.msra.mxu0 0
        %1058 = vmatpush.bf16.msra.mxu0 0
        %1059 = vmatpush.bf16.msra.mxu0 %v1044
        %1060 = vmatmul.bf16.gmra.mxu0 %v1038
        %v1061 = vpop.f32.mrf.mxu0
        %v1062 = vadd.f32 0.0, %v1061
        %v1063 = vpop.f32.mrf.mxu0
        %v1064 = vadd.f32 0.0, %v1063
        %1065 = vmatmul.bf16.gmra.mxu0 %v1041
        %v1066 = vpop.f32.mrf.mxu0
        %v1067 = vadd.f32 0.0, %v1066
        %v1068 = vpop.f32.mrf.mxu0
        %v1069 = vadd.f32 0.0, %v1068
        %1070 = vdwg.mxu0
        %1071 = vmatpush.bf16.msra.mxu0 0
        %1072 = vmatpush.bf16.msra.mxu0 0
        %1073 = vmatpush.bf16.msra.mxu0 0
        %1074 = vmatpush.bf16.msra.mxu0 0
        %1075 = vmatpush.bf16.msra.mxu0 0
        %1076 = vmatpush.bf16.msra.mxu0 0
        %1077 = vmatpush.bf16.msra.mxu0 0
        %1078 = vmatpush.bf16.msra.mxu0 %v1047
        %1079 = vmatmul.bf16.gmra.mxu0 %v1038
        %v1080 = vpop.f32.mrf.mxu0
        %v1081 = vadd.f32 0.0, %v1080
        %v1082 = vpop.f32.mrf.mxu0
        %v1083 = vadd.f32 0.0, %v1082
        %1084 = vmatmul.bf16.gmra.mxu0 %v1041
        %v1085 = vpop.f32.mrf.mxu0
        %v1086 = vadd.f32 0.0, %v1085
        %v1087 = vpop.f32.mrf.mxu0
        %v1088 = vadd.f32 0.0, %v1087
        %1089 = vdwg.mxu0
        %1090 = vmatpush.bf16.msra.mxu0 0
        %1091 = vmatpush.bf16.msra.mxu0 0
        %1092 = vmatpush.bf16.msra.mxu0 0
        %1093 = vmatpush.bf16.msra.mxu0 0
        %1094 = vmatpush.bf16.msra.mxu0 0
        %1095 = vmatpush.bf16.msra.mxu0 0
        %1096 = vmatpush.bf16.msra.mxu0 0
        %1097 = vmatpush.bf16.msra.mxu0 %v1050
        %1098 = vmatmul.bf16.gmra.mxu0 %v1038
        %v1099 = vpop.f32.mrf.mxu0
        %v1100 = vadd.f32 0.0, %v1099
        %v1101 = vpop.f32.mrf.mxu0
        %v1102 = vadd.f32 0.0, %v1101
        %1103 = vmatmul.bf16.gmra.mxu0 %v1041
        %v1104 = vpop.f32.mrf.mxu0
        %v1105 = vadd.f32 0.0, %v1104
        %v1106 = vpop.f32.mrf.mxu0
        %v1107 = vadd.f32 0.0, %v1106
        %1108 = vdwg.mxu0
        %v1109 = vadd.f32 %v987, %v1062
        %v1110 = vadd.f32 %v988, %v1081
        %v1111 = vadd.f32 %v989, %v1100
        %v1112 = vadd.f32 %v990, %v1064
        %v1113 = vadd.f32 %v991, %v1083
        %v1114 = vadd.f32 %v992, %v1102
        %v1115 = vadd.f32 %v993, %v1067
        %v1116 = vadd.f32 %v994, %v1086
        %v1117 = vadd.f32 %v995, %v1105
        %v1118 = vadd.f32 %v996, %v1069
        %v1119 = vadd.f32 %v997, %v1088
        %v1120 = vadd.f32 %v998, %v1107
        %s1121 = scalar_lea.vmem %s1, 112
        %v1122 = vld [vmem:[%s1121] sm:$0xf]
        %v1123 = vld [vmem:[%s1121 + $0x4] sm:$0xf]
        %v1124 = vld [vmem:[%s1121 + $0x8] sm:$0xf]
        %v1125 = vld [vmem:[%s1121 + $0xc] sm:$0xf]
        %v1126 = vld [vmem:[#allocation5 + $0x2] sm:$0xff]
        %v1131 = vunpack.c.l.b16 %v1122
        %v1132 = vunpack.c.l.b16 %v1123
        %v1133 = vunpack.c.l.b16 %v1124
        %v1134 = vunpack.c.l.b16 %v1125
        %v1135 = vpack.c.b16 %v1132, %v1131
        %v1136 = vpack.c.b16 %v1134, %v1133
        %1138 = vst [vmem:[#allocation1] ss:$4 sm:$0xff] %v1126
        %v1139 = vld.sshfl [vmem:[#allocation1] sm:$0xff pattern:$0x73625140]
        %v1141 = vld.sshfl [vmem:[#allocation1 + $0x8] sm:$0xff pattern:$0x73625140]
        %v1143 = vld.sshfl [vmem:[#allocation1 + $0x10] sm:$0xff pattern:$0x73625140]
        %v1145 = vld.sshfl [vmem:[#allocation1 + $0x18] sm:$0xff pattern:$0x73625140]
        %1147 = vrot.lane.b32.xlu0 %v1139, 110
        %v1148 = vpop.permute.xlu0 %1147
        %1149 = vrot.lane.b32.xlu0 %v1141, 110
        %v1150 = vpop.permute.xlu0 %1149
        %1151 = vrot.lane.b32.xlu0 %v1143, 110
        %v1152 = vpop.permute.xlu0 %1151
        %1153 = vrot.lane.b32.xlu0 %v1145, 110
        %v1154 = vpop.permute.xlu0 %1153
        %vm1155 = vcmask 900096
        %v1156 = vsel %vm1155, %v1148, %v1150
        %v1157 = vsel %vm1155, %v1150, %v1152
        %v1158 = vsel %vm1155, %v1152, %v1154
        %v1160 = vsel %vm354, %v1135, 0
        %v1163 = vsel %vm354, %v1136, 0
        %v1166 = vsel %vm361, %v1156, 0
        %v1169 = vsel %vm361, %v1157, 0
        %v1172 = vsel %vm361, %v1158, 0
        %1174 = vmatpush.bf16.msra.mxu0 0
        %1175 = vmatpush.bf16.msra.mxu0 0
        %1176 = vmatpush.bf16.msra.mxu0 0
        %1177 = vmatpush.bf16.msra.mxu0 0
        %1178 = vmatpush.bf16.msra.mxu0 0
        %1179 = vmatpush.bf16.msra.mxu0 0
        %1180 = vmatpush.bf16.msra.mxu0 0
        %1181 = vmatpush.bf16.msra.mxu0 %v1166
        %1182 = vmatmul.bf16.gmra.mxu0 %v1160
        %v1183 = vpop.f32.mrf.mxu0
        %v1184 = vadd.f32 0.0, %v1183
        %v1185 = vpop.f32.mrf.mxu0
        %v1186 = vadd.f32 0.0, %v1185
        %1187 = vmatmul.bf16.gmra.mxu0 %v1163
        %v1188 = vpop.f32.mrf.mxu0
        %v1189 = vadd.f32 0.0, %v1188
        %v1190 = vpop.f32.mrf.mxu0
        %v1191 = vadd.f32 0.0, %v1190
        %1192 = vdwg.mxu0
        %1193 = vmatpush.bf16.msra.mxu0 0
        %1194 = vmatpush.bf16.msra.mxu0 0
        %1195 = vmatpush.bf16.msra.mxu0 0
        %1196 = vmatpush.bf16.msra.mxu0 0
        %1197 = vmatpush.bf16.msra.mxu0 0
        %1198 = vmatpush.bf16.msra.mxu0 0
        %1199 = vmatpush.bf16.msra.mxu0 0
        %1200 = vmatpush.bf16.msra.mxu0 %v1169
        %1201 = vmatmul.bf16.gmra.mxu0 %v1160
        %v1202 = vpop.f32.mrf.mxu0
        %v1203 = vadd.f32 0.0, %v1202
        %v1204 = vpop.f32.mrf.mxu0
        %v1205 = vadd.f32 0.0, %v1204
        %1206 = vmatmul.bf16.gmra.mxu0 %v1163
        %v1207 = vpop.f32.mrf.mxu0
        %v1208 = vadd.f32 0.0, %v1207
        %v1209 = vpop.f32.mrf.mxu0
        %v1210 = vadd.f32 0.0, %v1209
        %1211 = vdwg.mxu0
        %1212 = vmatpush.bf16.msra.mxu0 0
        %1213 = vmatpush.bf16.msra.mxu0 0
        %1214 = vmatpush.bf16.msra.mxu0 0
        %1215 = vmatpush.bf16.msra.mxu0 0
        %1216 = vmatpush.bf16.msra.mxu0 0
        %1217 = vmatpush.bf16.msra.mxu0 0
        %1218 = vmatpush.bf16.msra.mxu0 0
        %1219 = vmatpush.bf16.msra.mxu0 %v1172
        %1220 = vmatmul.bf16.gmra.mxu0 %v1160
        %v1221 = vpop.f32.mrf.mxu0
        %v1222 = vadd.f32 0.0, %v1221
        %v1223 = vpop.f32.mrf.mxu0
        %v1224 = vadd.f32 0.0, %v1223
        %1225 = vmatmul.bf16.gmra.mxu0 %v1163
        %v1226 = vpop.f32.mrf.mxu0
        %v1227 = vadd.f32 0.0, %v1226
        %v1228 = vpop.f32.mrf.mxu0
        %v1229 = vadd.f32 0.0, %v1228
        %1230 = vdwg.mxu0
        %v1231 = vadd.f32 %v1109, %v1184
        %v1232 = vadd.f32 %v1110, %v1203
        %v1233 = vadd.f32 %v1111, %v1222
        %v1234 = vadd.f32 %v1112, %v1186
        %v1235 = vadd.f32 %v1113, %v1205
        %v1236 = vadd.f32 %v1114, %v1224
        %v1237 = vadd.f32 %v1115, %v1189
        %v1238 = vadd.f32 %v1116, %v1208
        %v1239 = vadd.f32 %v1117, %v1227
        %v1240 = vadd.f32 %v1118, %v1191
        %v1241 = vadd.f32 %v1119, %v1210
        %v1242 = vadd.f32 %v1120, %v1229
        %s1243 = scalar_lea.vmem %s1, 128
        %v1244 = vld [vmem:[%s1243] sm:$0xf]
        %v1245 = vld [vmem:[%s1243 + $0x4] sm:$0xf]
        %v1246 = vld [vmem:[%s1243 + $0x8] sm:$0xf]
        %v1247 = vld [vmem:[%s1243 + $0xc] sm:$0xf]
        %v1248 = vld [vmem:[#allocation5 + $0x2] sm:$0xff]
        %v1253 = vunpack.c.l.b16 %v1244
        %v1254 = vunpack.c.l.b16 %v1245
        %v1255 = vunpack.c.l.b16 %v1246
        %v1256 = vunpack.c.l.b16 %v1247
        %v1257 = vpack.c.b16 %v1254, %v1253
        %v1258 = vpack.c.b16 %v1256, %v1255
        %1260 = vst [vmem:[#allocation1] ss:$4 sm:$0xff] %v1248
        %v1261 = vld.sshfl [vmem:[#allocation1] sm:$0xff pattern:$0x73625140]
        %v1263 = vld.sshfl [vmem:[#allocation1 + $0x8] sm:$0xff pattern:$0x73625140]
        %v1265 = vld.sshfl [vmem:[#allocation1 + $0x10] sm:$0xff pattern:$0x73625140]
        %v1267 = vld.sshfl [vmem:[#allocation1 + $0x18] sm:$0xff pattern:$0x73625140]
        %1269 = vrot.lane.b32.xlu0 %v1261, 109
        %v1270 = vpop.permute.xlu0 %1269
        %1271 = vrot.lane.b32.xlu0 %v1263, 109
        %v1272 = vpop.permute.xlu0 %1271
        %1273 = vrot.lane.b32.xlu0 %v1265, 109
        %v1274 = vpop.permute.xlu0 %1273
        %1275 = vrot.lane.b32.xlu0 %v1267, 109
        %v1276 = vpop.permute.xlu0 %1275
        %vm1277 = vcmask 891904
        %v1278 = vsel %vm1277, %v1270, %v1272
        %v1279 = vsel %vm1277, %v1272, %v1274
        %v1280 = vsel %vm1277, %v1274, %v1276
        %v1282 = vsel %vm354, %v1257, 0
        %v1285 = vsel %vm354, %v1258, 0
        %v1288 = vsel %vm361, %v1278, 0
        %v1291 = vsel %vm361, %v1279, 0
        %v1294 = vsel %vm361, %v1280, 0
        %1296 = vmatpush.bf16.msra.mxu0 0
        %1297 = vmatpush.bf16.msra.mxu0 0
        %1298 = vmatpush.bf16.msra.mxu0 0
        %1299 = vmatpush.bf16.msra.mxu0 0
        %1300 = vmatpush.bf16.msra.mxu0 0
        %1301 = vmatpush.bf16.msra.mxu0 0
        %1302 = vmatpush.bf16.msra.mxu0 0
        %1303 = vmatpush.bf16.msra.mxu0 %v1288
        %1304 = vmatmul.bf16.gmra.mxu0 %v1282
        %v1305 = vpop.f32.mrf.mxu0
        %v1306 = vadd.f32 0.0, %v1305
        %v1307 = vpop.f32.mrf.mxu0
        %v1308 = vadd.f32 0.0, %v1307
        %1309 = vmatmul.bf16.gmra.mxu0 %v1285
        %v1310 = vpop.f32.mrf.mxu0
        %v1311 = vadd.f32 0.0, %v1310
        %v1312 = vpop.f32.mrf.mxu0
        %v1313 = vadd.f32 0.0, %v1312
        %1314 = vdwg.mxu0
        %1315 = vmatpush.bf16.msra.mxu0 0
        %1316 = vmatpush.bf16.msra.mxu0 0
        %1317 = vmatpush.bf16.msra.mxu0 0
        %1318 = vmatpush.bf16.msra.mxu0 0
        %1319 = vmatpush.bf16.msra.mxu0 0
        %1320 = vmatpush.bf16.msra.mxu0 0
        %1321 = vmatpush.bf16.msra.mxu0 0
        %1322 = vmatpush.bf16.msra.mxu0 %v1291
        %1323 = vmatmul.bf16.gmra.mxu0 %v1282
        %v1324 = vpop.f32.mrf.mxu0
        %v1325 = vadd.f32 0.0, %v1324
        %v1326 = vpop.f32.mrf.mxu0
        %v1327 = vadd.f32 0.0, %v1326
        %1328 = vmatmul.bf16.gmra.mxu0 %v1285
        %v1329 = vpop.f32.mrf.mxu0
        %v1330 = vadd.f32 0.0, %v1329
        %v1331 = vpop.f32.mrf.mxu0
        %v1332 = vadd.f32 0.0, %v1331
        %1333 = vdwg.mxu0
        %1334 = vmatpush.bf16.msra.mxu0 0
        %1335 = vmatpush.bf16.msra.mxu0 0
        %1336 = vmatpush.bf16.msra.mxu0 0
        %1337 = vmatpush.bf16.msra.mxu0 0
        %1338 = vmatpush.bf16.msra.mxu0 0
        %1339 = vmatpush.bf16.msra.mxu0 0
        %1340 = vmatpush.bf16.msra.mxu0 0
        %1341 = vmatpush.bf16.msra.mxu0 %v1294
        %1342 = vmatmul.bf16.gmra.mxu0 %v1282
        %v1343 = vpop.f32.mrf.mxu0
        %v1344 = vadd.f32 0.0, %v1343
        %v1345 = vpop.f32.mrf.mxu0
        %v1346 = vadd.f32 0.0, %v1345
        %1347 = vmatmul.bf16.gmra.mxu0 %v1285
        %v1348 = vpop.f32.mrf.mxu0
        %v1349 = vadd.f32 0.0, %v1348
        %v1350 = vpop.f32.mrf.mxu0
        %v1351 = vadd.f32 0.0, %v1350
        %1352 = vdwg.mxu0
        %v1353 = vadd.f32 %v1231, %v1306
        %v1354 = vadd.f32 %v1232, %v1325
        %v1355 = vadd.f32 %v1233, %v1344
        %v1356 = vadd.f32 %v1234, %v1308
        %v1357 = vadd.f32 %v1235, %v1327
        %v1358 = vadd.f32 %v1236, %v1346
        %v1359 = vadd.f32 %v1237, %v1311
        %v1360 = vadd.f32 %v1238, %v1330
        %v1361 = vadd.f32 %v1239, %v1349
        %v1362 = vadd.f32 %v1240, %v1313
        %v1363 = vadd.f32 %v1241, %v1332
        %v1364 = vadd.f32 %v1242, %v1351
        %1366 = vset.pattern.permute.xlu0 0
        %1367 = vperm.xlu0 %1366, %v303
        %v1368 = vpop.permute.xlu0 %1367
        %1371 = vset.pattern.permute.xlu0 0
        %1372 = vperm.xlu0 %1371, %v304
        %v1373 = vpop.permute.xlu0 %1372
        %1376 = vset.pattern.permute.xlu0 0
        %1377 = vperm.xlu0 %1376, %v305
        %v1378 = vpop.permute.xlu0 %1377
        %1381 = vset.pattern.permute.xlu0 0
        %1382 = vperm.xlu0 %1381, %v306
        %v1383 = vpop.permute.xlu0 %1382
        %v1385 = vadd.f32 %v1353, %v1368
        %v1386 = vadd.f32 %v1354, %v1368
        %v1387 = vadd.f32 %v1355, %v1368
        %v1388 = vadd.f32 %v1356, %v1373
        %v1389 = vadd.f32 %v1357, %v1373
        %v1390 = vadd.f32 %v1358, %v1373
        %v1391 = vadd.f32 %v1359, %v1378
        %v1392 = vadd.f32 %v1360, %v1378
        %v1393 = vadd.f32 %v1361, %v1378
        %v1394 = vadd.f32 %v1362, %v1383
        %v1395 = vadd.f32 %v1363, %v1383
        %v1396 = vadd.f32 %v1364, %v1383
        %v1398 = vperm.slane %v284, 0
        %v1399 = vperm.slane %v284, 1
        %v1400 = vperm.slane %v284, 2
        %v1404 = vmul.f32 %v1385, %v1398
        %v1405 = vmul.f32 %v1386, %v1399
        %v1406 = vmul.f32 %v1387, %v1400
        %v1407 = vmul.f32 %v1388, %v1398
        %v1408 = vmul.f32 %v1389, %v1399
        %v1409 = vmul.f32 %v1390, %v1400
        %v1410 = vmul.f32 %v1391, %v1398
        %v1411 = vmul.f32 %v1392, %v1399
        %v1412 = vmul.f32 %v1393, %v1400
        %v1413 = vmul.f32 %v1394, %v1398
        %v1414 = vmul.f32 %v1395, %v1399
        %v1415 = vmul.f32 %v1396, %v1400
        %v1416 = vadd.f32 %v1404, %v1405
        %v1417 = vadd.f32 %v1416, %v1406
        %1418 = vadd.xlane.f32.xlu0 %v1417
        %v1419 = vpop.xlane.xlu0 %1418
        %v1420 = vadd.f32 %v1407, %v1408
        %v1421 = vadd.f32 %v1420, %v1409
        %1422 = vadd.xlane.f32.xlu0 %v1421
        %v1423 = vpop.xlane.xlu0 %1422
        %v1424 = vadd.f32 %v1410, %v1411
        %v1425 = vadd.f32 %v1424, %v1412
        %1426 = vadd.xlane.f32.xlu0 %v1425
        %v1427 = vpop.xlane.xlu0 %1426
        %v1428 = vadd.f32 %v1413, %v1414
        %v1429 = vadd.f32 %v1428, %v1415
        %1430 = vadd.xlane.f32.xlu0 %v1429
        %v1431 = vpop.xlane.xlu0 %1430
        %v1432 = vmul.f32 %v1385, %v1404
        %v1433 = vmul.f32 %v1386, %v1405
        %v1434 = vmul.f32 %v1387, %v1406
        %v1435 = vmul.f32 %v1388, %v1407
        %v1436 = vmul.f32 %v1389, %v1408
        %v1437 = vmul.f32 %v1390, %v1409
        %v1438 = vmul.f32 %v1391, %v1410
        %v1439 = vmul.f32 %v1392, %v1411
        %v1440 = vmul.f32 %v1393, %v1412
        %v1441 = vmul.f32 %v1394, %v1413
        %v1442 = vmul.f32 %v1395, %v1414
        %v1443 = vmul.f32 %v1396, %v1415
        %v1444 = vadd.f32 %v1432, %v1433
        %v1445 = vadd.f32 %v1444, %v1434
        %1446 = vadd.xlane.f32.xlu0 %v1445
        %v1447 = vpop.xlane.xlu0 %1446
        %v1448 = vadd.f32 %v1435, %v1436
        %v1449 = vadd.f32 %v1448, %v1437
        %1450 = vadd.xlane.f32.xlu0 %v1449
        %v1451 = vpop.xlane.xlu0 %1450
        %v1452 = vadd.f32 %v1438, %v1439
        %v1453 = vadd.f32 %v1452, %v1440
        %1454 = vadd.xlane.f32.xlu0 %v1453
        %v1455 = vpop.xlane.xlu0 %1454
        %v1456 = vadd.f32 %v1441, %v1442
        %v1457 = vadd.f32 %v1456, %v1443
        %1458 = vadd.xlane.f32.xlu0 %v1457
        %v1459 = vpop.xlane.xlu0 %1458
        %v1460 = vpack.c.bf16 %v1386, %v1385
        %v1461 = vpack.c.bf16 %v1387, %v1387
        %v1462 = vpack.c.bf16 %v1389, %v1388
        %v1463 = vpack.c.bf16 %v1390, %v1390
        %v1464 = vpack.c.bf16 %v1392, %v1391
        %v1465 = vpack.c.bf16 %v1393, %v1393
        %v1466 = vpack.c.bf16 %v1395, %v1394
        %v1467 = vpack.c.bf16 %v1396, %v1396
        %s1468 = smul.u32 %s22, 12
        %s1469 = smul.addr %s1468, 4
        %s1470 = scalar_lea.vmem [#allocation2], %s1469
        %1471 = vst [vmem:[%s1470] sm:$0xff] %v1460
        %1472 = vst [vmem:[%s1470 + $0x8] sm:$0xf] %v1461
        %1473 = vst [vmem:[%s1470 + $0xc] sm:$0xff] %v1462
        %1474 = vst [vmem:[%s1470 + $0x14] sm:$0xf] %v1463
        %1475 = vst [vmem:[%s1470 + $0x18] sm:$0xff] %v1464
        %1476 = vst [vmem:[%s1470 + $0x20] sm:$0xf] %v1465
        %1477 = vst [vmem:[%s1470 + $0x24] sm:$0xff] %v1466
        %1478 = vst [vmem:[%s1470 + $0x2c] sm:$0xf] %v1467
        %v1479 = vld [vmem:[#allocation3] sm:$0xff]
        %v1480 = vld [vmem:[#allocation3 + $0x8] sm:$0xff]
        %v1481 = vld [vmem:[#allocation3 + $0x10] sm:$0xff]
        %v1482 = vld [vmem:[#allocation3 + $0x18] sm:$0xff]
        %v1483 = vadd.f32 %v1479, %v1419
        %v1484 = vadd.f32 %v1480, %v1423
        %v1485 = vadd.f32 %v1481, %v1427
        %v1486 = vadd.f32 %v1482, %v1431
        %vm1487 = vcmask 7168
        %1488 = vst.msk [vmem:[#allocation3] sm:$0xff] %vm1487, %v1483
        %1489 = vst.msk [vmem:[#allocation3 + $0x8] sm:$0xff] %vm1487, %v1484
        %1490 = vst.msk [vmem:[#allocation3 + $0x10] sm:$0xff] %vm1487, %v1485
        %1491 = vst.msk [vmem:[#allocation3 + $0x18] sm:$0xff] %vm1487, %v1486
        %v1492 = vld [vmem:[#allocation4] sm:$0xff]
        %v1493 = vld [vmem:[#allocation4 + $0x8] sm:$0xff]
        %v1494 = vld [vmem:[#allocation4 + $0x10] sm:$0xff]
        %v1495 = vld [vmem:[#allocation4 + $0x18] sm:$0xff]
        %v1496 = vadd.f32 %v1492, %v1447
        %v1497 = vadd.f32 %v1493, %v1451
        %v1498 = vadd.f32 %v1494, %v1455
        %v1499 = vadd.f32 %v1495, %v1459
        %1500 = vst.msk [vmem:[#allocation4] sm:$0xff] %vm1487, %v1496
        %1501 = vst.msk [vmem:[#allocation4 + $0x8] sm:$0xff] %vm1487, %v1497
        %1502 = vst.msk [vmem:[#allocation4 + $0x10] sm:$0xff] %vm1487, %v1498
        %1503 = vst.msk [vmem:[#allocation4 + $0x18] sm:$0xff] %vm1487, %v1499
      $region48: #{double_conv_forward.1} parent=43 // pred_fallthru
        _
      %p1504 = scmp.eq.s32.totalorder %s21, 1
      // Predicated region
      $region53: #{double_conv_forward.1} parent=43 // pred_check
        %p1505 = pneg %p1504
      $region54: #{double_conv_forward.1} parent=43 // pred_check_branch
        %1507 = sbr.rel (%p1505) target = $region56
      $region55: #{double_conv_forward.1} parent=43 // pred_region
        %v1508 = vld [vmem:[#allocation3] sm:$0xff]
        %v1509 = vld [vmem:[#allocation3 + $0x8] sm:$0xff]
        %v1510 = vld [vmem:[#allocation3 + $0x10] sm:$0xff]
        %v1511 = vld [vmem:[#allocation3 + $0x18] sm:$0xff]
        %v1512 = vmul.f32 %v1508, 0.001953125
        %v1513 = vmul.f32 %v1509, 0.001953125
        %v1514 = vmul.f32 %v1510, 0.001953125
        %v1515 = vmul.f32 %v1511, 0.001953125
        %v1516 = vld [vmem:[#allocation4] sm:$0xff]
        %v1517 = vld [vmem:[#allocation4 + $0x8] sm:$0xff]
        %v1518 = vld [vmem:[#allocation4 + $0x10] sm:$0xff]
        %v1519 = vld [vmem:[#allocation4 + $0x18] sm:$0xff]
        %v1520 = vmul.f32 %v1516, 0.001953125
        %v1521 = vmul.f32 %v1517, 0.001953125
        %v1522 = vmul.f32 %v1518, 0.001953125
        %v1523 = vmul.f32 %v1519, 0.001953125
        %v1524 = vmul.f32 %v1512, %v1512
        %v1525 = vmul.f32 %v1513, %v1513
        %v1526 = vmul.f32 %v1514, %v1514
        %v1527 = vmul.f32 %v1515, %v1515
        %v1528 = vsub.f32 %v1520, %v1524
        %v1529 = vsub.f32 %v1521, %v1525
        %v1530 = vsub.f32 %v1522, %v1526
        %v1531 = vsub.f32 %v1523, %v1527
        %v1532 = vld [vmem:[%s3] sm:$0xff]
        %v1533 = vld [vmem:[%s3 + $0x8] sm:$0xff]
        %v1534 = vld [vmem:[%s3 + $0x10] sm:$0xff]
        %v1535 = vld [vmem:[%s3 + $0x18] sm:$0xff]
        %v1536 = vadd.f32 %v1528, 1e-05
        %v1537 = vadd.f32 %v1529, 1e-05
        %v1538 = vadd.f32 %v1530, 1e-05
        %v1539 = vadd.f32 %v1531, 1e-05
        %v1540 = vrsqrt.pop %v1536
        %v1541 = vmul.f32 %v1540, %v1536
        %v1542 = vmul.f32 %v1541, %v1540
        %v1543 = vmul.f32 0.5, %v1542
        %v1544 = vsub.f32 1.5, %v1543
        %v1545 = vmul.f32 %v1540, %v1544
        %vm1546 = vweird.f32 %v1536
        %vm1547 = vweird.f32 %v1540
        %vm1548 = vmor %vm1546, %vm1547
        %v1549 = vsel %vm1548, %v1540, %v1545
        %v1550 = vrsqrt.pop %v1537
        %v1551 = vmul.f32 %v1550, %v1537
        %v1552 = vmul.f32 %v1551, %v1550
        %v1553 = vmul.f32 0.5, %v1552
        %v1554 = vsub.f32 1.5, %v1553
        %v1555 = vmul.f32 %v1550, %v1554
        %vm1556 = vweird.f32 %v1537
        %vm1557 = vweird.f32 %v1550
        %vm1558 = vmor %vm1556, %vm1557
        %v1559 = vsel %vm1558, %v1550, %v1555
        %v1560 = vrsqrt.pop %v1538
        %v1561 = vmul.f32 %v1560, %v1538
        %v1562 = vmul.f32 %v1561, %v1560
        %v1563 = vmul.f32 0.5, %v1562
        %v1564 = vsub.f32 1.5, %v1563
        %v1565 = vmul.f32 %v1560, %v1564
        %vm1566 = vweird.f32 %v1538
        %vm1567 = vweird.f32 %v1560
        %vm1568 = vmor %vm1566, %vm1567
        %v1569 = vsel %vm1568, %v1560, %v1565
        %v1570 = vrsqrt.pop %v1539
        %v1571 = vmul.f32 %v1570, %v1539
        %v1572 = vmul.f32 %v1571, %v1570
        %v1573 = vmul.f32 0.5, %v1572
        %v1574 = vsub.f32 1.5, %v1573
        %v1575 = vmul.f32 %v1570, %v1574
        %vm1576 = vweird.f32 %v1539
        %vm1577 = vweird.f32 %v1570
        %vm1578 = vmor %vm1576, %vm1577
        %v1579 = vsel %vm1578, %v1570, %v1575
        %1584 = vrot.lane.b32.xlu0 %v1549, 1
        %v1585 = vpop.permute.xlu0 %1584
        %1586 = vrot.lane.b32.xlu0 %v1559, 1
        %v1587 = vpop.permute.xlu0 %1586
        %1588 = vrot.lane.b32.xlu0 %v1569, 1
        %v1589 = vpop.permute.xlu0 %1588
        %1590 = vrot.lane.b32.xlu0 %v1579, 1
        %v1591 = vpop.permute.xlu0 %1590
        %v1596 = vmul.f32 %v1532, %v1585
        %v1597 = vmul.f32 %v1533, %v1587
        %v1598 = vmul.f32 %v1534, %v1589
        %v1599 = vmul.f32 %v1535, %v1591
        %1604 = vrot.lane.b32.xlu0 %v1596, 127
        %v1605 = vpop.permute.xlu0 %1604
        %1606 = vrot.lane.b32.xlu0 %v1597, 127
        %v1607 = vpop.permute.xlu0 %1606
        %1608 = vrot.lane.b32.xlu0 %v1598, 127
        %v1609 = vpop.permute.xlu0 %1608
        %1610 = vrot.lane.b32.xlu0 %v1599, 127
        %v1611 = vpop.permute.xlu0 %1610
        %v1616 = vmul.f32 %v1512, %v1605
        %v1617 = vmul.f32 %v1513, %v1607
        %v1618 = vmul.f32 %v1514, %v1609
        %v1619 = vmul.f32 %v1515, %v1611
        %1624 = vrot.lane.b32.xlu0 %v1616, 2
        %v1625 = vpop.permute.xlu0 %1624
        %1626 = vrot.lane.b32.xlu0 %v1617, 2
        %v1627 = vpop.permute.xlu0 %1626
        %1628 = vrot.lane.b32.xlu0 %v1618, 2
        %v1629 = vpop.permute.xlu0 %1628
        %1630 = vrot.lane.b32.xlu0 %v1619, 2
        %v1631 = vpop.permute.xlu0 %1630
        %v1636 = vsub.f32 %v1532, %v1625
        %v1637 = vsub.f32 %v1533, %v1627
        %v1638 = vsub.f32 %v1534, %v1629
        %v1639 = vsub.f32 %v1535, %v1631
        %s1640 = smul.u32 %s22, 12
        %s1641 = smul.addr %s1640, 4
        %s1642 = scalar_lea.vmem [#allocation2], %s1641
        %v1643 = vld [vmem:[%s1642] sm:$0xff]
        %v1644 = vld [vmem:[%s1642 + $0x8] sm:$0xf]
        %v1645 = vld [vmem:[%s1642 + $0xc] sm:$0xff]
        %v1646 = vld [vmem:[%s1642 + $0x14] sm:$0xf]
        %v1647 = vld [vmem:[%s1642 + $0x18] sm:$0xff]
        %v1648 = vld [vmem:[%s1642 + $0x20] sm:$0xf]
        %v1649 = vld [vmem:[%s1642 + $0x24] sm:$0xff]
        %v1650 = vld [vmem:[%s1642 + $0x2c] sm:$0xf]
        %v1651 = vunpack.c.l.bf16 %v1643
        %v1652 = vunpack.c.h.bf16 %v1643
        %v1653 = vunpack.c.l.bf16 %v1644
        %v1654 = vunpack.c.l.bf16 %v1645
        %v1655 = vunpack.c.h.bf16 %v1645
        %v1656 = vunpack.c.l.bf16 %v1646
        %v1657 = vunpack.c.l.bf16 %v1647
        %v1658 = vunpack.c.h.bf16 %v1647
        %v1659 = vunpack.c.l.bf16 %v1648
        %v1660 = vunpack.c.l.bf16 %v1649
        %v1661 = vunpack.c.h.bf16 %v1649
        %v1662 = vunpack.c.l.bf16 %v1650
        %1663 = vset.pattern.permute.xlu0 1
        %1664 = vperm.xlu0 %1663, %v1596
        %v1665 = vpop.permute.xlu0 %1664
        %1667 = vset.pattern.permute.xlu0 1
        %1668 = vperm.xlu0 %1667, %v1597
        %v1669 = vpop.permute.xlu0 %1668
        %1671 = vset.pattern.permute.xlu0 1
        %1672 = vperm.xlu0 %1671, %v1598
        %v1673 = vpop.permute.xlu0 %1672
        %1675 = vset.pattern.permute.xlu0 1
        %1676 = vperm.xlu0 %1675, %v1599
        %v1677 = vpop.permute.xlu0 %1676
        %v1679 = vmul.f32 %v1651, %v1665
        %v1680 = vmul.f32 %v1652, %v1665
        %v1681 = vmul.f32 %v1653, %v1665
        %v1682 = vmul.f32 %v1654, %v1669
        %v1683 = vmul.f32 %v1655, %v1669
        %v1684 = vmul.f32 %v1656, %v1669
        %v1685 = vmul.f32 %v1657, %v1673
        %v1686 = vmul.f32 %v1658, %v1673
        %v1687 = vmul.f32 %v1659, %v1673
        %v1688 = vmul.f32 %v1660, %v1677
        %v1689 = vmul.f32 %v1661, %v1677
        %v1690 = vmul.f32 %v1662, %v1677
        %1692 = vset.pattern.permute.xlu0 2
        %1693 = vperm.xlu0 %1692, %v1636
        %v1694 = vpop.permute.xlu0 %1693
        %1697 = vset.pattern.permute.xlu0 2
        %1698 = vperm.xlu0 %1697, %v1637
        %v1699 = vpop.permute.xlu0 %1698
        %1702 = vset.pattern.permute.xlu0 2
        %1703 = vperm.xlu0 %1702, %v1638
        %v1704 = vpop.permute.xlu0 %1703
        %1707 = vset.pattern.permute.xlu0 2
        %1708 = vperm.xlu0 %1707, %v1639
        %v1709 = vpop.permute.xlu0 %1708
        %v1711 = vadd.f32 %v1679, %v1694
        %v1712 = vadd.f32 %v1680, %v1694
        %v1713 = vadd.f32 %v1681, %v1694
        %v1714 = vadd.f32 %v1682, %v1699
        %v1715 = vadd.f32 %v1683, %v1699
        %v1716 = vadd.f32 %v1684, %v1699
        %v1717 = vadd.f32 %v1685, %v1704
        %v1718 = vadd.f32 %v1686, %v1704
        %v1719 = vadd.f32 %v1687, %v1704
        %v1720 = vadd.f32 %v1688, %v1709
        %v1721 = vadd.f32 %v1689, %v1709
        %v1722 = vadd.f32 %v1690, %v1709
        %v1723 = vmax.f32 %v1711, 0.0
        %v1724 = vmax.f32 %v1712, 0.0
        %v1725 = vmax.f32 %v1713, 0.0
        %v1726 = vmax.f32 %v1714, 0.0
        %v1727 = vmax.f32 %v1715, 0.0
        %v1728 = vmax.f32 %v1716, 0.0
        %v1729 = vmax.f32 %v1717, 0.0
        %v1730 = vmax.f32 %v1718, 0.0
        %v1731 = vmax.f32 %v1719, 0.0
        %v1732 = vmax.f32 %v1720, 0.0
        %v1733 = vmax.f32 %v1721, 0.0
        %v1734 = vmax.f32 %v1722, 0.0
        %v1736 = vperm.slane %v284, 0
        %v1737 = vperm.slane %v284, 1
        %v1738 = vperm.slane %v284, 2
        %v1742 = vmul.f32 %v1723, %v1736
        %v1743 = vmul.f32 %v1724, %v1737
        %v1744 = vmul.f32 %v1725, %v1738
        %v1745 = vmul.f32 %v1726, %v1736
        %v1746 = vmul.f32 %v1727, %v1737
        %v1747 = vmul.f32 %v1728, %v1738
        %v1748 = vmul.f32 %v1729, %v1736
        %v1749 = vmul.f32 %v1730, %v1737
        %v1750 = vmul.f32 %v1731, %v1738
        %v1751 = vmul.f32 %v1732, %v1736
        %v1752 = vmul.f32 %v1733, %v1737
        %v1753 = vmul.f32 %v1734, %v1738
        %v1754 = vpack.c.bf16 %v1743, %v1742
        %v1755 = vpack.c.bf16 %v1744, %v1744
        %v1756 = vpack.c.bf16 %v1746, %v1745
        %v1757 = vpack.c.bf16 %v1747, %v1747
        %v1758 = vpack.c.bf16 %v1749, %v1748
        %v1759 = vpack.c.bf16 %v1750, %v1750
        %v1760 = vpack.c.bf16 %v1752, %v1751
        %v1761 = vpack.c.bf16 %v1753, %v1753
        %1762 = vst [vmem:[#allocation6 + $0x4] sm:$0xff] %v1754
        %1763 = vst [vmem:[#allocation6 + $0xc] sm:$0xf] %v1755
        %1764 = vst [vmem:[#allocation6 + $0x18] sm:$0xff] %v1756
        %1765 = vst [vmem:[#allocation6 + $0x20] sm:$0xf] %v1757
        %1766 = vst [vmem:[#allocation6 + $0x2c] sm:$0xff] %v1758
        %1767 = vst [vmem:[#allocation6 + $0x34] sm:$0xf] %v1759
        %1768 = vst [vmem:[#allocation6 + $0x40] sm:$0xff] %v1760
        %1769 = vst [vmem:[#allocation6 + $0x48] sm:$0xf] %v1761
        %vm1770 = vcmask 1044328
        %1771 = vst.msk [vmem:[#allocation6] sm:$0xf] %vm1770, 0
        %1772 = vst.msk [vmem:[#allocation6 + $0x14] sm:$0xf] %vm1770, 0
        %1773 = vst.msk [vmem:[#allocation6 + $0x28] sm:$0xf] %vm1770, 0
        %1774 = vst.msk [vmem:[#allocation6 + $0x3c] sm:$0xf] %vm1770, 0
        %vm1775 = vcmask 150528
        %1776 = vst.msk [vmem:[#allocation6 + $0x10] sm:$0xf] %vm1775, 0
        %1777 = vst.msk [vmem:[#allocation6 + $0x24] sm:$0xf] %vm1775, 0
        %1778 = vst.msk [vmem:[#allocation6 + $0x38] sm:$0xf] %vm1775, 0
        %1779 = vst.msk [vmem:[#allocation6 + $0x4c] sm:$0xf] %vm1775, 0
        %v1780 = vld [vmem:[#allocation6] sm:$0xff]
        %v1781 = vld [vmem:[#allocation6 + $0x8] sm:$0xff]
        %v1782 = vld [vmem:[#allocation6 + $0x14] sm:$0xff]
        %v1783 = vld [vmem:[#allocation6 + $0x1c] sm:$0xff]
        %v1784 = vld [vmem:[#allocation6 + $0x28] sm:$0xff]
        %v1785 = vld [vmem:[#allocation6 + $0x30] sm:$0xff]
        %v1786 = vld [vmem:[#allocation6 + $0x3c] sm:$0xff]
        %v1787 = vld [vmem:[#allocation6 + $0x44] sm:$0xff]
        %1796 = vrot.lane.b32.xlu0 %v1780, 19
        %v1797 = vpop.permute.xlu0 %1796
        %1798 = vrot.lane.b32.xlu0 %v1781, 19
        %v1799 = vpop.permute.xlu0 %1798
        %1800 = vrot.lane.b32.xlu0 %v1782, 19
        %v1801 = vpop.permute.xlu0 %1800
        %1802 = vrot.lane.b32.xlu0 %v1783, 19
        %v1803 = vpop.permute.xlu0 %1802
        %1804 = vrot.lane.b32.xlu0 %v1784, 19
        %v1805 = vpop.permute.xlu0 %1804
        %1806 = vrot.lane.b32.xlu0 %v1785, 19
        %v1807 = vpop.permute.xlu0 %1806
        %1808 = vrot.lane.b32.xlu0 %v1786, 19
        %v1809 = vpop.permute.xlu0 %1808
        %1810 = vrot.lane.b32.xlu0 %v1787, 19
        %v1811 = vpop.permute.xlu0 %1810
        %v1812 = vrot.slane %v1797, 4
        %v1813 = vrot.slane %v1799, 4
        %v1814 = vrot.slane %v1801, 4
        %v1815 = vrot.slane %v1803, 4
        %v1816 = vrot.slane %v1805, 4
        %v1817 = vrot.slane %v1807, 4
        %v1818 = vrot.slane %v1809, 4
        %v1819 = vrot.slane %v1811, 4
        %vm1820 = vcmask 1043456
        %v1821 = vsel %vm1820, %v1812, %v1813
        %vm1822 = vcmask 154624
        %v1823 = vsel %vm1822, %v1797, %v1821
        %v1824 = vsel %vm1822, %v1799, %v1813
        %v1825 = vsel %vm1820, %v1814, %v1815
        %v1826 = vsel %vm1822, %v1801, %v1825
        %v1827 = vsel %vm1822, %v1803, %v1815
        %v1828 = vsel %vm1820, %v1816, %v1817
        %v1829 = vsel %vm1822, %v1805, %v1828
        %v1830 = vsel %vm1822, %v1807, %v1817
        %v1831 = vsel %vm1820, %v1818, %v1819
        %v1832 = vsel %vm1822, %v1809, %v1831
        %v1833 = vsel %vm1822, %v1811, %v1819
        %1842 = vst [vmem:[#allocation7] sm:$0xff] %v1823
        %1843 = vst [vmem:[#allocation7 + $0x8] sm:$0xf] %v1824
        %1844 = vst [vmem:[#allocation7 + $0xc] sm:$0xff] %v1826
        %1845 = vst [vmem:[#allocation7 + $0x14] sm:$0xf] %v1827
        %1846 = vst [vmem:[#allocation7 + $0x18] sm:$0xff] %v1829
        %1847 = vst [vmem:[#allocation7 + $0x20] sm:$0xf] %v1830
        %1848 = vst [vmem:[#allocation7 + $0x24] sm:$0xff] %v1832
        %1849 = vst [vmem:[#allocation7 + $0x2c] sm:$0xf] %v1833
        %v1850 = vld [vmem:[#allocation6] sm:$0xff]
        %v1851 = vld [vmem:[#allocation6 + $0x8] sm:$0xff]
        %v1852 = vld [vmem:[#allocation6 + $0x14] sm:$0xff]
        %v1853 = vld [vmem:[#allocation6 + $0x1c] sm:$0xff]
        %v1854 = vld [vmem:[#allocation6 + $0x28] sm:$0xff]
        %v1855 = vld [vmem:[#allocation6 + $0x30] sm:$0xff]
        %v1856 = vld [vmem:[#allocation6 + $0x3c] sm:$0xff]
        %v1857 = vld [vmem:[#allocation6 + $0x44] sm:$0xff]
        %1866 = vrot.lane.b32.xlu0 %v1850, 18
        %v1867 = vpop.permute.xlu0 %1866
        %1868 = vrot.lane.b32.xlu0 %v1851, 18
        %v1869 = vpop.permute.xlu0 %1868
        %1870 = vrot.lane.b32.xlu0 %v1852, 18
        %v1871 = vpop.permute.xlu0 %1870
        %1872 = vrot.lane.b32.xlu0 %v1853, 18
        %v1873 = vpop.permute.xlu0 %1872
        %1874 = vrot.lane.b32.xlu0 %v1854, 18
        %v1875 = vpop.permute.xlu0 %1874
        %1876 = vrot.lane.b32.xlu0 %v1855, 18
        %v1877 = vpop.permute.xlu0 %1876
        %1878 = vrot.lane.b32.xlu0 %v1856, 18
        %v1879 = vpop.permute.xlu0 %1878
        %1880 = vrot.lane.b32.xlu0 %v1857, 18
        %v1881 = vpop.permute.xlu0 %1880
        %v1882 = vrot.slane %v1867, 4
        %v1883 = vrot.slane %v1869, 4
        %v1884 = vrot.slane %v1871, 4
        %v1885 = vrot.slane %v1873, 4
        %v1886 = vrot.slane %v1875, 4
        %v1887 = vrot.slane %v1877, 4
        %v1888 = vrot.slane %v1879, 4
        %v1889 = vrot.slane %v1881, 4
        %v1890 = vsel %vm1820, %v1882, %v1883
        %vm1891 = vcmask 146432
        %v1892 = vsel %vm1891, %v1867, %v1890
        %v1893 = vsel %vm1891, %v1869, %v1883
        %v1894 = vsel %vm1820, %v1884, %v1885
        %v1895 = vsel %vm1891, %v1871, %v1894
        %v1896 = vsel %vm1891, %v1873, %v1885
        %v1897 = vsel %vm1820, %v1886, %v1887
        %v1898 = vsel %vm1891, %v1875, %v1897
        %v1899 = vsel %vm1891, %v1877, %v1887
        %v1900 = vsel %vm1820, %v1888, %v1889
        %v1901 = vsel %vm1891, %v1879, %v1900
        %v1902 = vsel %vm1891, %v1881, %v1889
        %1911 = vst [vmem:[#allocation7 + $0x30] sm:$0xff] %v1892
        %1912 = vst [vmem:[#allocation7 + $0x38] sm:$0xf] %v1893
        %1913 = vst [vmem:[#allocation7 + $0x3c] sm:$0xff] %v1895
        %1914 = vst [vmem:[#allocation7 + $0x44] sm:$0xf] %v1896
        %1915 = vst [vmem:[#allocation7 + $0x48] sm:$0xff] %v1898
        %1916 = vst [vmem:[#allocation7 + $0x50] sm:$0xf] %v1899
        %1917 = vst [vmem:[#allocation7 + $0x54] sm:$0xff] %v1901
        %1918 = vst [vmem:[#allocation7 + $0x5c] sm:$0xf] %v1902
        %v1919 = vld [vmem:[#allocation6] sm:$0xff]
        %v1920 = vld [vmem:[#allocation6 + $0x8] sm:$0xff]
        %v1921 = vld [vmem:[#allocation6 + $0x14] sm:$0xff]
        %v1922 = vld [vmem:[#allocation6 + $0x1c] sm:$0xff]
        %v1923 = vld [vmem:[#allocation6 + $0x28] sm:$0xff]
        %v1924 = vld [vmem:[#allocation6 + $0x30] sm:$0xff]
        %v1925 = vld [vmem:[#allocation6 + $0x3c] sm:$0xff]
        %v1926 = vld [vmem:[#allocation6 + $0x44] sm:$0xff]
        %1935 = vrot.lane.b32.xlu0 %v1919, 17
        %v1936 = vpop.permute.xlu0 %1935
        %1937 = vrot.lane.b32.xlu0 %v1920, 17
        %v1938 = vpop.permute.xlu0 %1937
        %1939 = vrot.lane.b32.xlu0 %v1921, 17
        %v1940 = vpop.permute.xlu0 %1939
        %1941 = vrot.lane.b32.xlu0 %v1922, 17
        %v1942 = vpop.permute.xlu0 %1941
        %1943 = vrot.lane.b32.xlu0 %v1923, 17
        %v1944 = vpop.permute.xlu0 %1943
        %1945 = vrot.lane.b32.xlu0 %v1924, 17
        %v1946 = vpop.permute.xlu0 %1945
        %1947 = vrot.lane.b32.xlu0 %v1925, 17
        %v1948 = vpop.permute.xlu0 %1947
        %1949 = vrot.lane.b32.xlu0 %v1926, 17
        %v1950 = vpop.permute.xlu0 %1949
        %v1951 = vrot.slane %v1936, 4
        %v1952 = vrot.slane %v1938, 4
        %v1953 = vrot.slane %v1940, 4
        %v1954 = vrot.slane %v1942, 4
        %v1955 = vrot.slane %v1944, 4
        %v1956 = vrot.slane %v1946, 4
        %v1957 = vrot.slane %v1948, 4
        %v1958 = vrot.slane %v1950, 4
        %v1959 = vsel %vm1820, %v1951, %v1952
        %vm1960 = vcmask 138240
        %v1961 = vsel %vm1960, %v1936, %v1959
        %v1962 = vsel %vm1960, %v1938, %v1952
        %v1963 = vsel %vm1820, %v1953, %v1954
        %v1964 = vsel %vm1960, %v1940, %v1963
        %v1965 = vsel %vm1960, %v1942, %v1954
        %v1966 = vsel %vm1820, %v1955, %v1956
        %v1967 = vsel %vm1960, %v1944, %v1966
        %v1968 = vsel %vm1960, %v1946, %v1956
        %v1969 = vsel %vm1820, %v1957, %v1958
        %v1970 = vsel %vm1960, %v1948, %v1969
        %v1971 = vsel %vm1960, %v1950, %v1958
        %1980 = vst [vmem:[#allocation7 + $0x60] sm:$0xff] %v1961
        %1981 = vst [vmem:[#allocation7 + $0x68] sm:$0xf] %v1962
        %1982 = vst [vmem:[#allocation7 + $0x6c] sm:$0xff] %v1964
        %1983 = vst [vmem:[#allocation7 + $0x74] sm:$0xf] %v1965
        %1984 = vst [vmem:[#allocation7 + $0x78] sm:$0xff] %v1967
        %1985 = vst [vmem:[#allocation7 + $0x80] sm:$0xf] %v1968
        %1986 = vst [vmem:[#allocation7 + $0x84] sm:$0xff] %v1970
        %1987 = vst [vmem:[#allocation7 + $0x8c] sm:$0xf] %v1971
        %v1988 = vld [vmem:[#allocation6] sm:$0xff]
        %v1989 = vld [vmem:[#allocation6 + $0x8] sm:$0xff]
        %v1990 = vld [vmem:[#allocation6 + $0x14] sm:$0xff]
        %v1991 = vld [vmem:[#allocation6 + $0x1c] sm:$0xff]
        %v1992 = vld [vmem:[#allocation6 + $0x28] sm:$0xff]
        %v1993 = vld [vmem:[#allocation6 + $0x30] sm:$0xff]
        %v1994 = vld [vmem:[#allocation6 + $0x3c] sm:$0xff]
        %v1995 = vld [vmem:[#allocation6 + $0x44] sm:$0xff]
        %2004 = vrot.lane.b32.xlu0 %v1988, 1
        %v2005 = vpop.permute.xlu0 %2004
        %2006 = vrot.lane.b32.xlu0 %v1989, 1
        %v2007 = vpop.permute.xlu0 %2006
        %2008 = vrot.lane.b32.xlu0 %v1990, 1
        %v2009 = vpop.permute.xlu0 %2008
        %2010 = vrot.lane.b32.xlu0 %v1991, 1
        %v2011 = vpop.permute.xlu0 %2010
        %2012 = vrot.lane.b32.xlu0 %v1992, 1
        %v2013 = vpop.permute.xlu0 %2012
        %2014 = vrot.lane.b32.xlu0 %v1993, 1
        %v2015 = vpop.permute.xlu0 %2014
        %2016 = vrot.lane.b32.xlu0 %v1994, 1
        %v2017 = vpop.permute.xlu0 %2016
        %2018 = vrot.lane.b32.xlu0 %v1995, 1
        %v2019 = vpop.permute.xlu0 %2018
        %v2020 = vrot.slane %v2005, 4
        %v2021 = vrot.slane %v2007, 4
        %v2022 = vrot.slane %v2009, 4
        %v2023 = vrot.slane %v2011, 4
        %v2024 = vrot.slane %v2013, 4
        %v2025 = vrot.slane %v2015, 4
        %v2026 = vrot.slane %v2017, 4
        %v2027 = vrot.slane %v2019, 4
        %v2028 = vsel %vm1820, %v2020, %v2021
        %vm2029 = vcmask 7168
        %v2030 = vsel %vm2029, %v2005, %v2028
        %v2031 = vsel %vm2029, %v2007, %v2021
        %v2032 = vsel %vm1820, %v2022, %v2023
        %v2033 = vsel %vm2029, %v2009, %v2032
        %v2034 = vsel %vm2029, %v2011, %v2023
        %v2035 = vsel %vm1820, %v2024, %v2025
        %v2036 = vsel %vm2029, %v2013, %v2035
        %v2037 = vsel %vm2029, %v2015, %v2025
        %v2038 = vsel %vm1820, %v2026, %v2027
        %v2039 = vsel %vm2029, %v2017, %v2038
        %v2040 = vsel %vm2029, %v2019, %v2027
        %2049 = vst [vmem:[#allocation7 + $0x90] sm:$0xff] %v2030
        %2050 = vst [vmem:[#allocation7 + $0x98] sm:$0xf] %v2031
        %2051 = vst [vmem:[#allocation7 + $0x9c] sm:$0xff] %v2033
        %2052 = vst [vmem:[#allocation7 + $0xa4] sm:$0xf] %v2034
        %2053 = vst [vmem:[#allocation7 + $0xa8] sm:$0xff] %v2036
        %2054 = vst [vmem:[#allocation7 + $0xb0] sm:$0xf] %v2037
        %2055 = vst [vmem:[#allocation7 + $0xb4] sm:$0xff] %v2039
        %2056 = vst [vmem:[#allocation7 + $0xbc] sm:$0xf] %v2040
        %v2057 = vld [vmem:[#allocation6 + $0x4] sm:$0xff]
        %v2058 = vld [vmem:[#allocation6 + $0xc] sm:$0xf]
        %v2059 = vld [vmem:[#allocation6 + $0x18] sm:$0xff]
        %v2060 = vld [vmem:[#allocation6 + $0x20] sm:$0xf]
        %v2061 = vld [vmem:[#allocation6 + $0x2c] sm:$0xff]
        %v2062 = vld [vmem:[#allocation6 + $0x34] sm:$0xf]
        %v2063 = vld [vmem:[#allocation6 + $0x40] sm:$0xff]
        %v2064 = vld [vmem:[#allocation6 + $0x48] sm:$0xf]
        %2065 = vst [vmem:[#allocation7 + $0xc0] sm:$0xff] %v2057
        %2066 = vst [vmem:[#allocation7 + $0xc8] sm:$0xf] %v2058
        %2067 = vst [vmem:[#allocation7 + $0xcc] sm:$0xff] %v2059
        %2068 = vst [vmem:[#allocation7 + $0xd4] sm:$0xf] %v2060
        %2069 = vst [vmem:[#allocation7 + $0xd8] sm:$0xff] %v2061
        %2070 = vst [vmem:[#allocation7 + $0xe0] sm:$0xf] %v2062
        %2071 = vst [vmem:[#allocation7 + $0xe4] sm:$0xff] %v2063
        %2072 = vst [vmem:[#allocation7 + $0xec] sm:$0xf] %v2064
        %v2073 = vld [vmem:[#allocation6 + $0x4] sm:$0xff]
        %v2074 = vld [vmem:[#allocation6 + $0xc] sm:$0xff]
        %v2075 = vld [vmem:[#allocation6 + $0x18] sm:$0xff]
        %v2076 = vld [vmem:[#allocation6 + $0x20] sm:$0xff]
        %v2077 = vld [vmem:[#allocation6 + $0x2c] sm:$0xff]
        %v2078 = vld [vmem:[#allocation6 + $0x34] sm:$0xff]
        %v2079 = vld [vmem:[#allocation6 + $0x40] sm:$0xff]
        %v2080 = vld [vmem:[#allocation6 + $0x48] sm:$0xff]
        %2089 = vrot.lane.b32.xlu0 %v2073, 127
        %v2090 = vpop.permute.xlu0 %2089
        %2091 = vrot.lane.b32.xlu0 %v2074, 127
        %v2092 = vpop.permute.xlu0 %2091
        %2093 = vrot.lane.b32.xlu0 %v2075, 127
        %v2094 = vpop.permute.xlu0 %2093
        %2095 = vrot.lane.b32.xlu0 %v2076, 127
        %v2096 = vpop.permute.xlu0 %2095
        %2097 = vrot.lane.b32.xlu0 %v2077, 127
        %v2098 = vpop.permute.xlu0 %2097
        %2099 = vrot.lane.b32.xlu0 %v2078, 127
        %v2100 = vpop.permute.xlu0 %2099
        %2101 = vrot.lane.b32.xlu0 %v2079, 127
        %v2102 = vpop.permute.xlu0 %2101
        %2103 = vrot.lane.b32.xlu0 %v2080, 127
        %v2104 = vpop.permute.xlu0 %2103
        %v2105 = vrot.slane %v2090, 4
        %v2106 = vrot.slane %v2092, 4
        %v2107 = vrot.slane %v2094, 4
        %v2108 = vrot.slane %v2096, 4
        %v2109 = vrot.slane %v2098, 4
        %v2110 = vrot.slane %v2100, 4
        %v2111 = vrot.slane %v2102, 4
        %v2112 = vrot.slane %v2104, 4
        %v2113 = vsel %vm1820, %v2105, %v2106
        %vm2114 = vcmask 1039360
        %v2115 = vsel %vm2114, %v2090, %v2113
        %v2116 = vsel %vm2114, %v2092, %v2106
        %v2117 = vsel %vm1820, %v2107, %v2108
        %v2118 = vsel %vm2114, %v2094, %v2117
        %v2119 = vsel %vm2114, %v2096, %v2108
        %v2120 = vsel %vm1820, %v2109, %v2110
        %v2121 = vsel %vm2114, %v2098, %v2120
        %v2122 = vsel %vm2114, %v2100, %v2110
        %v2123 = vsel %vm1820, %v2111, %v2112
        %v2124 = vsel %vm2114, %v2102, %v2123
        %v2125 = vsel %vm2114, %v2104, %v2112
        %2134 = vst [vmem:[#allocation7 + $0xf0] sm:$0xff] %v2115
        %2135 = vst [vmem:[#allocation7 + $0xf8] sm:$0xf] %v2116
        %2136 = vst [vmem:[#allocation7 + $0xfc] sm:$0xff] %v2118
        %2137 = vst [vmem:[#allocation7 + $0x104] sm:$0xf] %v2119
        %2138 = vst [vmem:[#allocation7 + $0x108] sm:$0xff] %v2121
        %2139 = vst [vmem:[#allocation7 + $0x110] sm:$0xf] %v2122
        %2140 = vst [vmem:[#allocation7 + $0x114] sm:$0xff] %v2124
        %2141 = vst [vmem:[#allocation7 + $0x11c] sm:$0xf] %v2125
        %v2142 = vld [vmem:[#allocation6 + $0x4] sm:$0xff]
        %v2143 = vld [vmem:[#allocation6 + $0xc] sm:$0xff]
        %v2144 = vld [vmem:[#allocation6 + $0x18] sm:$0xff]
        %v2145 = vld [vmem:[#allocation6 + $0x20] sm:$0xff]
        %v2146 = vld [vmem:[#allocation6 + $0x2c] sm:$0xff]
        %v2147 = vld [vmem:[#allocation6 + $0x34] sm:$0xff]
        %v2148 = vld [vmem:[#allocation6 + $0x40] sm:$0xff]
        %v2149 = vld [vmem:[#allocation6 + $0x48] sm:$0xff]
        %2158 = vrot.lane.b32.xlu0 %v2142, 111
        %v2159 = vpop.permute.xlu0 %2158
        %2160 = vrot.lane.b32.xlu0 %v2143, 111
        %v2161 = vpop.permute.xlu0 %2160
        %2162 = vrot.lane.b32.xlu0 %v2144, 111
        %v2163 = vpop.permute.xlu0 %2162
        %2164 = vrot.lane.b32.xlu0 %v2145, 111
        %v2165 = vpop.permute.xlu0 %2164
        %2166 = vrot.lane.b32.xlu0 %v2146, 111
        %v2167 = vpop.permute.xlu0 %2166
        %2168 = vrot.lane.b32.xlu0 %v2147, 111
        %v2169 = vpop.permute.xlu0 %2168
        %2170 = vrot.lane.b32.xlu0 %v2148, 111
        %v2171 = vpop.permute.xlu0 %2170
        %2172 = vrot.lane.b32.xlu0 %v2149, 111
        %v2173 = vpop.permute.xlu0 %2172
        %v2174 = vrot.slane %v2159, 4
        %v2175 = vrot.slane %v2161, 4
        %v2176 = vrot.slane %v2163, 4
        %v2177 = vrot.slane %v2165, 4
        %v2178 = vrot.slane %v2167, 4
        %v2179 = vrot.slane %v2169, 4
        %v2180 = vrot.slane %v2171, 4
        %v2181 = vrot.slane %v2173, 4
        %v2182 = vsel %vm1820, %v2174, %v2175
        %vm2183 = vcmask 908288
        %v2184 = vsel %vm2183, %v2159, %v2182
        %v2185 = vsel %vm2183, %v2161, %v2175
        %v2186 = vsel %vm1820, %v2176, %v2177
        %v2187 = vsel %vm2183, %v2163, %v2186
        %v2188 = vsel %vm2183, %v2165, %v2177
        %v2189 = vsel %vm1820, %v2178, %v2179
        %v2190 = vsel %vm2183, %v2167, %v2189
        %v2191 = vsel %vm2183, %v2169, %v2179
        %v2192 = vsel %vm1820, %v2180, %v2181
        %v2193 = vsel %vm2183, %v2171, %v2192
        %v2194 = vsel %vm2183, %v2173, %v2181
        %2203 = vst [vmem:[#allocation7 + $0x120] sm:$0xff] %v2184
        %2204 = vst [vmem:[#allocation7 + $0x128] sm:$0xf] %v2185
        %2205 = vst [vmem:[#allocation7 + $0x12c] sm:$0xff] %v2187
        %2206 = vst [vmem:[#allocation7 + $0x134] sm:$0xf] %v2188
        %2207 = vst [vmem:[#allocation7 + $0x138] sm:$0xff] %v2190
        %2208 = vst [vmem:[#allocation7 + $0x140] sm:$0xf] %v2191
        %2209 = vst [vmem:[#allocation7 + $0x144] sm:$0xff] %v2193
        %2210 = vst [vmem:[#allocation7 + $0x14c] sm:$0xf] %v2194
        %v2211 = vld [vmem:[#allocation6 + $0x4] sm:$0xff]
        %v2212 = vld [vmem:[#allocation6 + $0xc] sm:$0xff]
        %v2213 = vld [vmem:[#allocation6 + $0x18] sm:$0xff]
        %v2214 = vld [vmem:[#allocation6 + $0x20] sm:$0xff]
        %v2215 = vld [vmem:[#allocation6 + $0x2c] sm:$0xff]
        %v2216 = vld [vmem:[#allocation6 + $0x34] sm:$0xff]
        %v2217 = vld [vmem:[#allocation6 + $0x40] sm:$0xff]
        %v2218 = vld [vmem:[#allocation6 + $0x48] sm:$0xff]
        %2227 = vrot.lane.b32.xlu0 %v2211, 110
        %v2228 = vpop.permute.xlu0 %2227
        %2229 = vrot.lane.b32.xlu0 %v2212, 110
        %v2230 = vpop.permute.xlu0 %2229
        %2231 = vrot.lane.b32.xlu0 %v2213, 110
        %v2232 = vpop.permute.xlu0 %2231
        %2233 = vrot.lane.b32.xlu0 %v2214, 110
        %v2234 = vpop.permute.xlu0 %2233
        %2235 = vrot.lane.b32.xlu0 %v2215, 110
        %v2236 = vpop.permute.xlu0 %2235
        %2237 = vrot.lane.b32.xlu0 %v2216, 110
        %v2238 = vpop.permute.xlu0 %2237
        %2239 = vrot.lane.b32.xlu0 %v2217, 110
        %v2240 = vpop.permute.xlu0 %2239
        %2241 = vrot.lane.b32.xlu0 %v2218, 110
        %v2242 = vpop.permute.xlu0 %2241
        %v2243 = vrot.slane %v2228, 4
        %v2244 = vrot.slane %v2230, 4
        %v2245 = vrot.slane %v2232, 4
        %v2246 = vrot.slane %v2234, 4
        %v2247 = vrot.slane %v2236, 4
        %v2248 = vrot.slane %v2238, 4
        %v2249 = vrot.slane %v2240, 4
        %v2250 = vrot.slane %v2242, 4
        %v2251 = vsel %vm1820, %v2243, %v2244
        %vm2252 = vcmask 900096
        %v2253 = vsel %vm2252, %v2228, %v2251
        %v2254 = vsel %vm2252, %v2230, %v2244
        %v2255 = vsel %vm1820, %v2245, %v2246
        %v2256 = vsel %vm2252, %v2232, %v2255
        %v2257 = vsel %vm2252, %v2234, %v2246
        %v2258 = vsel %vm1820, %v2247, %v2248
        %v2259 = vsel %vm2252, %v2236, %v2258
        %v2260 = vsel %vm2252, %v2238, %v2248
        %v2261 = vsel %vm1820, %v2249, %v2250
        %v2262 = vsel %vm2252, %v2240, %v2261
        %v2263 = vsel %vm2252, %v2242, %v2250
        %2272 = vst [vmem:[#allocation7 + $0x150] sm:$0xff] %v2253
        %2273 = vst [vmem:[#allocation7 + $0x158] sm:$0xf] %v2254
        %2274 = vst [vmem:[#allocation7 + $0x15c] sm:$0xff] %v2256
        %2275 = vst [vmem:[#allocation7 + $0x164] sm:$0xf] %v2257
        %2276 = vst [vmem:[#allocation7 + $0x168] sm:$0xff] %v2259
        %2277 = vst [vmem:[#allocation7 + $0x170] sm:$0xf] %v2260
        %2278 = vst [vmem:[#allocation7 + $0x174] sm:$0xff] %v2262
        %2279 = vst [vmem:[#allocation7 + $0x17c] sm:$0xf] %v2263
        %v2280 = vld [vmem:[#allocation6 + $0x4] sm:$0xff]
        %v2281 = vld [vmem:[#allocation6 + $0xc] sm:$0xff]
        %v2282 = vld [vmem:[#allocation6 + $0x18] sm:$0xff]
        %v2283 = vld [vmem:[#allocation6 + $0x20] sm:$0xff]
        %v2284 = vld [vmem:[#allocation6 + $0x2c] sm:$0xff]
        %v2285 = vld [vmem:[#allocation6 + $0x34] sm:$0xff]
        %v2286 = vld [vmem:[#allocation6 + $0x40] sm:$0xff]
        %v2287 = vld [vmem:[#allocation6 + $0x48] sm:$0xff]
        %2296 = vrot.lane.b32.xlu0 %v2280, 109
        %v2297 = vpop.permute.xlu0 %2296
        %2298 = vrot.lane.b32.xlu0 %v2281, 109
        %v2299 = vpop.permute.xlu0 %2298
        %2300 = vrot.lane.b32.xlu0 %v2282, 109
        %v2301 = vpop.permute.xlu0 %2300
        %2302 = vrot.lane.b32.xlu0 %v2283, 109
        %v2303 = vpop.permute.xlu0 %2302
        %2304 = vrot.lane.b32.xlu0 %v2284, 109
        %v2305 = vpop.permute.xlu0 %2304
        %2306 = vrot.lane.b32.xlu0 %v2285, 109
        %v2307 = vpop.permute.xlu0 %2306
        %2308 = vrot.lane.b32.xlu0 %v2286, 109
        %v2309 = vpop.permute.xlu0 %2308
        %2310 = vrot.lane.b32.xlu0 %v2287, 109
        %v2311 = vpop.permute.xlu0 %2310
        %v2312 = vrot.slane %v2297, 4
        %v2313 = vrot.slane %v2299, 4
        %v2314 = vrot.slane %v2301, 4
        %v2315 = vrot.slane %v2303, 4
        %v2316 = vrot.slane %v2305, 4
        %v2317 = vrot.slane %v2307, 4
        %v2318 = vrot.slane %v2309, 4
        %v2319 = vrot.slane %v2311, 4
        %v2320 = vsel %vm1820, %v2312, %v2313
        %vm2321 = vcmask 891904
        %v2322 = vsel %vm2321, %v2297, %v2320
        %v2323 = vsel %vm2321, %v2299, %v2313
        %v2324 = vsel %vm1820, %v2314, %v2315
        %v2325 = vsel %vm2321, %v2301, %v2324
        %v2326 = vsel %vm2321, %v2303, %v2315
        %v2327 = vsel %vm1820, %v2316, %v2317
        %v2328 = vsel %vm2321, %v2305, %v2327
        %v2329 = vsel %vm2321, %v2307, %v2317
        %v2330 = vsel %vm1820, %v2318, %v2319
        %v2331 = vsel %vm2321, %v2309, %v2330
        %v2332 = vsel %vm2321, %v2311, %v2319
        %2341 = vst [vmem:[#allocation7 + $0x180] sm:$0xff] %v2322
        %2342 = vst [vmem:[#allocation7 + $0x188] sm:$0xf] %v2323
        %2343 = vst [vmem:[#allocation7 + $0x18c] sm:$0xff] %v2325
        %2344 = vst [vmem:[#allocation7 + $0x194] sm:$0xf] %v2326
        %2345 = vst [vmem:[#allocation7 + $0x198] sm:$0xff] %v2328
        %2346 = vst [vmem:[#allocation7 + $0x1a0] sm:$0xf] %v2329
        %2347 = vst [vmem:[#allocation7 + $0x1a4] sm:$0xff] %v2331
        %2348 = vst [vmem:[#allocation7 + $0x1ac] sm:$0xf] %v2332
        %v2349 = vld [vmem:[%s2] sm:$0xff]
        %v2350 = vld [vmem:[%s2 + $0x8] sm:$0xf]
        %v2351 = vld [vmem:[%s2 + $0xc] sm:$0xff]
        %v2352 = vld [vmem:[%s2 + $0x14] sm:$0xf]
        %v2353 = vld [vmem:[%s2 + $0x18] sm:$0xff]
        %v2354 = vld [vmem:[%s2 + $0x20] sm:$0xf]
        %v2355 = vld [vmem:[%s2 + $0x24] sm:$0xff]
        %v2356 = vld [vmem:[%s2 + $0x2c] sm:$0xf]
        %v2357 = vld [vmem:[#allocation7] sm:$0xff]
        %v2358 = vld [vmem:[#allocation7 + $0x8] sm:$0xf]
        %v2359 = vld [vmem:[#allocation7 + $0xc] sm:$0xff]
        %v2360 = vld [vmem:[#allocation7 + $0x14] sm:$0xf]
        %v2361 = vld [vmem:[#allocation7 + $0x18] sm:$0xff]
        %v2362 = vld [vmem:[#allocation7 + $0x20] sm:$0xf]
        %v2363 = vld [vmem:[#allocation7 + $0x24] sm:$0xff]
        %v2364 = vld [vmem:[#allocation7 + $0x2c] sm:$0xf]
        %v2365 = vld [vmem:[#allocation7 + $0x30] sm:$0xff]
        %v2366 = vld [vmem:[#allocation7 + $0x38] sm:$0xf]
        %v2367 = vld [vmem:[#allocation7 + $0x3c] sm:$0xff]
        %v2368 = vld [vmem:[#allocation7 + $0x44] sm:$0xf]
        %v2369 = vld [vmem:[#allocation7 + $0x48] sm:$0xff]
        %v2370 = vld [vmem:[#allocation7 + $0x50] sm:$0xf]
        %v2371 = vld [vmem:[#allocation7 + $0x54] sm:$0xff]
        %v2372 = vld [vmem:[#allocation7 + $0x5c] sm:$0xf]
        %v2373 = vld [vmem:[#allocation7 + $0x60] sm:$0xff]
        %v2374 = vld [vmem:[#allocation7 + $0x68] sm:$0xf]
        %v2375 = vld [vmem:[#allocation7 + $0x6c] sm:$0xff]
        %v2376 = vld [vmem:[#allocation7 + $0x74] sm:$0xf]
        %v2377 = vld [vmem:[#allocation7 + $0x78] sm:$0xff]
        %v2378 = vld [vmem:[#allocation7 + $0x80] sm:$0xf]
        %v2379 = vld [vmem:[#allocation7 + $0x84] sm:$0xff]
        %v2380 = vld [vmem:[#allocation7 + $0x8c] sm:$0xf]
        %v2381 = vld [vmem:[#allocation7 + $0x90] sm:$0xff]
        %v2382 = vld [vmem:[#allocation7 + $0x98] sm:$0xf]
        %v2383 = vld [vmem:[#allocation7 + $0x9c] sm:$0xff]
        %v2384 = vld [vmem:[#allocation7 + $0xa4] sm:$0xf]
        %v2385 = vld [vmem:[#allocation7 + $0xa8] sm:$0xff]
        %v2386 = vld [vmem:[#allocation7 + $0xb0] sm:$0xf]
        %v2387 = vld [vmem:[#allocation7 + $0xb4] sm:$0xff]
        %v2388 = vld [vmem:[#allocation7 + $0xbc] sm:$0xf]
        %v2389 = vld [vmem:[#allocation7 + $0xc0] sm:$0xff]
        %v2390 = vld [vmem:[#allocation7 + $0xc8] sm:$0xf]
        %v2391 = vld [vmem:[#allocation7 + $0xcc] sm:$0xff]
        %v2392 = vld [vmem:[#allocation7 + $0xd4] sm:$0xf]
        %v2393 = vld [vmem:[#allocation7 + $0xd8] sm:$0xff]
        %v2394 = vld [vmem:[#allocation7 + $0xe0] sm:$0xf]
        %v2395 = vld [vmem:[#allocation7 + $0xe4] sm:$0xff]
        %v2396 = vld [vmem:[#allocation7 + $0xec] sm:$0xf]
        %v2397 = vld [vmem:[#allocation7 + $0xf0] sm:$0xff]
        %v2398 = vld [vmem:[#allocation7 + $0xf8] sm:$0xf]
        %v2399 = vld [vmem:[#allocation7 + $0xfc] sm:$0xff]
        %v2400 = vld [vmem:[#allocation7 + $0x104] sm:$0xf]
        %v2401 = vld [vmem:[#allocation7 + $0x108] sm:$0xff]
        %v2402 = vld [vmem:[#allocation7 + $0x110] sm:$0xf]
        %v2403 = vld [vmem:[#allocation7 + $0x114] sm:$0xff]
        %v2404 = vld [vmem:[#allocation7 + $0x11c] sm:$0xf]
        %v2405 = vld [vmem:[#allocation7 + $0x120] sm:$0xff]
        %v2406 = vld [vmem:[#allocation7 + $0x128] sm:$0xf]
        %v2407 = vld [vmem:[#allocation7 + $0x12c] sm:$0xff]
        %v2408 = vld [vmem:[#allocation7 + $0x134] sm:$0xf]
        %v2409 = vld [vmem:[#allocation7 + $0x138] sm:$0xff]
        %v2410 = vld [vmem:[#allocation7 + $0x140] sm:$0xf]
        %v2411 = vld [vmem:[#allocation7 + $0x144] sm:$0xff]
        %v2412 = vld [vmem:[#allocation7 + $0x14c] sm:$0xf]
        %v2413 = vld [vmem:[#allocation7 + $0x150] sm:$0xff]
        %v2414 = vld [vmem:[#allocation7 + $0x158] sm:$0xf]
        %v2415 = vld [vmem:[#allocation7 + $0x15c] sm:$0xff]
        %v2416 = vld [vmem:[#allocation7 + $0x164] sm:$0xf]
        %v2417 = vld [vmem:[#allocation7 + $0x168] sm:$0xff]
        %v2418 = vld [vmem:[#allocation7 + $0x170] sm:$0xf]
        %v2419 = vld [vmem:[#allocation7 + $0x174] sm:$0xff]
        %v2420 = vld [vmem:[#allocation7 + $0x17c] sm:$0xf]
        %v2421 = vld [vmem:[#allocation7 + $0x180] sm:$0xff]
        %v2422 = vld [vmem:[#allocation7 + $0x188] sm:$0xf]
        %v2423 = vld [vmem:[#allocation7 + $0x18c] sm:$0xff]
        %v2424 = vld [vmem:[#allocation7 + $0x194] sm:$0xf]
        %v2425 = vld [vmem:[#allocation7 + $0x198] sm:$0xff]
        %v2426 = vld [vmem:[#allocation7 + $0x1a0] sm:$0xf]
        %v2427 = vld [vmem:[#allocation7 + $0x1a4] sm:$0xff]
        %v2428 = vld [vmem:[#allocation7 + $0x1ac] sm:$0xf]
        %2430 = vset.pattern.permute.xlu0 3
        %2431 = vperm.xlu0 %2430, %v1532
        %v2432 = vpop.permute.xlu0 %2431
        %2435 = vset.pattern.permute.xlu0 3
        %2436 = vperm.xlu0 %2435, %v1533
        %v2437 = vpop.permute.xlu0 %2436
        %2440 = vset.pattern.permute.xlu0 3
        %2441 = vperm.xlu0 %2440, %v1534
        %v2442 = vpop.permute.xlu0 %2441
        %2445 = vset.pattern.permute.xlu0 3
        %2446 = vperm.xlu0 %2445, %v1535
        %v2447 = vpop.permute.xlu0 %2446
        %v2457 = vunpack.c.l.b16 %v2349
        %v2458 = vunpack.c.h.b16 %v2349
        %v2459 = vunpack.c.l.b16 %v2350
        %v2460 = vunpack.c.l.b16 %v2351
        %v2461 = vunpack.c.h.b16 %v2351
        %v2462 = vunpack.c.l.b16 %v2352
        %v2463 = vunpack.c.l.b16 %v2353
        %v2464 = vunpack.c.h.b16 %v2353
        %v2465 = vunpack.c.l.b16 %v2354
        %v2466 = vunpack.c.l.b16 %v2355
        %v2467 = vunpack.c.h.b16 %v2355
        %v2468 = vunpack.c.l.b16 %v2356
        %v2469 = vpack.c.b16 %v2460, %v2457
        %v2470 = vpack.c.b16 %v2461, %v2458
        %v2471 = vpack.c.b16 %v2462, %v2459
        %v2472 = vpack.c.b16 %v2466, %v2463
        %v2473 = vpack.c.b16 %v2467, %v2464
        %v2474 = vpack.c.b16 %v2468, %v2465
        %v2551 = vunpack.c.l.b16 %v2357
        %v2552 = vunpack.c.h.b16 %v2357
        %v2553 = vunpack.c.l.b16 %v2358
        %v2554 = vunpack.c.l.b16 %v2359
        %v2555 = vunpack.c.h.b16 %v2359
        %v2556 = vunpack.c.l.b16 %v2360
        %v2557 = vunpack.c.l.b16 %v2361
        %v2558 = vunpack.c.h.b16 %v2361
        %v2559 = vunpack.c.l.b16 %v2362
        %v2560 = vunpack.c.l.b16 %v2363
        %v2561 = vunpack.c.h.b16 %v2363
        %v2562 = vunpack.c.l.b16 %v2364
        %v2563 = vunpack.c.l.b16 %v2365
        %v2564 = vunpack.c.h.b16 %v2365
        %v2565 = vunpack.c.l.b16 %v2366
        %v2566 = vunpack.c.l.b16 %v2367
        %v2567 = vunpack.c.h.b16 %v2367
        %v2568 = vunpack.c.l.b16 %v2368
        %v2569 = vunpack.c.l.b16 %v2369
        %v2570 = vunpack.c.h.b16 %v2369
        %v2571 = vunpack.c.l.b16 %v2370
        %v2572 = vunpack.c.l.b16 %v2371
        %v2573 = vunpack.c.h.b16 %v2371
        %v2574 = vunpack.c.l.b16 %v2372
        %v2575 = vunpack.c.l.b16 %v2373
        %v2576 = vunpack.c.h.b16 %v2373
        %v2577 = vunpack.c.l.b16 %v2374
        %v2578 = vunpack.c.l.b16 %v2375
        %v2579 = vunpack.c.h.b16 %v2375
        %v2580 = vunpack.c.l.b16 %v2376
        %v2581 = vunpack.c.l.b16 %v2377
        %v2582 = vunpack.c.h.b16 %v2377
        %v2583 = vunpack.c.l.b16 %v2378
        %v2584 = vunpack.c.l.b16 %v2379
        %v2585 = vunpack.c.h.b16 %v2379
        %v2586 = vunpack.c.l.b16 %v2380
        %v2587 = vunpack.c.l.b16 %v2381
        %v2588 = vunpack.c.h.b16 %v2381
        %v2589 = vunpack.c.l.b16 %v2382
        %v2590 = vunpack.c.l.b16 %v2383
        %v2591 = vunpack.c.h.b16 %v2383
        %v2592 = vunpack.c.l.b16 %v2384
        %v2593 = vunpack.c.l.b16 %v2385
        %v2594 = vunpack.c.h.b16 %v2385
        %v2595 = vunpack.c.l.b16 %v2386
        %v2596 = vunpack.c.l.b16 %v2387
        %v2597 = vunpack.c.h.b16 %v2387
        %v2598 = vunpack.c.l.b16 %v2388
        %v2599 = vunpack.c.l.b16 %v2389
        %v2600 = vunpack.c.h.b16 %v2389
        %v2601 = vunpack.c.l.b16 %v2390
        %v2602 = vunpack.c.l.b16 %v2391
        %v2603 = vunpack.c.h.b16 %v2391
        %v2604 = vunpack.c.l.b16 %v2392
        %v2605 = vunpack.c.l.b16 %v2393
        %v2606 = vunpack.c.h.b16 %v2393
        %v2607 = vunpack.c.l.b16 %v2394
        %v2608 = vunpack.c.l.b16 %v2395
        %v2609 = vunpack.c.h.b16 %v2395
        %v2610 = vunpack.c.l.b16 %v2396
        %v2611 = vunpack.c.l.b16 %v2397
        %v2612 = vunpack.c.h.b16 %v2397
        %v2613 = vunpack.c.l.b16 %v2398
        %v2614 = vunpack.c.l.b16 %v2399
        %v2615 = vunpack.c.h.b16 %v2399
        %v2616 = vunpack.c.l.b16 %v2400
        %v2617 = vunpack.c.l.b16 %v2401
        %v2618 = vunpack.c.h.b16 %v2401
        %v2619 = vunpack.c.l.b16 %v2402
        %v2620 = vunpack.c.l.b16 %v2403
        %v2621 = vunpack.c.h.b16 %v2403
        %v2622 = vunpack.c.l.b16 %v2404
        %v2623 = vunpack.c.l.b16 %v2405
        %v2624 = vunpack.c.h.b16 %v2405
        %v2625 = vunpack.c.l.b16 %v2406
        %v2626 = vunpack.c.l.b16 %v2407
        %v2627 = vunpack.c.h.b16 %v2407
        %v2628 = vunpack.c.l.b16 %v2408
        %v2629 = vunpack.c.l.b16 %v2409
        %v2630 = vunpack.c.h.b16 %v2409
        %v2631 = vunpack.c.l.b16 %v2410
        %v2632 = vunpack.c.l.b16 %v2411
        %v2633 = vunpack.c.h.b16 %v2411
        %v2634 = vunpack.c.l.b16 %v2412
        %v2635 = vunpack.c.l.b16 %v2413
        %v2636 = vunpack.c.h.b16 %v2413
        %v2637 = vunpack.c.l.b16 %v2414
        %v2638 = vunpack.c.l.b16 %v2415
        %v2639 = vunpack.c.h.b16 %v2415
        %v2640 = vunpack.c.l.b16 %v2416
        %v2641 = vunpack.c.l.b16 %v2417
        %v2642 = vunpack.c.h.b16 %v2417
        %v2643 = vunpack.c.l.b16 %v2418
        %v2644 = vunpack.c.l.b16 %v2419
        %v2645 = vunpack.c.h.b16 %v2419
        %v2646 = vunpack.c.l.b16 %v2420
        %v2647 = vunpack.c.l.b16 %v2421
        %v2648 = vunpack.c.h.b16 %v2421
        %v2649 = vunpack.c.l.b16 %v2422
        %v2650 = vunpack.c.l.b16 %v2423
        %v2651 = vunpack.c.h.b16 %v2423
        %v2652 = vunpack.c.l.b16 %v2424
        %v2653 = vunpack.c.l.b16 %v2425
        %v2654 = vunpack.c.h.b16 %v2425
        %v2655 = vunpack.c.l.b16 %v2426
        %v2656 = vunpack.c.l.b16 %v2427
        %v2657 = vunpack.c.h.b16 %v2427
        %v2658 = vunpack.c.l.b16 %v2428
        %v2659 = vpack.c.b16 %v2554, %v2551
        %v2660 = vpack.c.b16 %v2555, %v2552
        %v2661 = vpack.c.b16 %v2556, %v2553
        %v2662 = vpack.c.b16 %v2560, %v2557
        %v2663 = vpack.c.b16 %v2561, %v2558
        %v2664 = vpack.c.b16 %v2562, %v2559
        %v2665 = vpack.c.b16 %v2566, %v2563
        %v2666 = vpack.c.b16 %v2567, %v2564
        %v2667 = vpack.c.b16 %v2568, %v2565
        %v2668 = vpack.c.b16 %v2572, %v2569
        %v2669 = vpack.c.b16 %v2573, %v2570
        %v2670 = vpack.c.b16 %v2574, %v2571
        %v2671 = vpack.c.b16 %v2578, %v2575
        %v2672 = vpack.c.b16 %v2579, %v2576
        %v2673 = vpack.c.b16 %v2580, %v2577
        %v2674 = vpack.c.b16 %v2584, %v2581
        %v2675 = vpack.c.b16 %v2585, %v2582
        %v2676 = vpack.c.b16 %v2586, %v2583
        %v2677 = vpack.c.b16 %v2590, %v2587
        %v2678 = vpack.c.b16 %v2591, %v2588
        %v2679 = vpack.c.b16 %v2592, %v2589
        %v2680 = vpack.c.b16 %v2596, %v2593
        %v2681 = vpack.c.b16 %v2597, %v2594
        %v2682 = vpack.c.b16 %v2598, %v2595
        %v2683 = vpack.c.b16 %v2602, %v2599
        %v2684 = vpack.c.b16 %v2603, %v2600
        %v2685 = vpack.c.b16 %v2604, %v2601
        %v2686 = vpack.c.b16 %v2608, %v2605
        %v2687 = vpack.c.b16 %v2609, %v2606
        %v2688 = vpack.c.b16 %v2610, %v2607
        %v2689 = vpack.c.b16 %v2614, %v2611
        %v2690 = vpack.c.b16 %v2615, %v2612
        %v2691 = vpack.c.b16 %v2616, %v2613
        %v2692 = vpack.c.b16 %v2620, %v2617
        %v2693 = vpack.c.b16 %v2621, %v2618
        %v2694 = vpack.c.b16 %v2622, %v2619
        %v2695 = vpack.c.b16 %v2626, %v2623
        %v2696 = vpack.c.b16 %v2627, %v2624
        %v2697 = vpack.c.b16 %v2628, %v2625
        %v2698 = vpack.c.b16 %v2632, %v2629
        %v2699 = vpack.c.b16 %v2633, %v2630
        %v2700 = vpack.c.b16 %v2634, %v2631
        %v2701 = vpack.c.b16 %v2638, %v2635
        %v2702 = vpack.c.b16 %v2639, %v2636
        %v2703 = vpack.c.b16 %v2640, %v2637
        %v2704 = vpack.c.b16 %v2644, %v2641
        %v2705 = vpack.c.b16 %v2645, %v2642
        %v2706 = vpack.c.b16 %v2646, %v2643
        %v2707 = vpack.c.b16 %v2650, %v2647
        %v2708 = vpack.c.b16 %v2651, %v2648
        %v2709 = vpack.c.b16 %v2652, %v2649
        %v2710 = vpack.c.b16 %v2656, %v2653
        %v2711 = vpack.c.b16 %v2657, %v2654
        %v2712 = vpack.c.b16 %v2658, %v2655
        %vm2767 = vcmask 261120
        %v2769 = vsel %vm2767, %v2471, 0
        %v2772 = vsel %vm2767, %v2474, 0
        %2774 = vmatpush.bf16.msra.mxu0 %v2680
        %2775 = vmatpush.bf16.msra.mxu0 %v2677
        %2776 = vmatpush.bf16.msra.mxu0 %v2674
        %2777 = vmatpush.bf16.msra.mxu0 %v2671
        %2778 = vmatpush.bf16.msra.mxu0 %v2668
        %2779 = vmatpush.bf16.msra.mxu0 %v2665
        %2780 = vmatpush.bf16.msra.mxu0 %v2662
        %2781 = vmatpush.bf16.msra.mxu0 %v2659
        %2782 = vmatmul.bf16.gmra.mxu0 %v2469
        %v2783 = vpop.f32.mrf.mxu0
        %v2784 = vadd.f32 %v2432, %v2783
        %v2785 = vpop.f32.mrf.mxu0
        %v2786 = vadd.f32 %v2437, %v2785
        %2787 = vmatmul.bf16.gmra.mxu0 %v2472
        %v2788 = vpop.f32.mrf.mxu0
        %v2789 = vadd.f32 %v2442, %v2788
        %v2790 = vpop.f32.mrf.mxu0
        %v2791 = vadd.f32 %v2447, %v2790
        %2792 = vdwg.mxu0
        %2793 = vmatpush.bf16.msra.mxu0 %v2704
        %2794 = vmatpush.bf16.msra.mxu0 %v2701
        %2795 = vmatpush.bf16.msra.mxu0 %v2698
        %2796 = vmatpush.bf16.msra.mxu0 %v2695
        %2797 = vmatpush.bf16.msra.mxu0 %v2692
        %2798 = vmatpush.bf16.msra.mxu0 %v2689
        %2799 = vmatpush.bf16.msra.mxu0 %v2686
        %2800 = vmatpush.bf16.msra.mxu0 %v2683
        %2801 = vmatmul.bf16.gmra.mxu0 %v2470
        %v2802 = vpop.f32.mrf.mxu0
        %v2803 = vadd.f32 %v2784, %v2802
        %v2804 = vpop.f32.mrf.mxu0
        %v2805 = vadd.f32 %v2786, %v2804
        %2806 = vmatmul.bf16.gmra.mxu0 %v2473
        %v2807 = vpop.f32.mrf.mxu0
        %v2808 = vadd.f32 %v2789, %v2807
        %v2809 = vpop.f32.mrf.mxu0
        %v2810 = vadd.f32 %v2791, %v2809
        %2811 = vdwg.mxu0
        %2812 = vmatpush.bf16.msra.mxu0 0
        %2813 = vmatpush.bf16.msra.mxu0 0
        %2814 = vmatpush.bf16.msra.mxu0 0
        %2815 = vmatpush.bf16.msra.mxu0 0
        %2816 = vmatpush.bf16.msra.mxu0 0
        %2817 = vmatpush.bf16.msra.mxu0 0
        %2818 = vmatpush.bf16.msra.mxu0 %v2710
        %2819 = vmatpush.bf16.msra.mxu0 %v2707
        %2820 = vmatmul.bf16.gmra.mxu0 %v2769
        %v2821 = vpop.f32.mrf.mxu0
        %v2822 = vadd.f32 %v2803, %v2821
        %v2823 = vpop.f32.mrf.mxu0
        %v2824 = vadd.f32 %v2805, %v2823
        %2825 = vmatmul.bf16.gmra.mxu0 %v2772
        %v2826 = vpop.f32.mrf.mxu0
        %v2827 = vadd.f32 %v2808, %v2826
        %v2828 = vpop.f32.mrf.mxu0
        %v2829 = vadd.f32 %v2810, %v2828
        %2830 = vdwg.mxu0
        %2831 = vmatpush.bf16.msra.mxu0 %v2681
        %2832 = vmatpush.bf16.msra.mxu0 %v2678
        %2833 = vmatpush.bf16.msra.mxu0 %v2675
        %2834 = vmatpush.bf16.msra.mxu0 %v2672
        %2835 = vmatpush.bf16.msra.mxu0 %v2669
        %2836 = vmatpush.bf16.msra.mxu0 %v2666
        %2837 = vmatpush.bf16.msra.mxu0 %v2663
        %2838 = vmatpush.bf16.msra.mxu0 %v2660
        %2839 = vmatmul.bf16.gmra.mxu0 %v2469
        %v2840 = vpop.f32.mrf.mxu0
        %v2841 = vadd.f32 %v2432, %v2840
        %v2842 = vpop.f32.mrf.mxu0
        %v2843 = vadd.f32 %v2437, %v2842
        %2844 = vmatmul.bf16.gmra.mxu0 %v2472
        %v2845 = vpop.f32.mrf.mxu0
        %v2846 = vadd.f32 %v2442, %v2845
        %v2847 = vpop.f32.mrf.mxu0
        %v2848 = vadd.f32 %v2447, %v2847
        %2849 = vdwg.mxu0
        %2850 = vmatpush.bf16.msra.mxu0 %v2705
        %2851 = vmatpush.bf16.msra.mxu0 %v2702
        %2852 = vmatpush.bf16.msra.mxu0 %v2699
        %2853 = vmatpush.bf16.msra.mxu0 %v2696
        %2854 = vmatpush.bf16.msra.mxu0 %v2693
        %2855 = vmatpush.bf16.msra.mxu0 %v2690
        %2856 = vmatpush.bf16.msra.mxu0 %v2687
        %2857 = vmatpush.bf16.msra.mxu0 %v2684
        %2858 = vmatmul.bf16.gmra.mxu0 %v2470
        %v2859 = vpop.f32.mrf.mxu0
        %v2860 = vadd.f32 %v2841, %v2859
        %v2861 = vpop.f32.mrf.mxu0
        %v2862 = vadd.f32 %v2843, %v2861
        %2863 = vmatmul.bf16.gmra.mxu0 %v2473
        %v2864 = vpop.f32.mrf.mxu0
        %v2865 = vadd.f32 %v2846, %v2864
        %v2866 = vpop.f32.mrf.mxu0
        %v2867 = vadd.f32 %v2848, %v2866
        %2868 = vdwg.mxu0
        %2869 = vmatpush.bf16.msra.mxu0 0
        %2870 = vmatpush.bf16.msra.mxu0 0
        %2871 = vmatpush.bf16.msra.mxu0 0
        %2872 = vmatpush.bf16.msra.mxu0 0
        %2873 = vmatpush.bf16.msra.mxu0 0
        %2874 = vmatpush.bf16.msra.mxu0 0
        %2875 = vmatpush.bf16.msra.mxu0 %v2711
        %2876 = vmatpush.bf16.msra.mxu0 %v2708
        %2877 = vmatmul.bf16.gmra.mxu0 %v2769
        %v2878 = vpop.f32.mrf.mxu0
        %v2879 = vadd.f32 %v2860, %v2878
        %v2880 = vpop.f32.mrf.mxu0
        %v2881 = vadd.f32 %v2862, %v2880
        %2882 = vmatmul.bf16.gmra.mxu0 %v2772
        %v2883 = vpop.f32.mrf.mxu0
        %v2884 = vadd.f32 %v2865, %v2883
        %v2885 = vpop.f32.mrf.mxu0
        %v2886 = vadd.f32 %v2867, %v2885
        %2887 = vdwg.mxu0
        %2888 = vmatpush.bf16.msra.mxu0 %v2682
        %2889 = vmatpush.bf16.msra.mxu0 %v2679
        %2890 = vmatpush.bf16.msra.mxu0 %v2676
        %2891 = vmatpush.bf16.msra.mxu0 %v2673
        %2892 = vmatpush.bf16.msra.mxu0 %v2670
        %2893 = vmatpush.bf16.msra.mxu0 %v2667
        %2894 = vmatpush.bf16.msra.mxu0 %v2664
        %2895 = vmatpush.bf16.msra.mxu0 %v2661
        %2896 = vmatmul.bf16.gmra.mxu0 %v2469
        %v2897 = vpop.f32.mrf.mxu0
        %v2898 = vadd.f32 %v2432, %v2897
        %v2899 = vpop.f32.mrf.mxu0
        %v2900 = vadd.f32 %v2437, %v2899
        %2901 = vmatmul.bf16.gmra.mxu0 %v2472
        %v2902 = vpop.f32.mrf.mxu0
        %v2903 = vadd.f32 %v2442, %v2902
        %v2904 = vpop.f32.mrf.mxu0
        %v2905 = vadd.f32 %v2447, %v2904
        %2906 = vdwg.mxu0
        %2907 = vmatpush.bf16.msra.mxu0 %v2706
        %2908 = vmatpush.bf16.msra.mxu0 %v2703
        %2909 = vmatpush.bf16.msra.mxu0 %v2700
        %2910 = vmatpush.bf16.msra.mxu0 %v2697
        %2911 = vmatpush.bf16.msra.mxu0 %v2694
        %2912 = vmatpush.bf16.msra.mxu0 %v2691
        %2913 = vmatpush.bf16.msra.mxu0 %v2688
        %2914 = vmatpush.bf16.msra.mxu0 %v2685
        %2915 = vmatmul.bf16.gmra.mxu0 %v2470
        %v2916 = vpop.f32.mrf.mxu0
        %v2917 = vadd.f32 %v2898, %v2916
        %v2918 = vpop.f32.mrf.mxu0
        %v2919 = vadd.f32 %v2900, %v2918
        %2920 = vmatmul.bf16.gmra.mxu0 %v2473
        %v2921 = vpop.f32.mrf.mxu0
        %v2922 = vadd.f32 %v2903, %v2921
        %v2923 = vpop.f32.mrf.mxu0
        %v2924 = vadd.f32 %v2905, %v2923
        %2925 = vdwg.mxu0
        %2926 = vmatpush.bf16.msra.mxu0 0
        %2927 = vmatpush.bf16.msra.mxu0 0
        %2928 = vmatpush.bf16.msra.mxu0 0
        %2929 = vmatpush.bf16.msra.mxu0 0
        %2930 = vmatpush.bf16.msra.mxu0 0
        %2931 = vmatpush.bf16.msra.mxu0 0
        %2932 = vmatpush.bf16.msra.mxu0 %v2712
        %2933 = vmatpush.bf16.msra.mxu0 %v2709
        %2934 = vmatmul.bf16.gmra.mxu0 %v2769
        %v2935 = vpop.f32.mrf.mxu0
        %v2936 = vadd.f32 %v2917, %v2935
        %v2937 = vpop.f32.mrf.mxu0
        %v2938 = vadd.f32 %v2919, %v2937
        %2939 = vmatmul.bf16.gmra.mxu0 %v2772
        %v2940 = vpop.f32.mrf.mxu0
        %v2941 = vadd.f32 %v2922, %v2940
        %v2942 = vpop.f32.mrf.mxu0
        %v2943 = vadd.f32 %v2924, %v2942
        %2944 = vdwg.mxu0
        %v2945 = vmul.f32 %v2822, %v1736
        %v2946 = vmul.f32 %v2879, %v1737
        %v2947 = vmul.f32 %v2936, %v1738
        %v2948 = vmul.f32 %v2824, %v1736
        %v2949 = vmul.f32 %v2881, %v1737
        %v2950 = vmul.f32 %v2938, %v1738
        %v2951 = vmul.f32 %v2827, %v1736
        %v2952 = vmul.f32 %v2884, %v1737
        %v2953 = vmul.f32 %v2941, %v1738
        %v2954 = vmul.f32 %v2829, %v1736
        %v2955 = vmul.f32 %v2886, %v1737
        %v2956 = vmul.f32 %v2943, %v1738
        %v2957 = vadd.f32 %v2945, %v2946
        %v2958 = vadd.f32 %v2957, %v2947
        %2959 = vadd.xlane.f32.xlu0 %v2958
        %v2960 = vpop.xlane.xlu0 %2959
        %v2961 = vadd.f32 %v2948, %v2949
        %v2962 = vadd.f32 %v2961, %v2950
        %2963 = vadd.xlane.f32.xlu0 %v2962
        %v2964 = vpop.xlane.xlu0 %2963
        %v2965 = vadd.f32 %v2951, %v2952
        %v2966 = vadd.f32 %v2965, %v2953
        %2967 = vadd.xlane.f32.xlu0 %v2966
        %v2968 = vpop.xlane.xlu0 %2967
        %v2969 = vadd.f32 %v2954, %v2955
        %v2970 = vadd.f32 %v2969, %v2956
        %2971 = vadd.xlane.f32.xlu0 %v2970
        %v2972 = vpop.xlane.xlu0 %2971
        %v2973 = vmul.f32 %v2822, %v2945
        %v2974 = vmul.f32 %v2879, %v2946
        %v2975 = vmul.f32 %v2936, %v2947
        %v2976 = vmul.f32 %v2824, %v2948
        %v2977 = vmul.f32 %v2881, %v2949
        %v2978 = vmul.f32 %v2938, %v2950
        %v2979 = vmul.f32 %v2827, %v2951
        %v2980 = vmul.f32 %v2884, %v2952
        %v2981 = vmul.f32 %v2941, %v2953
        %v2982 = vmul.f32 %v2829, %v2954
        %v2983 = vmul.f32 %v2886, %v2955
        %v2984 = vmul.f32 %v2943, %v2956
        %v2985 = vadd.f32 %v2973, %v2974
        %v2986 = vadd.f32 %v2985, %v2975
        %2987 = vadd.xlane.f32.xlu0 %v2986
        %v2988 = vpop.xlane.xlu0 %2987
        %v2989 = vadd.f32 %v2976, %v2977
        %v2990 = vadd.f32 %v2989, %v2978
        %2991 = vadd.xlane.f32.xlu0 %v2990
        %v2992 = vpop.xlane.xlu0 %2991
        %v2993 = vadd.f32 %v2979, %v2980
        %v2994 = vadd.f32 %v2993, %v2981
        %2995 = vadd.xlane.f32.xlu0 %v2994
        %v2996 = vpop.xlane.xlu0 %2995
        %v2997 = vadd.f32 %v2982, %v2983
        %v2998 = vadd.f32 %v2997, %v2984
        %2999 = vadd.xlane.f32.xlu0 %v2998
        %v3000 = vpop.xlane.xlu0 %2999
        %v3001 = vld [vmem:[%s4] sm:$0xff]
        %v3002 = vld [vmem:[%s4 + $0x8] sm:$0xff]
        %v3003 = vld [vmem:[%s4 + $0x10] sm:$0xff]
        %v3004 = vld [vmem:[%s4 + $0x18] sm:$0xff]
        %v3006 = vsel %vm2767, %v3001, 0
        %v3009 = vsel %vm2767, %v3002, 0
        %v3012 = vsel %vm2767, %v3003, 0
        %v3015 = vsel %vm2767, %v3004, 0
        %3017 = vmatpush.msra.mxu0 0.0
        %3018 = vmatpush.msra.mxu0 0.0
        %3019 = vmatpush.msra.mxu0 0.0
        %3020 = vmatpush.msra.mxu0 0.0
        %3021 = vmatpush.msra.mxu0 0.0
        %3022 = vmatpush.msra.mxu0 0.0
        %3023 = vmatpush.msra.mxu0 0.0
        %3024 = vmatpush.msra.mxu0 0.0
        %3025 = vmatpush.msra.mxu0 0.0
        %3026 = vmatpush.msra.mxu0 0.0
        %3027 = vmatpush.msra.mxu0 0.0
        %3028 = vmatpush.msra.mxu0 0.0
        %3029 = vmatpush.msra.mxu0 %v2972
        %3030 = vmatpush.msra.mxu0 %v2968
        %3031 = vmatpush.msra.mxu0 %v2964
        %3032 = vmatpush.msra.mxu0 %v2960
        %3033 = vmatmul.f32.gmra.mxu0 %v3006
        %v3034 = vpop.f32.mrf.mxu0
        %v3035 = vadd.f32 0.0, %v3034
        %3036 = vmatmul.f32.gmra.mxu0 %v3009
        %v3037 = vpop.f32.mrf.mxu0
        %v3038 = vadd.f32 0.0, %v3037
        %3039 = vmatmul.f32.gmra.mxu0 %v3012
        %v3040 = vpop.f32.mrf.mxu0
        %v3041 = vadd.f32 0.0, %v3040
        %3042 = vmatmul.f32.gmra.mxu0 %v3015
        %v3043 = vpop.f32.mrf.mxu0
        %v3044 = vadd.f32 0.0, %v3043
        %3045 = vdwg.mxu0
        %3046 = vmatpush.msra.mxu0 0.0
        %3047 = vmatpush.msra.mxu0 0.0
        %3048 = vmatpush.msra.mxu0 0.0
        %3049 = vmatpush.msra.mxu0 0.0
        %3050 = vmatpush.msra.mxu0 0.0
        %3051 = vmatpush.msra.mxu0 0.0
        %3052 = vmatpush.msra.mxu0 0.0
        %3053 = vmatpush.msra.mxu0 0.0
        %3054 = vmatpush.msra.mxu0 0.0
        %3055 = vmatpush.msra.mxu0 0.0
        %3056 = vmatpush.msra.mxu0 0.0
        %3057 = vmatpush.msra.mxu0 0.0
        %3058 = vmatpush.msra.mxu0 %v3000
        %3059 = vmatpush.msra.mxu0 %v2996
        %3060 = vmatpush.msra.mxu0 %v2992
        %3061 = vmatpush.msra.mxu0 %v2988
        %3062 = vmatmul.f32.gmra.mxu0 %v3006
        %v3063 = vpop.f32.mrf.mxu0
        %v3064 = vadd.f32 0.0, %v3063
        %3065 = vmatmul.f32.gmra.mxu0 %v3009
        %v3066 = vpop.f32.mrf.mxu0
        %v3067 = vadd.f32 0.0, %v3066
        %3068 = vmatmul.f32.gmra.mxu0 %v3012
        %v3069 = vpop.f32.mrf.mxu0
        %v3070 = vadd.f32 0.0, %v3069
        %3071 = vmatmul.f32.gmra.mxu0 %v3015
        %v3072 = vpop.f32.mrf.mxu0
        %v3073 = vadd.f32 0.0, %v3072
        %3074 = vdwg.mxu0
        %v3075 = vmul.f32 %v3035, %v3035
        %v3076 = vmul.f32 %v3038, %v3038
        %v3077 = vmul.f32 %v3041, %v3041
        %v3078 = vmul.f32 %v3044, %v3044
        %v3079 = vsub.f32 %v3064, %v3075
        %v3080 = vsub.f32 %v3067, %v3076
        %v3081 = vsub.f32 %v3070, %v3077
        %v3082 = vsub.f32 %v3073, %v3078
        %v3083 = vadd.f32 %v3079, 1e-05
        %v3084 = vadd.f32 %v3080, 1e-05
        %v3085 = vadd.f32 %v3081, 1e-05
        %v3086 = vadd.f32 %v3082, 1e-05
        %v3087 = vrsqrt.pop %v3083
        %v3088 = vmul.f32 %v3087, %v3083
        %v3089 = vmul.f32 %v3088, %v3087
        %v3090 = vmul.f32 0.5, %v3089
        %v3091 = vsub.f32 1.5, %v3090
        %v3092 = vmul.f32 %v3087, %v3091
        %vm3093 = vweird.f32 %v3083
        %vm3094 = vweird.f32 %v3087
        %vm3095 = vmor %vm3093, %vm3094
        %v3096 = vsel %vm3095, %v3087, %v3092
        %v3097 = vrsqrt.pop %v3084
        %v3098 = vmul.f32 %v3097, %v3084
        %v3099 = vmul.f32 %v3098, %v3097
        %v3100 = vmul.f32 0.5, %v3099
        %v3101 = vsub.f32 1.5, %v3100
        %v3102 = vmul.f32 %v3097, %v3101
        %vm3103 = vweird.f32 %v3084
        %vm3104 = vweird.f32 %v3097
        %vm3105 = vmor %vm3103, %vm3104
        %v3106 = vsel %vm3105, %v3097, %v3102
        %v3107 = vrsqrt.pop %v3085
        %v3108 = vmul.f32 %v3107, %v3085
        %v3109 = vmul.f32 %v3108, %v3107
        %v3110 = vmul.f32 0.5, %v3109
        %v3111 = vsub.f32 1.5, %v3110
        %v3112 = vmul.f32 %v3107, %v3111
        %vm3113 = vweird.f32 %v3085
        %vm3114 = vweird.f32 %v3107
        %vm3115 = vmor %vm3113, %vm3114
        %v3116 = vsel %vm3115, %v3107, %v3112
        %v3117 = vrsqrt.pop %v3086
        %v3118 = vmul.f32 %v3117, %v3086
        %v3119 = vmul.f32 %v3118, %v3117
        %v3120 = vmul.f32 0.5, %v3119
        %v3121 = vsub.f32 1.5, %v3120
        %v3122 = vmul.f32 %v3117, %v3121
        %vm3123 = vweird.f32 %v3086
        %vm3124 = vweird.f32 %v3117
        %vm3125 = vmor %vm3123, %vm3124
        %v3126 = vsel %vm3125, %v3117, %v3122
        %3128 = vset.pattern.permute.xlu0 0
        %3129 = vperm.xlu0 %3128, %v3035
        %v3130 = vpop.permute.xlu0 %3129
        %3133 = vset.pattern.permute.xlu0 0
        %3134 = vperm.xlu0 %3133, %v3038
        %v3135 = vpop.permute.xlu0 %3134
        %3138 = vset.pattern.permute.xlu0 0
        %3139 = vperm.xlu0 %3138, %v3041
        %v3140 = vpop.permute.xlu0 %3139
        %3143 = vset.pattern.permute.xlu0 0
        %3144 = vperm.xlu0 %3143, %v3044
        %v3145 = vpop.permute.xlu0 %3144
        %v3147 = vsub.f32 %v2822, %v3130
        %v3148 = vsub.f32 %v2879, %v3130
        %v3149 = vsub.f32 %v2936, %v3130
        %v3150 = vsub.f32 %v2824, %v3135
        %v3151 = vsub.f32 %v2881, %v3135
        %v3152 = vsub.f32 %v2938, %v3135
        %v3153 = vsub.f32 %v2827, %v3140
        %v3154 = vsub.f32 %v2884, %v3140
        %v3155 = vsub.f32 %v2941, %v3140
        %v3156 = vsub.f32 %v2829, %v3145
        %v3157 = vsub.f32 %v2886, %v3145
        %v3158 = vsub.f32 %v2943, %v3145
        %3159 = vrot.lane.b32.xlu0 %v1532, 124
        %v3160 = vpop.permute.xlu0 %3159
        %3161 = vrot.lane.b32.xlu0 %v1533, 124
        %v3162 = vpop.permute.xlu0 %3161
        %3163 = vrot.lane.b32.xlu0 %v1534, 124
        %v3164 = vpop.permute.xlu0 %3163
        %3165 = vrot.lane.b32.xlu0 %v1535, 124
        %v3166 = vpop.permute.xlu0 %3165
        %v3171 = vmul.f32 %v3096, %v3160
        %v3172 = vmul.f32 %v3106, %v3162
        %v3173 = vmul.f32 %v3116, %v3164
        %v3174 = vmul.f32 %v3126, %v3166
        %3176 = vset.pattern.permute.xlu0 0
        %3177 = vperm.xlu0 %3176, %v3171
        %v3178 = vpop.permute.xlu0 %3177
        %3181 = vset.pattern.permute.xlu0 0
        %3182 = vperm.xlu0 %3181, %v3172
        %v3183 = vpop.permute.xlu0 %3182
        %3186 = vset.pattern.permute.xlu0 0
        %3187 = vperm.xlu0 %3186, %v3173
        %v3188 = vpop.permute.xlu0 %3187
        %3191 = vset.pattern.permute.xlu0 0
        %3192 = vperm.xlu0 %3191, %v3174
        %v3193 = vpop.permute.xlu0 %3192
        %v3195 = vmul.f32 %v3147, %v3178
        %v3196 = vmul.f32 %v3148, %v3178
        %v3197 = vmul.f32 %v3149, %v3178
        %v3198 = vmul.f32 %v3150, %v3183
        %v3199 = vmul.f32 %v3151, %v3183
        %v3200 = vmul.f32 %v3152, %v3183
        %v3201 = vmul.f32 %v3153, %v3188
        %v3202 = vmul.f32 %v3154, %v3188
        %v3203 = vmul.f32 %v3155, %v3188
        %v3204 = vmul.f32 %v3156, %v3193
        %v3205 = vmul.f32 %v3157, %v3193
        %v3206 = vmul.f32 %v3158, %v3193
        %3207 = vset.pattern.permute.xlu0 5
        %3208 = vperm.xlu0 %3207, %v1532
        %v3209 = vpop.permute.xlu0 %3208
        %3211 = vset.pattern.permute.xlu0 5
        %3212 = vperm.xlu0 %3211, %v1533
        %v3213 = vpop.permute.xlu0 %3212
        %3215 = vset.pattern.permute.xlu0 5
        %3216 = vperm.xlu0 %3215, %v1534
        %v3217 = vpop.permute.xlu0 %3216
        %3219 = vset.pattern.permute.xlu0 5
        %3220 = vperm.xlu0 %3219, %v1535
        %v3221 = vpop.permute.xlu0 %3220
        %v3223 = vadd.f32 %v3195, %v3209
        %v3224 = vadd.f32 %v3196, %v3209
        %v3225 = vadd.f32 %v3197, %v3209
        %v3226 = vadd.f32 %v3198, %v3213
        %v3227 = vadd.f32 %v3199, %v3213
        %v3228 = vadd.f32 %v3200, %v3213
        %v3229 = vadd.f32 %v3201, %v3217
        %v3230 = vadd.f32 %v3202, %v3217
        %v3231 = vadd.f32 %v3203, %v3217
        %v3232 = vadd.f32 %v3204, %v3221
        %v3233 = vadd.f32 %v3205, %v3221
        %v3234 = vadd.f32 %v3206, %v3221
        %v3235 = vmax.f32 %v3223, 0.0
        %v3236 = vmax.f32 %v3224, 0.0
        %v3237 = vmax.f32 %v3225, 0.0
        %v3238 = vmax.f32 %v3226, 0.0
        %v3239 = vmax.f32 %v3227, 0.0
        %v3240 = vmax.f32 %v3228, 0.0
        %v3241 = vmax.f32 %v3229, 0.0
        %v3242 = vmax.f32 %v3230, 0.0
        %v3243 = vmax.f32 %v3231, 0.0
        %v3244 = vmax.f32 %v3232, 0.0
        %v3245 = vmax.f32 %v3233, 0.0
        %v3246 = vmax.f32 %v3234, 0.0
        %3247 = vst [vmem:[%s281] sm:$0xff] %v3235
        %3248 = vst [vmem:[%s281 + $0x8] sm:$0xff] %v3236
        %3249 = vst [vmem:[%s281 + $0x10] sm:$0xff] %v3237
        %3250 = vst [vmem:[%s281 + $0x18] sm:$0xff] %v3238
        %3251 = vst [vmem:[%s281 + $0x20] sm:$0xff] %v3239
        %3252 = vst [vmem:[%s281 + $0x28] sm:$0xff] %v3240
        %3253 = vst [vmem:[%s281 + $0x30] sm:$0xff] %v3241
        %3254 = vst [vmem:[%s281 + $0x38] sm:$0xff] %v3242
        %3255 = vst [vmem:[%s281 + $0x40] sm:$0xff] %v3243
        %3256 = vst [vmem:[%s281 + $0x48] sm:$0xff] %v3244
        %3257 = vst [vmem:[%s281 + $0x50] sm:$0xff] %v3245
        %3258 = vst [vmem:[%s281 + $0x58] sm:$0xff] %v3246
      $region56: #{double_conv_forward.1} parent=43 // pred_fallthru
        _
      %s3259 = smul.u32 %s21, %s22
      %p3260 = scmp.lt.s32.totalorder %s3259, 1
      %s3261 = scalar_select %p3260, %s3259, 1
      %s3262 = smul.addr %s3261, 12
      %s3263 = smul.addr %s3262, 8
      %s3264 = scalar_lea.vmem %s6, %s3263
      // Predicated region
      $region57: #{double_conv_forward.1} parent=43 // pred_check
        %p3265 = pneg %p184
      $region58: #{double_conv_forward.1} parent=43 // pred_check_branch
        %3267 = sbr.rel (%p3265) target = $region60
      $region59: #{double_conv_forward.1} parent=43 // pred_region
        %s3268 = smul.u32 %s21, %s22
      $region60: #{double_conv_forward.1} parent=43 // pred_fallthru
        _
    $region44: #{double_conv_forward.1} parent=5 // pred_fallthru
      _
    %p3269 = scmp.le.s32.totalorder 2, %s12
    // Predicated region
    $region61: #{double_conv_forward.1} parent=5 // pred_check
      %p3270 = pneg %p3269
    $region62: #{double_conv_forward.1} parent=5 // pred_check_branch
      %3272 = sbr.rel (%p3270) target = $region64
    $region63: #{double_conv_forward.1} parent=5 // pred_region
      %s3273 = ssub.s32 %s12, 2
      // Predicated region
      $region65: #{double_conv_forward.1} parent=63 // pred_check
        %p3274 = pneg %p190
      $region66: #{double_conv_forward.1} parent=63 // pred_check_branch
        %3276 = sbr.rel (%p3274) target = $region68
      $region67: #{double_conv_forward.1} parent=63 // pred_region
        %s3277 = smul.u32 %s23, %s24
        %p3278 = scmp.lt.s32.totalorder %s3277, 1
        %s3279 = scalar_select %p3278, %s3277, 1
        %s3280 = smul.addr %s3279, 12
        %s3281 = smul.addr %s3280, 8
        %s3282 = scalar_lea.vmem %s6, %s3281
      $region68: #{double_conv_forward.1} parent=63 // pred_fallthru
        _
    $region64: #{double_conv_forward.1} parent=5 // pred_fallthru
      _
  $region6: #{double_conv_forward.1} parent=0 // loop_footer
    %s16 = sadd.s32 1, %s12
  $region7: #{double_conv_forward.1} parent=0 // loop_footer_branch
    %11 = sbr.rel target = $region3
  $region8: #{double_conv_forward.1} parent=0 // loop_exit
    _

</llo_original>
